<compile_context>
chip_gen: v7x
topology: tpu7x:2x2x1
jax: 0.10.0
libtpu: 0.0.40
codegen_flags: <defaults>
</compile_context>

<pallas_src>
import math

import jax
import jax.numpy as jnp
from jax.experimental import pallas as pl
from jax.experimental.pallas import tpu as pltpu

EPS = 1e-5


# ------------------------------- fused kernel --------------------------------

def _fused_block_kernel(x_ref, scale_ref, shift_ref, w_ref, out_ref, pad_ref):
    """One batch element: BN+ReLU -> zero-padded slab -> conv -> concat store.

    x_ref:     (1, H, W, Cin)        f32   input image block
    scale_ref: (1, 1, Cin)           f32   folded BN scale  (gamma / sqrt(var+eps))
    shift_ref: (1, 1, Cin)           f32   folded BN shift  (beta - mean*scale)
    w_ref:     (KH*KW, Cin, Cout)    bf16  conv taps, tap-major (matches i*KW+j)
    out_ref:   (1, H, W, Cin+Cout)   f32   fused concat output
    pad_ref:   (H+2p, W+2p, Cin)     f32   VMEM scratch: activation + zero halo
    """
    _, H, W, Cin = x_ref.shape
    Hp, Wp, _ = pad_ref.shape
    KH = Hp - H + 1                      # stride==1, "same" conv (asserted in wrapper)
    KW = Wp - W + 1
    ph = (KH - 1) // 2
    pw = (KW - 1) // 2
    Cout = w_ref.shape[-1]

    x = x_ref[0]                                           # (H, W, Cin) f32

    # --- pass-through half of the concat (original, un-normalized x) ---------
    out_ref[0, :, :, :Cin] = x

    # --- BN (inference) + ReLU, then zero-padded copy into the VMEM slab -----
    act = jnp.maximum(x * scale_ref[...] + shift_ref[...], 0.0)
    # Zero the whole slab every step: cheap (VPU stores), and safe under
    # megacore grid sharding (no reliance on step-0 initialization).
    pad_ref[...] = jnp.zeros_like(pad_ref)
    pad_ref[ph:ph + H, pw:pw + W, :] = act

    # --- conv as KH*KW shifted bf16 MXU matmuls, f32 accumulation ------------
    acc = jnp.zeros((H * W, Cout), jnp.float32)
    for t in range(KH * KW):
        di, dj = divmod(t, KW)
        win = pad_ref[di:di + H, dj:dj + W, :]             # (H, W, Cin) f32
        win2 = win.reshape(H * W, Cin).astype(jnp.bfloat16)
        acc = acc + jnp.dot(win2, w_ref[t],
                            preferred_element_type=jnp.float32)

    # --- conv half of the concat ---------------------------------------------
    out_ref[0, :, :, Cin:Cin + Cout] = (
        acc.reshape(H, W, Cout).astype(out_ref.dtype))


# ------------------------------ public wrappers -------------------------------

def basic_block_nhwc(x, params, *, stride=1, padding=1):
    """out = conv1(relu(bn1(x))); return cat([x, out], -1).   x: (N,H,W,Cin) f32.

    drop_out=0 in the reference configuration -> Dropout2d is the identity and
    is omitted.
    """
    gamma, beta, mean, var = params['bn1']
    w = params['conv1']                                    # (KH, KW, Cin, Cout)
    N, H, W, Cin = x.shape
    KH, KW, Cin_w, Cout = w.shape
    assert Cin_w == Cin
    # torch.cat([x, out], 1) requires a spatially size-preserving conv.
    assert stride == 1, "fused kernel supports stride=1 ('same' conv) only"
    OH = H + 2 * padding - KH + 1
    OW = W + 2 * padding - KW + 1
    assert OH == H and OW == W, "padding must make the conv size-preserving"

    # Fold BatchNorm2d (inference) into per-channel scale/shift.
    inv_std = gamma * jax.lax.rsqrt(var + EPS)
    scale = inv_std.astype(jnp.float32).reshape(1, 1, Cin)
    shift = (beta - mean * inv_std).astype(jnp.float32).reshape(1, 1, Cin)
    w_taps = w.reshape(KH * KW, Cin, Cout).astype(jnp.bfloat16)

    Ctot = Cin + Cout
    Hp, Wp = H + 2 * padding, W + 2 * padding

    # VMEM budget: 2x(in block) + 2x(out block) + scratch slab + weights.
    in_b = H * W * Cin * 4
    out_b = H * W * Ctot * 4
    est = 2 * (in_b + out_b) + Hp * Wp * Cin * 4 + KH * KW * Cin * Cout * 2 + (2 << 20)
    vmem_limit = int(min(max(est, 32 * 1024 * 1024), 64 * 1024 * 1024))  # v7x-safe

    out = pl.pallas_call(
        _fused_block_kernel,
        out_shape=jax.ShapeDtypeStruct((N, H, W, Ctot), x.dtype),
        grid=(N,),
        in_specs=[
            pl.BlockSpec((1, H, W, Cin), lambda n: (n, 0, 0, 0)),
            pl.BlockSpec((1, 1, Cin), lambda n: (0, 0, 0)),
            pl.BlockSpec((1, 1, Cin), lambda n: (0, 0, 0)),
            pl.BlockSpec((KH * KW, Cin, Cout), lambda n: (0, 0, 0)),  # resident
        ],
        out_specs=pl.BlockSpec((1, H, W, Ctot), lambda n: (n, 0, 0, 0)),
        scratch_shapes=[pltpu.VMEM((Hp, Wp, Cin), jnp.float32)],
        compiler_params=pltpu.CompilerParams(
            dimension_semantics=("parallel",),
            vmem_limit_bytes=vmem_limit),
    )(x, scale, shift, w_taps)
    return out


def basic_block_nchw(x_nchw, params, *, stride=1, padding=1):
    """Drop-in NCHW interface matching the PyTorch module.  Prefer the NHWC
    entry point and keep the whole model NHWC to avoid these two transposes."""
    x = jnp.transpose(x_nchw, (0, 2, 3, 1))
    out = basic_block_nhwc(x, params, stride=stride, padding=padding)
    return jnp.transpose(out, (0, 3, 1, 2))


# ---------------------------- reference (for check) ---------------------------

def basic_block_reference_nhwc(x, params, *, stride=1, padding=1):
    gamma, beta, mean, var = params['bn1']
    inv_std = 1.0 / jnp.sqrt(var + EPS)
    y = jnp.maximum((x - mean) * inv_std * gamma + beta, 0.0)
    out = jax.lax.conv_general_dilated(
        y, params['conv1'],
        window_strides=(stride, stride),
        padding=[(padding, padding), (padding, padding)],
        dimension_numbers=('NHWC', 'HWIO', 'NHWC'),
        precision=jax.lax.Precision.HIGHEST)
    return jnp.concatenate([x, out], axis=-1)


# ------------------------------ parameter init --------------------------------

def init_params(key, in_planes, out_planes, ksize):
    kb1, kb2, kb3, kw = jax.random.split(key, 4)
    gamma = 1.0 + 0.1 * jax.random.normal(kb1, (in_planes,), jnp.float32)
    beta = 0.05 * jax.random.normal(kb2, (in_planes,), jnp.float32)
    mean = 0.05 * jax.random.normal(kb3, (in_planes,), jnp.float32)
    var = jnp.ones((in_planes,), jnp.float32)
    fan_in = ksize * ksize * in_planes
    w = (jax.random.normal(kw, (ksize, ksize, in_planes, out_planes), jnp.float32)
         / math.sqrt(fan_in))
    return {'bn1': (gamma, beta, mean, var), 'conv1': w}


# ----------------------------------- main --------------------------------------

if __name__ == "__main__":
    key = jax.random.PRNGKey(0)
    kp, kx = jax.random.split(key)

    # BasicBlock(in_planes=32, out_planes=16, kernel_size=3, stride=1,
    #            padding=1, drop_out=0), NHWC layout end-to-end.
    N, H, W, Cin = 2, 16, 16, 32
    growth = 16
    params = init_params(kp, Cin, growth, 3)
    x = jax.random.normal(kx, (N, H, W, Cin), jnp.float32)

    fwd = jax.jit(lambda p, xx: basic_block_nhwc(xx, p, stride=1, padding=1))
    out = jax.block_until_ready(fwd(params, x))

    assert out.shape == (N, H, W, Cin + growth), out.shape
    assert bool(jnp.all(jnp.isfinite(out)))

    ref = basic_block_reference_nhwc(x, params, stride=1, padding=1)
    rel_err = jnp.linalg.norm(out - ref) / (jnp.linalg.norm(ref) + 1e-12)
    assert float(rel_err) < 3e-2, float(rel_err)   # bf16 MXU, f32 accumulate

    # Drop-in NCHW interface (same kernel, transposed at the boundary).
    x_nchw = jnp.transpose(x, (0, 3, 1, 2))
    out_nchw = jax.block_until_ready(
        jax.jit(lambda p, xx: basic_block_nchw(xx, p, stride=1, padding=1))(params, x_nchw))
    assert out_nchw.shape == (N, Cin + growth, H, W), out_nchw.shape
    assert float(jnp.max(jnp.abs(out_nchw - jnp.transpose(out, (0, 3, 1, 2))))) < 1e-5

    print("KERNEL_OK")
</pallas_src>

<mosaic_0001>
module attributes {stable_mosaic.version = 11 : i64} {
  func.func @_fused_block_kernel(%arg0: i32, %arg1: memref<1x16x16x32xf32, #tpu.memory_space<vmem>>, %arg2: memref<1x1x32xf32, #tpu.memory_space<vmem>>, %arg3: memref<1x1x32xf32, #tpu.memory_space<vmem>>, %arg4: memref<9x32x16xbf16, #tpu.memory_space<vmem>>, %arg5: memref<1x16x16x48xf32, #tpu.memory_space<vmem>>, %arg6: memref<18x18x32xf32, #tpu.memory_space<vmem>>) attributes {dimension_semantics = [#tpu.dimension_semantics<parallel>], iteration_bounds = array<i64: 2>, scalar_prefetch = 0 : i64, scratch_operands = 1 : i64, tpu.core_type = #tpu.core_type<tc>, window_params = [{transform_indices = @transform_0, window_bounds = array<i64: 1, 16, 16, 32>}, {pipeline_mode = #tpu.pipeline_mode<synchronous>, transform_indices = @transform_1, window_bounds = array<i64: 1, 1, 32>}, {pipeline_mode = #tpu.pipeline_mode<synchronous>, transform_indices = @transform_2, window_bounds = array<i64: 1, 1, 32>}, {pipeline_mode = #tpu.pipeline_mode<synchronous>, transform_indices = @transform_3, window_bounds = array<i64: 9, 32, 16>}, {transform_indices = @transform_4, window_bounds = array<i64: 1, 16, 16, 48>}]} {
    %c0 = arith.constant 0 : index
    %c0_0 = arith.constant 0 : index
    %c0_1 = arith.constant 0 : index
    %c0_2 = arith.constant 0 : index
    %0 = vector.load %arg1[%c0, %c0_0, %c0_1, %c0_2] : memref<1x16x16x32xf32, #tpu.memory_space<vmem>>, vector<1x16x16x32xf32>
    %1 = vector.shape_cast %0 : vector<1x16x16x32xf32> to vector<16x16x32xf32>
    %c0_3 = arith.constant 0 : index
    %c0_4 = arith.constant 0 : index
    %c0_5 = arith.constant 0 : index
    %c0_6 = arith.constant 0 : index
    %2 = vector.load %arg5[%c0_3, %c0_4, %c0_5, %c0_6] : memref<1x16x16x48xf32, #tpu.memory_space<vmem>>, vector<1x16x16x32xf32>
    %3 = vector.shape_cast %2 : vector<1x16x16x32xf32> to vector<16x16x32xf32>
    %4 = vector.shape_cast %1 : vector<16x16x32xf32> to vector<1x16x16x32xf32>
    tpu.vector_store %arg5[%c0_3, %c0_4, %c0_5, %c0_6], %4 {strides = array<i32>} : memref<1x16x16x48xf32, #tpu.memory_space<vmem>>, vector<1x16x16x32xf32>,
    %c0_7 = arith.constant 0 : index
    %c0_8 = arith.constant 0 : index
    %c0_9 = arith.constant 0 : index
    %5 = vector.load %arg2[%c0_7, %c0_8, %c0_9] : memref<1x1x32xf32, #tpu.memory_space<vmem>>, vector<1x1x32xf32>
    %6 = vector.broadcast %5 : vector<1x1x32xf32> to vector<16x16x32xf32>
    %7 = arith.mulf %1, %6 : vector<16x16x32xf32>
    %c0_10 = arith.constant 0 : index
    %c0_11 = arith.constant 0 : index
    %c0_12 = arith.constant 0 : index
    %8 = vector.load %arg3[%c0_10, %c0_11, %c0_12] : memref<1x1x32xf32, #tpu.memory_space<vmem>>, vector<1x1x32xf32>
    %9 = vector.broadcast %8 : vector<1x1x32xf32> to vector<16x16x32xf32>
    %10 = arith.addf %7, %9 : vector<16x16x32xf32>
    %cst = arith.constant 0.000000e+00 : f32
    %11 = vector.broadcast %cst : f32 to vector<16x16x32xf32>
    %12 = arith.maximumf %10, %11 : vector<16x16x32xf32>
    %cst_13 = arith.constant 0.000000e+00 : f32
    %13 = vector.broadcast %cst_13 : f32 to vector<18x18x32xf32>
    %c0_14 = arith.constant 0 : index
    %c0_15 = arith.constant 0 : index
    %c0_16 = arith.constant 0 : index
    %14 = vector.load %arg6[%c0_14, %c0_15, %c0_16] : memref<18x18x32xf32, #tpu.memory_space<vmem>>, vector<18x18x32xf32>
    tpu.vector_store %arg6[%c0_14, %c0_15, %c0_16], %13 {strides = array<i32>} : memref<18x18x32xf32, #tpu.memory_space<vmem>>, vector<18x18x32xf32>,
    %c1 = arith.constant 1 : index
    %c1_17 = arith.constant 1 : index
    %c0_18 = arith.constant 0 : index
    %15 = vector.load %arg6[%c1, %c1_17, %c0_18] : memref<18x18x32xf32, #tpu.memory_space<vmem>>, vector<16x16x32xf32>
    tpu.vector_store %arg6[%c1, %c1_17, %c0_18], %12 {strides = array<i32>} : memref<18x18x32xf32, #tpu.memory_space<vmem>>, vector<16x16x32xf32>,
    %cst_19 = arith.constant 0.000000e+00 : f32
    %16 = vector.broadcast %cst_19 : f32 to vector<256x16xf32>
    %c0_20 = arith.constant 0 : index
    %c0_21 = arith.constant 0 : index
    %c0_22 = arith.constant 0 : index
    %17 = vector.load %arg6[%c0_20, %c0_21, %c0_22] : memref<18x18x32xf32, #tpu.memory_space<vmem>>, vector<16x16x32xf32>
    %18 = vector.shape_cast %17 : vector<16x16x32xf32> to vector<256x32xf32>
    %19 = arith.truncf %18 : vector<256x32xf32> to vector<256x32xbf16>
    %c0_23 = arith.constant 0 : index
    %c0_24 = arith.constant 0 : index
    %c0_25 = arith.constant 0 : index
    %20 = vector.load %arg4[%c0_23, %c0_24, %c0_25] : memref<9x32x16xbf16, #tpu.memory_space<vmem>>, vector<1x32x16xbf16>
    %21 = vector.shape_cast %20 : vector<1x32x16xbf16> to vector<32x16xbf16>
    %cst_26 = arith.constant dense<0.000000e+00> : vector<256x16xf32>
    %22 = tpu.matmul %19, %21, %cst_26 {dimension_numbers = #tpu.dot_dimension_numbers<[1], [0], [0], [1], [0, 0, 1, 1], [], []>} : vector<256x32xbf16>, vector<32x16xbf16>, vector<256x16xf32> -> vector<256x16xf32>
    %23 = arith.addf %16, %22 : vector<256x16xf32>
    %c0_27 = arith.constant 0 : index
    %c1_28 = arith.constant 1 : index
    %c0_29 = arith.constant 0 : index
    %24 = vector.load %arg6[%c0_27, %c1_28, %c0_29] : memref<18x18x32xf32, #tpu.memory_space<vmem>>, vector<16x16x32xf32>
    %25 = vector.shape_cast %24 : vector<16x16x32xf32> to vector<256x32xf32>
    %26 = arith.truncf %25 : vector<256x32xf32> to vector<256x32xbf16>
    %c1_30 = arith.constant 1 : index
    %c0_31 = arith.constant 0 : index
    %c0_32 = arith.constant 0 : index
    %27 = vector.load %arg4[%c1_30, %c0_31, %c0_32] : memref<9x32x16xbf16, #tpu.memory_space<vmem>>, vector<1x32x16xbf16>
    %28 = vector.shape_cast %27 : vector<1x32x16xbf16> to vector<32x16xbf16>
    %cst_33 = arith.constant dense<0.000000e+00> : vector<256x16xf32>
    %29 = tpu.matmul %26, %28, %cst_33 {dimension_numbers = #tpu.dot_dimension_numbers<[1], [0], [0], [1], [0, 0, 1, 1], [], []>} : vector<256x32xbf16>, vector<32x16xbf16>, vector<256x16xf32> -> vector<256x16xf32>
    %30 = arith.addf %23, %29 : vector<256x16xf32>
    %c0_34 = arith.constant 0 : index
    %c2 = arith.constant 2 : index
    %c0_35 = arith.constant 0 : index
    %31 = vector.load %arg6[%c0_34, %c2, %c0_35] : memref<18x18x32xf32, #tpu.memory_space<vmem>>, vector<16x16x32xf32>
    %32 = vector.shape_cast %31 : vector<16x16x32xf32> to vector<256x32xf32>
    %33 = arith.truncf %32 : vector<256x32xf32> to vector<256x32xbf16>
    %c2_36 = arith.constant 2 : index
    %c0_37 = arith.constant 0 : index
    %c0_38 = arith.constant 0 : index
    %34 = vector.load %arg4[%c2_36, %c0_37, %c0_38] : memref<9x32x16xbf16, #tpu.memory_space<vmem>>, vector<1x32x16xbf16>
    %35 = vector.shape_cast %34 : vector<1x32x16xbf16> to vector<32x16xbf16>
    %cst_39 = arith.constant dense<0.000000e+00> : vector<256x16xf32>
    %36 = tpu.matmul %33, %35, %cst_39 {dimension_numbers = #tpu.dot_dimension_numbers<[1], [0], [0], [1], [0, 0, 1, 1], [], []>} : vector<256x32xbf16>, vector<32x16xbf16>, vector<256x16xf32> -> vector<256x16xf32>
    %37 = arith.addf %30, %36 : vector<256x16xf32>
    %c1_40 = arith.constant 1 : index
    %c0_41 = arith.constant 0 : index
    %c0_42 = arith.constant 0 : index
    %38 = vector.load %arg6[%c1_40, %c0_41, %c0_42] : memref<18x18x32xf32, #tpu.memory_space<vmem>>, vector<16x16x32xf32>
    %39 = vector.shape_cast %38 : vector<16x16x32xf32> to vector<256x32xf32>
    %40 = arith.truncf %39 : vector<256x32xf32> to vector<256x32xbf16>
    %c3 = arith.constant 3 : index
    %c0_43 = arith.constant 0 : index
    %c0_44 = arith.constant 0 : index
    %41 = vector.load %arg4[%c3, %c0_43, %c0_44] : memref<9x32x16xbf16, #tpu.memory_space<vmem>>, vector<1x32x16xbf16>
    %42 = vector.shape_cast %41 : vector<1x32x16xbf16> to vector<32x16xbf16>
    %cst_45 = arith.constant dense<0.000000e+00> : vector<256x16xf32>
    %43 = tpu.matmul %40, %42, %cst_45 {dimension_numbers = #tpu.dot_dimension_numbers<[1], [0], [0], [1], [0, 0, 1, 1], [], []>} : vector<256x32xbf16>, vector<32x16xbf16>, vector<256x16xf32> -> vector<256x16xf32>
    %44 = arith.addf %37, %43 : vector<256x16xf32>
    %c1_46 = arith.constant 1 : index
    %c1_47 = arith.constant 1 : index
    %c0_48 = arith.constant 0 : index
    %45 = vector.load %arg6[%c1_46, %c1_47, %c0_48] : memref<18x18x32xf32, #tpu.memory_space<vmem>>, vector<16x16x32xf32>
    %46 = vector.shape_cast %45 : vector<16x16x32xf32> to vector<256x32xf32>
    %47 = arith.truncf %46 : vector<256x32xf32> to vector<256x32xbf16>
    %c4 = arith.constant 4 : index
    %c0_49 = arith.constant 0 : index
    %c0_50 = arith.constant 0 : index
    %48 = vector.load %arg4[%c4, %c0_49, %c0_50] : memref<9x32x16xbf16, #tpu.memory_space<vmem>>, vector<1x32x16xbf16>
    %49 = vector.shape_cast %48 : vector<1x32x16xbf16> to vector<32x16xbf16>
    %cst_51 = arith.constant dense<0.000000e+00> : vector<256x16xf32>
    %50 = tpu.matmul %47, %49, %cst_51 {dimension_numbers = #tpu.dot_dimension_numbers<[1], [0], [0], [1], [0, 0, 1, 1], [], []>} : vector<256x32xbf16>, vector<32x16xbf16>, vector<256x16xf32> -> vector<256x16xf32>
    %51 = arith.addf %44, %50 : vector<256x16xf32>
    %c1_52 = arith.constant 1 : index
    %c2_53 = arith.constant 2 : index
    %c0_54 = arith.constant 0 : index
    %52 = vector.load %arg6[%c1_52, %c2_53, %c0_54] : memref<18x18x32xf32, #tpu.memory_space<vmem>>, vector<16x16x32xf32>
    %53 = vector.shape_cast %52 : vector<16x16x32xf32> to vector<256x32xf32>
    %54 = arith.truncf %53 : vector<256x32xf32> to vector<256x32xbf16>
    %c5 = arith.constant 5 : index
    %c0_55 = arith.constant 0 : index
    %c0_56 = arith.constant 0 : index
    %55 = vector.load %arg4[%c5, %c0_55, %c0_56] : memref<9x32x16xbf16, #tpu.memory_space<vmem>>, vector<1x32x16xbf16>
    %56 = vector.shape_cast %55 : vector<1x32x16xbf16> to vector<32x16xbf16>
    %cst_57 = arith.constant dense<0.000000e+00> : vector<256x16xf32>
    %57 = tpu.matmul %54, %56, %cst_57 {dimension_numbers = #tpu.dot_dimension_numbers<[1], [0], [0], [1], [0, 0, 1, 1], [], []>} : vector<256x32xbf16>, vector<32x16xbf16>, vector<256x16xf32> -> vector<256x16xf32>
    %58 = arith.addf %51, %57 : vector<256x16xf32>
    %c2_58 = arith.constant 2 : index
    %c0_59 = arith.constant 0 : index
    %c0_60 = arith.constant 0 : index
    %59 = vector.load %arg6[%c2_58, %c0_59, %c0_60] : memref<18x18x32xf32, #tpu.memory_space<vmem>>, vector<16x16x32xf32>
    %60 = vector.shape_cast %59 : vector<16x16x32xf32> to vector<256x32xf32>
    %61 = arith.truncf %60 : vector<256x32xf32> to vector<256x32xbf16>
    %c6 = arith.constant 6 : index
    %c0_61 = arith.constant 0 : index
    %c0_62 = arith.constant 0 : index
    %62 = vector.load %arg4[%c6, %c0_61, %c0_62] : memref<9x32x16xbf16, #tpu.memory_space<vmem>>, vector<1x32x16xbf16>
    %63 = vector.shape_cast %62 : vector<1x32x16xbf16> to vector<32x16xbf16>
    %cst_63 = arith.constant dense<0.000000e+00> : vector<256x16xf32>
    %64 = tpu.matmul %61, %63, %cst_63 {dimension_numbers = #tpu.dot_dimension_numbers<[1], [0], [0], [1], [0, 0, 1, 1], [], []>} : vector<256x32xbf16>, vector<32x16xbf16>, vector<256x16xf32> -> vector<256x16xf32>
    %65 = arith.addf %58, %64 : vector<256x16xf32>
    %c2_64 = arith.constant 2 : index
    %c1_65 = arith.constant 1 : index
    %c0_66 = arith.constant 0 : index
    %66 = vector.load %arg6[%c2_64, %c1_65, %c0_66] : memref<18x18x32xf32, #tpu.memory_space<vmem>>, vector<16x16x32xf32>
    %67 = vector.shape_cast %66 : vector<16x16x32xf32> to vector<256x32xf32>
    %68 = arith.truncf %67 : vector<256x32xf32> to vector<256x32xbf16>
    %c7 = arith.constant 7 : index
    %c0_67 = arith.constant 0 : index
    %c0_68 = arith.constant 0 : index
    %69 = vector.load %arg4[%c7, %c0_67, %c0_68] : memref<9x32x16xbf16, #tpu.memory_space<vmem>>, vector<1x32x16xbf16>
    %70 = vector.shape_cast %69 : vector<1x32x16xbf16> to vector<32x16xbf16>
    %cst_69 = arith.constant dense<0.000000e+00> : vector<256x16xf32>
    %71 = tpu.matmul %68, %70, %cst_69 {dimension_numbers = #tpu.dot_dimension_numbers<[1], [0], [0], [1], [0, 0, 1, 1], [], []>} : vector<256x32xbf16>, vector<32x16xbf16>, vector<256x16xf32> -> vector<256x16xf32>
    %72 = arith.addf %65, %71 : vector<256x16xf32>
    %c2_70 = arith.constant 2 : index
    %c2_71 = arith.constant 2 : index
    %c0_72 = arith.constant 0 : index
    %73 = vector.load %arg6[%c2_70, %c2_71, %c0_72] : memref<18x18x32xf32, #tpu.memory_space<vmem>>, vector<16x16x32xf32>
    %74 = vector.shape_cast %73 : vector<16x16x32xf32> to vector<256x32xf32>
    %75 = arith.truncf %74 : vector<256x32xf32> to vector<256x32xbf16>
    %c8 = arith.constant 8 : index
    %c0_73 = arith.constant 0 : index
    %c0_74 = arith.constant 0 : index
    %76 = vector.load %arg4[%c8, %c0_73, %c0_74] : memref<9x32x16xbf16, #tpu.memory_space<vmem>>, vector<1x32x16xbf16>
    %77 = vector.shape_cast %76 : vector<1x32x16xbf16> to vector<32x16xbf16>
    %cst_75 = arith.constant dense<0.000000e+00> : vector<256x16xf32>
    %78 = tpu.matmul %75, %77, %cst_75 {dimension_numbers = #tpu.dot_dimension_numbers<[1], [0], [0], [1], [0, 0, 1, 1], [], []>} : vector<256x32xbf16>, vector<32x16xbf16>, vector<256x16xf32> -> vector<256x16xf32>
    %79 = arith.addf %72, %78 : vector<256x16xf32>
    %80 = vector.shape_cast %79 : vector<256x16xf32> to vector<16x16x16xf32>
    %c0_76 = arith.constant 0 : index
    %c0_77 = arith.constant 0 : index
    %c0_78 = arith.constant 0 : index
    %c32 = arith.constant 32 : index
    %81 = vector.load %arg5[%c0_76, %c0_77, %c0_78, %c32] : memref<1x16x16x48xf32, #tpu.memory_space<vmem>>, vector<1x16x16x16xf32>
    %82 = vector.shape_cast %81 : vector<1x16x16x16xf32> to vector<16x16x16xf32>
    %83 = vector.shape_cast %80 : vector<16x16x16xf32> to vector<1x16x16x16xf32>
    tpu.vector_store %arg5[%c0_76, %c0_77, %c0_78, %c32], %83 {strides = array<i32>} : memref<1x16x16x48xf32, #tpu.memory_space<vmem>>, vector<1x16x16x16xf32>,
    return
  }
  func.func @transform_0(%arg0: i32) -> (i32, i32, i32, i32) {
    %c0_i32 = arith.constant 0 : i32
    %c0_i32_0 = arith.constant 0 : i32
    %c0_i32_1 = arith.constant 0 : i32
    %c0_i32_2 = arith.constant 0 : i32
    return %arg0, %c0_i32, %c0_i32_0, %c0_i32_1 : i32, i32, i32, i32
  }
  func.func @transform_1(%arg0: i32) -> (i32, i32, i32) {
    %c0_i32 = arith.constant 0 : i32
    %c0_i32_0 = arith.constant 0 : i32
    %c0_i32_1 = arith.constant 0 : i32
    %c0_i32_2 = arith.constant 0 : i32
    return %c0_i32, %c0_i32_0, %c0_i32_1 : i32, i32, i32
  }
  func.func @transform_2(%arg0: i32) -> (i32, i32, i32) {
    %c0_i32 = arith.constant 0 : i32
    %c0_i32_0 = arith.constant 0 : i32
    %c0_i32_1 = arith.constant 0 : i32
    %c0_i32_2 = arith.constant 0 : i32
    return %c0_i32, %c0_i32_0, %c0_i32_1 : i32, i32, i32
  }
  func.func @transform_3(%arg0: i32) -> (i32, i32, i32) {
    %c0_i32 = arith.constant 0 : i32
    %c0_i32_0 = arith.constant 0 : i32
    %c0_i32_1 = arith.constant 0 : i32
    %c0_i32_2 = arith.constant 0 : i32
    return %c0_i32, %c0_i32_0, %c0_i32_1 : i32, i32, i32
  }
  func.func @transform_4(%arg0: i32) -> (i32, i32, i32, i32) {
    %c0_i32 = arith.constant 0 : i32
    %c0_i32_0 = arith.constant 0 : i32
    %c0_i32_1 = arith.constant 0 : i32
    %c0_i32_2 = arith.constant 0 : i32
    return %arg0, %c0_i32, %c0_i32_0, %c0_i32_1 : i32, i32, i32, i32
  }
}

</mosaic_0001>

<llo_original>
// kernel: _lambda_.1
$region0: #{_lambda_.1}
  #allocation0 [shape = 'u32[]', space=smem, size = 0x4, offset = 0x4, fixed_abs, tag = 'smem constant byte address 0x4 - core index']
  #allocation1 [shape = 'u32[144,128]{1,0:T(1,128)}', space=vmem, size = 0x12000, scoped, tag = 'internal scratch']
  #allocation2 [shape = 'f32[18,18,32]{2,1,0:T(8,128)}', space=vmem, size = 0x36000, scoped, tag = 'scratch operand']
  %s0 = inlined_call_operand.hbm [shape: f32[2,16,16,32], index: 0, kind: input, shape index: {}]
  %s1 = inlined_call_operand.vmem [shape: f32[1,1,32], index: 1, kind: input, shape index: {}]
  %s2 = inlined_call_operand.vmem [shape: f32[1,1,32], index: 2, kind: input, shape index: {}]
  %s3 = inlined_call_operand.vmem [shape: bf16[9,32,16], index: 3, kind: input, shape index: {}]
  %s4 = inlined_call_operand.hbm [shape: f32[2,16,16,48], index: 4, kind: output, shape index: {}]
  %s5 = sld [smem:[#allocation0]]
  $region53: #{_lambda_.1} parent=0
    _
  %s7 = ssub.s32 1, %s5
  %s8 = scalar_select 0, %s7, %s5
  $region1: #{_lambda_.1} parent=0
    #allocation3 [shape = 'u8[262144]{0}', space=vmem, size = 0x40000, scoped, tag = 'input window, operand 0']
    #allocation4 [shape = 's32[2]{0}', space=sflag, size = 0x8, scoped, tag = 'scoped memory for _lambda_.1']
    #allocation5 [shape = 's32[2]{0}', space=sflag, size = 0x8, scoped, tag = 'scoped memory for _lambda_.1']
    #allocation6 [shape = 'u8[262144]{0}', space=vmem, size = 0x40000, scoped, tag = 'output window, operand 0']
    %9 = vsyncpa [#allocation4], 0
    %s10 = scalar_lea.sflag [#allocation4], 1
    %11 = vsyncpa %s10, 0
    %12 = vsyncpa [#allocation5], 0
    %s13 = scalar_lea.sflag [#allocation5], 1
    %14 = vsyncpa %s13, 0
    loop: start=0, step=1, limit=4
    $region2: #{_lambda_.1} parent=1 // loop_pre_header
      _
    $region3: #{_lambda_.1} parent=1 // loop_header
      %s16 = sphi 0, %s20
      %p17 = scmp.ge.s32.totalorder %s16, 4
      %s26 = sphi 0, %s28
      %s29 = sphi 0, %s26
      %s30 = sphi 0, %s29
      %s46 = sphi 0, %s30
      %s50 = sphi 0, %s50
      %s52 = sphi 0, %s50
      %s53 = sphi 0, %s52
      %s67 = sphi 0, %s53
      %s71 = sphi 0, %s71
      %s73 = sphi 0, %s71
      %s74 = sphi 0, %s73
      %s88 = sphi 0, %s74
      %s92 = sphi 0, %s92
      %s94 = sphi 0, %s92
      %s95 = sphi 0, %s94
      %s109 = sphi 0, %s95
      %s115 = sphi 0, %s117
      %s118 = sphi 0, %s115
      %s119 = sphi 0, %s118
      %s135 = sphi 0, %s119
    $region4: #{_lambda_.1} parent=1 // loop_header_branch
      %19 = sbr.rel (%p17) target = $region8
    $region5: #{_lambda_.1} parent=1 // loop_body
      %s21 = ssub.s32 %s16, 1
      %s22 = ssub.s32 %s16, 2
      %s23 = sadd.s32 %s16, 1
      %s24 = ssub.s32 %s16, %s23
      %p25 = scmp.eq.s32.totalorder %s24, 0
      %s27 = sadd.s32 %s26, 1
      %s28 = scalar_select %p25, %s26, %s27
      %p31 = pneg %p25
      %p32 = scmp.eq.s32.totalorder %s16, 1
      %p33 = por %p31, %p32
      %p34 = scmp.ne.s32.totalorder %s26, %s29
      %p35 = scmp.eq.s32.totalorder %s16, 0
      %p36 = por %p34, %p35
      %p37 = scmp.ne.s32.totalorder %s26, %s29
      %p38 = scmp.eq.s32.totalorder %s21, 1
      %p39 = por %p37, %p38
      %p40 = scmp.ne.s32.totalorder %s29, %s30
      %p41 = scmp.eq.s32.totalorder %s21, 0
      %p42 = por %p40, %p41
      %p43 = scmp.ne.s32.totalorder %s29, %s30
      %p44 = scmp.eq.s32.totalorder %s22, 1
      %p45 = por %p43, %p44
      %p47 = scmp.ne.s32.totalorder %s30, %s46
      %p48 = scmp.eq.s32.totalorder %s22, 0
      %p49 = por %p47, %p48
      %s51 = sadd.s32 %s50, 1
      %p54 = scmp.eq.s32.totalorder %s16, 1
      %p55 = scmp.ne.s32.totalorder %s50, %s52
      %p56 = scmp.eq.s32.totalorder %s16, 0
      %p57 = por %p55, %p56
      %p58 = scmp.ne.s32.totalorder %s50, %s52
      %p59 = scmp.eq.s32.totalorder %s21, 1
      %p60 = por %p58, %p59
      %p61 = scmp.ne.s32.totalorder %s52, %s53
      %p62 = scmp.eq.s32.totalorder %s21, 0
      %p63 = por %p61, %p62
      %p64 = scmp.ne.s32.totalorder %s52, %s53
      %p65 = scmp.eq.s32.totalorder %s22, 1
      %p66 = por %p64, %p65
      %p68 = scmp.ne.s32.totalorder %s53, %s67
      %p69 = scmp.eq.s32.totalorder %s22, 0
      %p70 = por %p68, %p69
      %s72 = sadd.s32 %s71, 1
      %p75 = scmp.eq.s32.totalorder %s16, 1
      %p76 = scmp.ne.s32.totalorder %s71, %s73
      %p77 = scmp.eq.s32.totalorder %s16, 0
      %p78 = por %p76, %p77
      %p79 = scmp.ne.s32.totalorder %s71, %s73
      %p80 = scmp.eq.s32.totalorder %s21, 1
      %p81 = por %p79, %p80
      %p82 = scmp.ne.s32.totalorder %s73, %s74
      %p83 = scmp.eq.s32.totalorder %s21, 0
      %p84 = por %p82, %p83
      %p85 = scmp.ne.s32.totalorder %s73, %s74
      %p86 = scmp.eq.s32.totalorder %s22, 1
      %p87 = por %p85, %p86
      %p89 = scmp.ne.s32.totalorder %s74, %s88
      %p90 = scmp.eq.s32.totalorder %s22, 0
      %p91 = por %p89, %p90
      %s93 = sadd.s32 %s92, 1
      %p96 = scmp.eq.s32.totalorder %s16, 1
      %p97 = scmp.ne.s32.totalorder %s92, %s94
      %p98 = scmp.eq.s32.totalorder %s16, 0
      %p99 = por %p97, %p98
      %p100 = scmp.ne.s32.totalorder %s92, %s94
      %p101 = scmp.eq.s32.totalorder %s21, 1
      %p102 = por %p100, %p101
      %p103 = scmp.ne.s32.totalorder %s94, %s95
      %p104 = scmp.eq.s32.totalorder %s21, 0
      %p105 = por %p103, %p104
      %p106 = scmp.ne.s32.totalorder %s94, %s95
      %p107 = scmp.eq.s32.totalorder %s22, 1
      %p108 = por %p106, %p107
      %p110 = scmp.ne.s32.totalorder %s95, %s109
      %p111 = scmp.eq.s32.totalorder %s22, 0
      %p112 = por %p110, %p111
      %s113 = ssub.s32 %s16, %s23
      %p114 = scmp.eq.s32.totalorder %s113, 0
      %s116 = sadd.s32 %s115, 1
      %s117 = scalar_select %p114, %s115, %s116
      %p120 = pneg %p114
      %p121 = scmp.eq.s32.totalorder %s16, 1
      %p122 = por %p120, %p121
      %p123 = scmp.ne.s32.totalorder %s115, %s118
      %p124 = scmp.eq.s32.totalorder %s16, 0
      %p125 = por %p123, %p124
      %p126 = scmp.ne.s32.totalorder %s115, %s118
      %p127 = scmp.eq.s32.totalorder %s21, 1
      %p128 = por %p126, %p127
      %p129 = scmp.ne.s32.totalorder %s118, %s119
      %p130 = scmp.eq.s32.totalorder %s21, 0
      %p131 = por %p129, %p130
      %p132 = scmp.ne.s32.totalorder %s118, %s119
      %p133 = scmp.eq.s32.totalorder %s22, 1
      %p134 = por %p132, %p133
      %p136 = scmp.ne.s32.totalorder %s119, %s135
      %p137 = scmp.eq.s32.totalorder %s22, 0
      %p138 = por %p136, %p137
      %p139 = scmp.le.s32.totalorder 1, %s16
      %p140 = scmp.lt.s32.totalorder %s16, 3
      %p141 = pnand %p139, %p140
      %p142 = pneg %p141
      // Predicated region
      $region9: #{_lambda_.1} parent=5 // pred_check
        _
      $region10: #{_lambda_.1} parent=5 // pred_check_branch
        %144 = sbr.rel (%p141) target = $region12
      $region11: #{_lambda_.1} parent=5 // pred_region
        %s145 = ssub.s32 %s16, 1
        // Predicated region
        $region13: #{_lambda_.1} parent=11 // pred_check
          %p146 = pneg %p63
        $region14: #{_lambda_.1} parent=11 // pred_check_branch
          %148 = sbr.rel (%p146) target = $region16
        $region15: #{_lambda_.1} parent=11 // pred_region
          _
        $region16: #{_lambda_.1} parent=11 // pred_fallthru
          _
        // Predicated region
        $region17: #{_lambda_.1} parent=11 // pred_check
          %p149 = pneg %p84
        $region18: #{_lambda_.1} parent=11 // pred_check_branch
          %151 = sbr.rel (%p149) target = $region20
        $region19: #{_lambda_.1} parent=11 // pred_region
          _
        $region20: #{_lambda_.1} parent=11 // pred_fallthru
          _
        // Predicated region
        $region21: #{_lambda_.1} parent=11 // pred_check
          %p152 = pneg %p105
        $region22: #{_lambda_.1} parent=11 // pred_check_branch
          %154 = sbr.rel (%p152) target = $region24
        $region23: #{_lambda_.1} parent=11 // pred_region
          _
        $region24: #{_lambda_.1} parent=11 // pred_fallthru
          _
      $region12: #{_lambda_.1} parent=5 // pred_fallthru
        _
      %p155 = scmp.lt.s32.totalorder %s16, 2
      // Predicated region
      $region25: #{_lambda_.1} parent=5 // pred_check
        %p156 = pneg %p155
      $region26: #{_lambda_.1} parent=5 // pred_check_branch
        %158 = sbr.rel (%p156) target = $region28
      $region27: #{_lambda_.1} parent=5 // pred_region
        // Predicated region
        $region29: #{_lambda_.1} parent=27 // pred_check
          %p159 = pneg %p36
        $region30: #{_lambda_.1} parent=27 // pred_check_branch
          %161 = sbr.rel (%p159) target = $region32
        $region31: #{_lambda_.1} parent=27 // pred_region
          %s162 = sand.u32 %s26, 1
          %s163 = scalar_lea.sflag [#allocation4], %s162
          %s164 = sand.u32 %s26, 1
          %s165 = smul.addr %s164, 256
          %s166 = scalar_lea.vmem [#allocation3], %s165
          %s168 = ssub.s32 4096, 4096
          %169 = vsyncadd %s163, %s168
          %s170 = smul.addr %s16, 32
          %s171 = smul.addr %s170, 128
          %s172 = scalar_lea.hbm %s0, %s171
          %s173 = sshll.u32 %s166, 4
          %s174 = int_to_ptr.vmem [resolvable:$true] %s173
          %179 = dma.hbm_to_vmem [thread:$0]  %s172, 4096, %s174, %s163, 128, 128, 8
        $region32: #{_lambda_.1} parent=27 // pred_fallthru
          _
      $region28: #{_lambda_.1} parent=5 // pred_fallthru
        _
      %p180 = scmp.le.s32.totalorder 1, %s16
      %p181 = scmp.lt.s32.totalorder %s16, 3
      %p182 = pnand %p180, %p181
      %p183 = pneg %p182
      // Predicated region
      $region33: #{_lambda_.1} parent=5 // pred_check
        _
      $region34: #{_lambda_.1} parent=5 // pred_check_branch
        %185 = sbr.rel (%p182) target = $region36
      $region35: #{_lambda_.1} parent=5 // pred_region
        %s186 = ssub.s32 %s16, 1
        %s187 = sand.u32 %s29, 1
        %s188 = scalar_lea.sflag [#allocation4], %s187
        %s189 = sand.u32 %s29, 1
        %s190 = smul.addr %s189, 256
        %s191 = scalar_lea.vmem [#allocation3], %s190
        // Predicated region
        $region37: #{_lambda_.1} parent=35 // pred_check
          %p192 = pneg %p42
        $region38: #{_lambda_.1} parent=35 // pred_check_branch
          %194 = sbr.rel (%p192) target = $region40
        $region39: #{_lambda_.1} parent=35 // pred_region
          %195 = dma.done %s188, 4096
        $region40: #{_lambda_.1} parent=35 // pred_fallthru
          _
        %s196 = sand.u32 %s29, 1
        %s197 = scalar_lea.sflag [#allocation4], %s196
        %s198 = sand.u32 %s29, 1
        %s199 = smul.addr %s198, 256
        %s200 = scalar_lea.vmem [#allocation3], %s199
        %p201 = pneg %p42
        %p202 = pneg %p39
        %p203 = pneg %p63
        %p204 = pneg %p60
        %p205 = pneg %p84
        %p206 = pneg %p81
        %p207 = pneg %p105
        %p208 = pneg %p102
        %p209 = pneg %p131
        %p210 = pneg %p128
        %s211 = sand.u32 %s118, 1
        %s212 = scalar_lea.sflag [#allocation5], %s211
        %s213 = sand.u32 %s118, 1
        %s214 = smul.addr %s213, 256
        %s215 = scalar_lea.vmem [#allocation6], %s214
        %v217 = vld [vmem:[%s191] sm:$0xff]
        %v218 = vld [vmem:[%s191 + $0x8] sm:$0xff]
        %v219 = vld [vmem:[%s191 + $0x10] sm:$0xff]
        %v220 = vld [vmem:[%s191 + $0x18] sm:$0xff]
        %v221 = vld [vmem:[%s191 + $0x20] sm:$0xff]
        %v222 = vld [vmem:[%s191 + $0x28] sm:$0xff]
        %v223 = vld [vmem:[%s191 + $0x30] sm:$0xff]
        %v224 = vld [vmem:[%s191 + $0x38] sm:$0xff]
        %v225 = vld [vmem:[%s191 + $0x40] sm:$0xff]
        %v226 = vld [vmem:[%s191 + $0x48] sm:$0xff]
        %v227 = vld [vmem:[%s191 + $0x50] sm:$0xff]
        %v228 = vld [vmem:[%s191 + $0x58] sm:$0xff]
        %v229 = vld [vmem:[%s191 + $0x60] sm:$0xff]
        %v230 = vld [vmem:[%s191 + $0x68] sm:$0xff]
        %v231 = vld [vmem:[%s191 + $0x70] sm:$0xff]
        %v232 = vld [vmem:[%s191 + $0x78] sm:$0xff]
        %v233 = vld [vmem:[%s191 + $0x80] sm:$0xff]
        %v234 = vld [vmem:[%s191 + $0x88] sm:$0xff]
        %v235 = vld [vmem:[%s191 + $0x90] sm:$0xff]
        %v236 = vld [vmem:[%s191 + $0x98] sm:$0xff]
        %v237 = vld [vmem:[%s191 + $0xa0] sm:$0xff]
        %v238 = vld [vmem:[%s191 + $0xa8] sm:$0xff]
        %v239 = vld [vmem:[%s191 + $0xb0] sm:$0xff]
        %v240 = vld [vmem:[%s191 + $0xb8] sm:$0xff]
        %v241 = vld [vmem:[%s191 + $0xc0] sm:$0xff]
        %v242 = vld [vmem:[%s191 + $0xc8] sm:$0xff]
        %v243 = vld [vmem:[%s191 + $0xd0] sm:$0xff]
        %v244 = vld [vmem:[%s191 + $0xd8] sm:$0xff]
        %v245 = vld [vmem:[%s191 + $0xe0] sm:$0xff]
        %v246 = vld [vmem:[%s191 + $0xe8] sm:$0xff]
        %v247 = vld [vmem:[%s191 + $0xf0] sm:$0xff]
        %v248 = vld [vmem:[%s191 + $0xf8] sm:$0xff]
        %vm249 = vcmask 261120
        %250 = vst.msk [vmem:[%s215] sm:$0xff] %vm249, %v217
        %251 = vst.msk [vmem:[%s215 + $0x8] sm:$0xff] %vm249, %v218
        %252 = vst.msk [vmem:[%s215 + $0x10] sm:$0xff] %vm249, %v219
        %253 = vst.msk [vmem:[%s215 + $0x18] sm:$0xff] %vm249, %v220
        %254 = vst.msk [vmem:[%s215 + $0x20] sm:$0xff] %vm249, %v221
        %255 = vst.msk [vmem:[%s215 + $0x28] sm:$0xff] %vm249, %v222
        %256 = vst.msk [vmem:[%s215 + $0x30] sm:$0xff] %vm249, %v223
        %257 = vst.msk [vmem:[%s215 + $0x38] sm:$0xff] %vm249, %v224
        %258 = vst.msk [vmem:[%s215 + $0x40] sm:$0xff] %vm249, %v225
        %259 = vst.msk [vmem:[%s215 + $0x48] sm:$0xff] %vm249, %v226
        %260 = vst.msk [vmem:[%s215 + $0x50] sm:$0xff] %vm249, %v227
        %261 = vst.msk [vmem:[%s215 + $0x58] sm:$0xff] %vm249, %v228
        %262 = vst.msk [vmem:[%s215 + $0x60] sm:$0xff] %vm249, %v229
        %263 = vst.msk [vmem:[%s215 + $0x68] sm:$0xff] %vm249, %v230
        %264 = vst.msk [vmem:[%s215 + $0x70] sm:$0xff] %vm249, %v231
        %265 = vst.msk [vmem:[%s215 + $0x78] sm:$0xff] %vm249, %v232
        %266 = vst.msk [vmem:[%s215 + $0x80] sm:$0xff] %vm249, %v233
        %267 = vst.msk [vmem:[%s215 + $0x88] sm:$0xff] %vm249, %v234
        %268 = vst.msk [vmem:[%s215 + $0x90] sm:$0xff] %vm249, %v235
        %269 = vst.msk [vmem:[%s215 + $0x98] sm:$0xff] %vm249, %v236
        %270 = vst.msk [vmem:[%s215 + $0xa0] sm:$0xff] %vm249, %v237
        %271 = vst.msk [vmem:[%s215 + $0xa8] sm:$0xff] %vm249, %v238
        %272 = vst.msk [vmem:[%s215 + $0xb0] sm:$0xff] %vm249, %v239
        %273 = vst.msk [vmem:[%s215 + $0xb8] sm:$0xff] %vm249, %v240
        %274 = vst.msk [vmem:[%s215 + $0xc0] sm:$0xff] %vm249, %v241
        %275 = vst.msk [vmem:[%s215 + $0xc8] sm:$0xff] %vm249, %v242
        %276 = vst.msk [vmem:[%s215 + $0xd0] sm:$0xff] %vm249, %v243
        %277 = vst.msk [vmem:[%s215 + $0xd8] sm:$0xff] %vm249, %v244
        %278 = vst.msk [vmem:[%s215 + $0xe0] sm:$0xff] %vm249, %v245
        %279 = vst.msk [vmem:[%s215 + $0xe8] sm:$0xff] %vm249, %v246
        %280 = vst.msk [vmem:[%s215 + $0xf0] sm:$0xff] %vm249, %v247
        %281 = vst.msk [vmem:[%s215 + $0xf8] sm:$0xff] %vm249, %v248
        %v282 = vld [vmem:[%s1] sm:$0x1]
        %v284 = vlaneseq
        %v285 = vshrl.u32 %v284, 7
        %v286 = vsub.s32 0, %v285
        %v287 = vrot.slane %v282, %v286
        %v289 = vmul.f32 %v217, %v287
        %v290 = vmul.f32 %v218, %v287
        %v291 = vmul.f32 %v219, %v287
        %v292 = vmul.f32 %v220, %v287
        %v293 = vmul.f32 %v221, %v287
        %v294 = vmul.f32 %v222, %v287
        %v295 = vmul.f32 %v223, %v287
        %v296 = vmul.f32 %v224, %v287
        %v297 = vmul.f32 %v225, %v287
        %v298 = vmul.f32 %v226, %v287
        %v299 = vmul.f32 %v227, %v287
        %v300 = vmul.f32 %v228, %v287
        %v301 = vmul.f32 %v229, %v287
        %v302 = vmul.f32 %v230, %v287
        %v303 = vmul.f32 %v231, %v287
        %v304 = vmul.f32 %v232, %v287
        %v305 = vmul.f32 %v233, %v287
        %v306 = vmul.f32 %v234, %v287
        %v307 = vmul.f32 %v235, %v287
        %v308 = vmul.f32 %v236, %v287
        %v309 = vmul.f32 %v237, %v287
        %v310 = vmul.f32 %v238, %v287
        %v311 = vmul.f32 %v239, %v287
        %v312 = vmul.f32 %v240, %v287
        %v313 = vmul.f32 %v241, %v287
        %v314 = vmul.f32 %v242, %v287
        %v315 = vmul.f32 %v243, %v287
        %v316 = vmul.f32 %v244, %v287
        %v317 = vmul.f32 %v245, %v287
        %v318 = vmul.f32 %v246, %v287
        %v319 = vmul.f32 %v247, %v287
        %v320 = vmul.f32 %v248, %v287
        %v321 = vld [vmem:[%s2] sm:$0x1]
        %v323 = vlaneseq
        %v324 = vshrl.u32 %v323, 7
        %v325 = vsub.s32 0, %v324
        %v326 = vrot.slane %v321, %v325
        %v328 = vadd.f32 %v289, %v326
        %v329 = vadd.f32 %v290, %v326
        %v330 = vadd.f32 %v291, %v326
        %v331 = vadd.f32 %v292, %v326
        %v332 = vadd.f32 %v293, %v326
        %v333 = vadd.f32 %v294, %v326
        %v334 = vadd.f32 %v295, %v326
        %v335 = vadd.f32 %v296, %v326
        %v336 = vadd.f32 %v297, %v326
        %v337 = vadd.f32 %v298, %v326
        %v338 = vadd.f32 %v299, %v326
        %v339 = vadd.f32 %v300, %v326
        %v340 = vadd.f32 %v301, %v326
        %v341 = vadd.f32 %v302, %v326
        %v342 = vadd.f32 %v303, %v326
        %v343 = vadd.f32 %v304, %v326
        %v344 = vadd.f32 %v305, %v326
        %v345 = vadd.f32 %v306, %v326
        %v346 = vadd.f32 %v307, %v326
        %v347 = vadd.f32 %v308, %v326
        %v348 = vadd.f32 %v309, %v326
        %v349 = vadd.f32 %v310, %v326
        %v350 = vadd.f32 %v311, %v326
        %v351 = vadd.f32 %v312, %v326
        %v352 = vadd.f32 %v313, %v326
        %v353 = vadd.f32 %v314, %v326
        %v354 = vadd.f32 %v315, %v326
        %v355 = vadd.f32 %v316, %v326
        %v356 = vadd.f32 %v317, %v326
        %v357 = vadd.f32 %v318, %v326
        %v358 = vadd.f32 %v319, %v326
        %v359 = vadd.f32 %v320, %v326
        %v360 = vmax.f32 %v328, 0.0
        %v361 = vmax.f32 %v329, 0.0
        %v362 = vmax.f32 %v330, 0.0
        %v363 = vmax.f32 %v331, 0.0
        %v364 = vmax.f32 %v332, 0.0
        %v365 = vmax.f32 %v333, 0.0
        %v366 = vmax.f32 %v334, 0.0
        %v367 = vmax.f32 %v335, 0.0
        %v368 = vmax.f32 %v336, 0.0
        %v369 = vmax.f32 %v337, 0.0
        %v370 = vmax.f32 %v338, 0.0
        %v371 = vmax.f32 %v339, 0.0
        %v372 = vmax.f32 %v340, 0.0
        %v373 = vmax.f32 %v341, 0.0
        %v374 = vmax.f32 %v342, 0.0
        %v375 = vmax.f32 %v343, 0.0
        %v376 = vmax.f32 %v344, 0.0
        %v377 = vmax.f32 %v345, 0.0
        %v378 = vmax.f32 %v346, 0.0
        %v379 = vmax.f32 %v347, 0.0
        %v380 = vmax.f32 %v348, 0.0
        %v381 = vmax.f32 %v349, 0.0
        %v382 = vmax.f32 %v350, 0.0
        %v383 = vmax.f32 %v351, 0.0
        %v384 = vmax.f32 %v352, 0.0
        %v385 = vmax.f32 %v353, 0.0
        %v386 = vmax.f32 %v354, 0.0
        %v387 = vmax.f32 %v355, 0.0
        %v388 = vmax.f32 %v356, 0.0
        %v389 = vmax.f32 %v357, 0.0
        %v390 = vmax.f32 %v358, 0.0
        %v391 = vmax.f32 %v359, 0.0
        %392 = vst.msk [vmem:[#allocation2] sm:$0xff] %vm249, 0.0
        %393 = vst.msk [vmem:[#allocation2 + $0x8] sm:$0xff] %vm249, 0.0
        %vm394 = vcmask 254976
        %395 = vst.msk [vmem:[#allocation2 + $0x10] sm:$0x3] %vm394, 0.0
        %396 = vst.msk [vmem:[#allocation2 + $0x18] sm:$0xff] %vm249, 0.0
        %397 = vst.msk [vmem:[#allocation2 + $0x20] sm:$0xff] %vm249, 0.0
        %398 = vst.msk [vmem:[#allocation2 + $0x28] sm:$0x3] %vm394, 0.0
        %399 = vst.msk [vmem:[#allocation2 + $0x30] sm:$0xff] %vm249, 0.0
        %400 = vst.msk [vmem:[#allocation2 + $0x38] sm:$0xff] %vm249, 0.0
        %401 = vst.msk [vmem:[#allocation2 + $0x40] sm:$0x3] %vm394, 0.0
        %402 = vst.msk [vmem:[#allocation2 + $0x48] sm:$0xff] %vm249, 0.0
        %403 = vst.msk [vmem:[#allocation2 + $0x50] sm:$0xff] %vm249, 0.0
        %404 = vst.msk [vmem:[#allocation2 + $0x58] sm:$0x3] %vm394, 0.0
        %405 = vst.msk [vmem:[#allocation2 + $0x60] sm:$0xff] %vm249, 0.0
        %406 = vst.msk [vmem:[#allocation2 + $0x68] sm:$0xff] %vm249, 0.0
        %407 = vst.msk [vmem:[#allocation2 + $0x70] sm:$0x3] %vm394, 0.0
        %408 = vst.msk [vmem:[#allocation2 + $0x78] sm:$0xff] %vm249, 0.0
        %409 = vst.msk [vmem:[#allocation2 + $0x80] sm:$0xff] %vm249, 0.0
        %410 = vst.msk [vmem:[#allocation2 + $0x88] sm:$0x3] %vm394, 0.0
        %411 = vst.msk [vmem:[#allocation2 + $0x90] sm:$0xff] %vm249, 0.0
        %412 = vst.msk [vmem:[#allocation2 + $0x98] sm:$0xff] %vm249, 0.0
        %413 = vst.msk [vmem:[#allocation2 + $0xa0] sm:$0x3] %vm394, 0.0
        %414 = vst.msk [vmem:[#allocation2 + $0xa8] sm:$0xff] %vm249, 0.0
        %415 = vst.msk [vmem:[#allocation2 + $0xb0] sm:$0xff] %vm249, 0.0
        %416 = vst.msk [vmem:[#allocation2 + $0xb8] sm:$0x3] %vm394, 0.0
        %417 = vst.msk [vmem:[#allocation2 + $0xc0] sm:$0xff] %vm249, 0.0
        %418 = vst.msk [vmem:[#allocation2 + $0xc8] sm:$0xff] %vm249, 0.0
        %419 = vst.msk [vmem:[#allocation2 + $0xd0] sm:$0x3] %vm394, 0.0
        %420 = vst.msk [vmem:[#allocation2 + $0xd8] sm:$0xff] %vm249, 0.0
        %421 = vst.msk [vmem:[#allocation2 + $0xe0] sm:$0xff] %vm249, 0.0
        %422 = vst.msk [vmem:[#allocation2 + $0xe8] sm:$0x3] %vm394, 0.0
        %423 = vst.msk [vmem:[#allocation2 + $0xf0] sm:$0xff] %vm249, 0.0
        %424 = vst.msk [vmem:[#allocation2 + $0xf8] sm:$0xff] %vm249, 0.0
        %425 = vst.msk [vmem:[#allocation2 + $0x100] sm:$0x3] %vm394, 0.0
        %426 = vst.msk [vmem:[#allocation2 + $0x108] sm:$0xff] %vm249, 0.0
        %427 = vst.msk [vmem:[#allocation2 + $0x110] sm:$0xff] %vm249, 0.0
        %428 = vst.msk [vmem:[#allocation2 + $0x118] sm:$0x3] %vm394, 0.0
        %429 = vst.msk [vmem:[#allocation2 + $0x120] sm:$0xff] %vm249, 0.0
        %430 = vst.msk [vmem:[#allocation2 + $0x128] sm:$0xff] %vm249, 0.0
        %431 = vst.msk [vmem:[#allocation2 + $0x130] sm:$0x3] %vm394, 0.0
        %432 = vst.msk [vmem:[#allocation2 + $0x138] sm:$0xff] %vm249, 0.0
        %433 = vst.msk [vmem:[#allocation2 + $0x140] sm:$0xff] %vm249, 0.0
        %434 = vst.msk [vmem:[#allocation2 + $0x148] sm:$0x3] %vm394, 0.0
        %435 = vst.msk [vmem:[#allocation2 + $0x150] sm:$0xff] %vm249, 0.0
        %436 = vst.msk [vmem:[#allocation2 + $0x158] sm:$0xff] %vm249, 0.0
        %437 = vst.msk [vmem:[#allocation2 + $0x160] sm:$0x3] %vm394, 0.0
        %438 = vst.msk [vmem:[#allocation2 + $0x168] sm:$0xff] %vm249, 0.0
        %439 = vst.msk [vmem:[#allocation2 + $0x170] sm:$0xff] %vm249, 0.0
        %440 = vst.msk [vmem:[#allocation2 + $0x178] sm:$0x3] %vm394, 0.0
        %441 = vst.msk [vmem:[#allocation2 + $0x180] sm:$0xff] %vm249, 0.0
        %442 = vst.msk [vmem:[#allocation2 + $0x188] sm:$0xff] %vm249, 0.0
        %443 = vst.msk [vmem:[#allocation2 + $0x190] sm:$0x3] %vm394, 0.0
        %444 = vst.msk [vmem:[#allocation2 + $0x198] sm:$0xff] %vm249, 0.0
        %445 = vst.msk [vmem:[#allocation2 + $0x1a0] sm:$0xff] %vm249, 0.0
        %446 = vst.msk [vmem:[#allocation2 + $0x1a8] sm:$0x3] %vm394, 0.0
        %s447 = scalar_lea.vmem [#allocation2], 24
        %448 = vst.msk [vmem:[%s447 + $0x1] sm:$0xff] %vm249, %v360
        %449 = vst.msk [vmem:[%s447 + $0x9] sm:$0xff] %vm249, %v361
        %450 = vst.msk [vmem:[%s447 + $0x19] sm:$0xff] %vm249, %v362
        %451 = vst.msk [vmem:[%s447 + $0x21] sm:$0xff] %vm249, %v363
        %452 = vst.msk [vmem:[%s447 + $0x31] sm:$0xff] %vm249, %v364
        %453 = vst.msk [vmem:[%s447 + $0x39] sm:$0xff] %vm249, %v365
        %454 = vst.msk [vmem:[%s447 + $0x49] sm:$0xff] %vm249, %v366
        %455 = vst.msk [vmem:[%s447 + $0x51] sm:$0xff] %vm249, %v367
        %456 = vst.msk [vmem:[%s447 + $0x61] sm:$0xff] %vm249, %v368
        %457 = vst.msk [vmem:[%s447 + $0x69] sm:$0xff] %vm249, %v369
        %458 = vst.msk [vmem:[%s447 + $0x79] sm:$0xff] %vm249, %v370
        %459 = vst.msk [vmem:[%s447 + $0x81] sm:$0xff] %vm249, %v371
        %460 = vst.msk [vmem:[%s447 + $0x91] sm:$0xff] %vm249, %v372
        %461 = vst.msk [vmem:[%s447 + $0x99] sm:$0xff] %vm249, %v373
        %462 = vst.msk [vmem:[%s447 + $0xa9] sm:$0xff] %vm249, %v374
        %463 = vst.msk [vmem:[%s447 + $0xb1] sm:$0xff] %vm249, %v375
        %464 = vst.msk [vmem:[%s447 + $0xc1] sm:$0xff] %vm249, %v376
        %465 = vst.msk [vmem:[%s447 + $0xc9] sm:$0xff] %vm249, %v377
        %466 = vst.msk [vmem:[%s447 + $0xd9] sm:$0xff] %vm249, %v378
        %467 = vst.msk [vmem:[%s447 + $0xe1] sm:$0xff] %vm249, %v379
        %468 = vst.msk [vmem:[%s447 + $0xf1] sm:$0xff] %vm249, %v380
        %469 = vst.msk [vmem:[%s447 + $0xf9] sm:$0xff] %vm249, %v381
        %470 = vst.msk [vmem:[%s447 + $0x109] sm:$0xff] %vm249, %v382
        %471 = vst.msk [vmem:[%s447 + $0x111] sm:$0xff] %vm249, %v383
        %472 = vst.msk [vmem:[%s447 + $0x121] sm:$0xff] %vm249, %v384
        %473 = vst.msk [vmem:[%s447 + $0x129] sm:$0xff] %vm249, %v385
        %474 = vst.msk [vmem:[%s447 + $0x139] sm:$0xff] %vm249, %v386
        %475 = vst.msk [vmem:[%s447 + $0x141] sm:$0xff] %vm249, %v387
        %476 = vst.msk [vmem:[%s447 + $0x151] sm:$0xff] %vm249, %v388
        %477 = vst.msk [vmem:[%s447 + $0x159] sm:$0xff] %vm249, %v389
        %478 = vst.msk [vmem:[%s447 + $0x169] sm:$0xff] %vm249, %v390
        %479 = vst.msk [vmem:[%s447 + $0x171] sm:$0xff] %vm249, %v391
        %v480 = vld [vmem:[#allocation2] sm:$0xff]
        %v481 = vld [vmem:[#allocation2 + $0x8] sm:$0xff]
        %v482 = vld [vmem:[#allocation2 + $0x18] sm:$0xff]
        %v483 = vld [vmem:[#allocation2 + $0x20] sm:$0xff]
        %v484 = vld [vmem:[#allocation2 + $0x30] sm:$0xff]
        %v485 = vld [vmem:[#allocation2 + $0x38] sm:$0xff]
        %v486 = vld [vmem:[#allocation2 + $0x48] sm:$0xff]
        %v487 = vld [vmem:[#allocation2 + $0x50] sm:$0xff]
        %v488 = vld [vmem:[#allocation2 + $0x60] sm:$0xff]
        %v489 = vld [vmem:[#allocation2 + $0x68] sm:$0xff]
        %v490 = vld [vmem:[#allocation2 + $0x78] sm:$0xff]
        %v491 = vld [vmem:[#allocation2 + $0x80] sm:$0xff]
        %v492 = vld [vmem:[#allocation2 + $0x90] sm:$0xff]
        %v493 = vld [vmem:[#allocation2 + $0x98] sm:$0xff]
        %v494 = vld [vmem:[#allocation2 + $0xa8] sm:$0xff]
        %v495 = vld [vmem:[#allocation2 + $0xb0] sm:$0xff]
        %v496 = vld [vmem:[#allocation2 + $0xc0] sm:$0xff]
        %v497 = vld [vmem:[#allocation2 + $0xc8] sm:$0xff]
        %v498 = vld [vmem:[#allocation2 + $0xd8] sm:$0xff]
        %v499 = vld [vmem:[#allocation2 + $0xe0] sm:$0xff]
        %v500 = vld [vmem:[#allocation2 + $0xf0] sm:$0xff]
        %v501 = vld [vmem:[#allocation2 + $0xf8] sm:$0xff]
        %v502 = vld [vmem:[#allocation2 + $0x108] sm:$0xff]
        %v503 = vld [vmem:[#allocation2 + $0x110] sm:$0xff]
        %v504 = vld [vmem:[#allocation2 + $0x120] sm:$0xff]
        %v505 = vld [vmem:[#allocation2 + $0x128] sm:$0xff]
        %v506 = vld [vmem:[#allocation2 + $0x138] sm:$0xff]
        %v507 = vld [vmem:[#allocation2 + $0x140] sm:$0xff]
        %v508 = vld [vmem:[#allocation2 + $0x150] sm:$0xff]
        %v509 = vld [vmem:[#allocation2 + $0x158] sm:$0xff]
        %v510 = vld [vmem:[#allocation2 + $0x168] sm:$0xff]
        %v511 = vld [vmem:[#allocation2 + $0x170] sm:$0xff]
        %v512 = vpack.c.bf16 %v481, %v480
        %v513 = vpack.c.bf16 %v483, %v482
        %v514 = vpack.c.bf16 %v485, %v484
        %v515 = vpack.c.bf16 %v487, %v486
        %v516 = vpack.c.bf16 %v489, %v488
        %v517 = vpack.c.bf16 %v491, %v490
        %v518 = vpack.c.bf16 %v493, %v492
        %v519 = vpack.c.bf16 %v495, %v494
        %v520 = vpack.c.bf16 %v497, %v496
        %v521 = vpack.c.bf16 %v499, %v498
        %v522 = vpack.c.bf16 %v501, %v500
        %v523 = vpack.c.bf16 %v503, %v502
        %v524 = vpack.c.bf16 %v505, %v504
        %v525 = vpack.c.bf16 %v507, %v506
        %v526 = vpack.c.bf16 %v509, %v508
        %v527 = vpack.c.bf16 %v511, %v510
        %v528 = vld [vmem:[%s3] sm:$0xf]
        %v529 = vld [vmem:[%s3 + $0x4] sm:$0xf]
        %v530 = vld [vmem:[%s3 + $0x8] sm:$0xf]
        %v531 = vld [vmem:[%s3 + $0xc] sm:$0xf]
        %v532 = vld [vmem:[#allocation2 + $0x1] sm:$0xff]
        %v533 = vld [vmem:[#allocation2 + $0x9] sm:$0xff]
        %v534 = vld [vmem:[#allocation2 + $0x19] sm:$0xff]
        %v535 = vld [vmem:[#allocation2 + $0x21] sm:$0xff]
        %v536 = vld [vmem:[#allocation2 + $0x31] sm:$0xff]
        %v537 = vld [vmem:[#allocation2 + $0x39] sm:$0xff]
        %v538 = vld [vmem:[#allocation2 + $0x49] sm:$0xff]
        %v539 = vld [vmem:[#allocation2 + $0x51] sm:$0xff]
        %v540 = vld [vmem:[#allocation2 + $0x61] sm:$0xff]
        %v541 = vld [vmem:[#allocation2 + $0x69] sm:$0xff]
        %v542 = vld [vmem:[#allocation2 + $0x79] sm:$0xff]
        %v543 = vld [vmem:[#allocation2 + $0x81] sm:$0xff]
        %v544 = vld [vmem:[#allocation2 + $0x91] sm:$0xff]
        %v545 = vld [vmem:[#allocation2 + $0x99] sm:$0xff]
        %v546 = vld [vmem:[#allocation2 + $0xa9] sm:$0xff]
        %v547 = vld [vmem:[#allocation2 + $0xb1] sm:$0xff]
        %v548 = vld [vmem:[#allocation2 + $0xc1] sm:$0xff]
        %v549 = vld [vmem:[#allocation2 + $0xc9] sm:$0xff]
        %v550 = vld [vmem:[#allocation2 + $0xd9] sm:$0xff]
        %v551 = vld [vmem:[#allocation2 + $0xe1] sm:$0xff]
        %v552 = vld [vmem:[#allocation2 + $0xf1] sm:$0xff]
        %v553 = vld [vmem:[#allocation2 + $0xf9] sm:$0xff]
        %v554 = vld [vmem:[#allocation2 + $0x109] sm:$0xff]
        %v555 = vld [vmem:[#allocation2 + $0x111] sm:$0xff]
        %v556 = vld [vmem:[#allocation2 + $0x121] sm:$0xff]
        %v557 = vld [vmem:[#allocation2 + $0x129] sm:$0xff]
        %v558 = vld [vmem:[#allocation2 + $0x139] sm:$0xff]
        %v559 = vld [vmem:[#allocation2 + $0x141] sm:$0xff]
        %v560 = vld [vmem:[#allocation2 + $0x151] sm:$0xff]
        %v561 = vld [vmem:[#allocation2 + $0x159] sm:$0xff]
        %v562 = vld [vmem:[#allocation2 + $0x169] sm:$0xff]
        %v563 = vld [vmem:[#allocation2 + $0x171] sm:$0xff]
        %v564 = vpack.c.bf16 %v533, %v532
        %v565 = vpack.c.bf16 %v535, %v534
        %v566 = vpack.c.bf16 %v537, %v536
        %v567 = vpack.c.bf16 %v539, %v538
        %v568 = vpack.c.bf16 %v541, %v540
        %v569 = vpack.c.bf16 %v543, %v542
        %v570 = vpack.c.bf16 %v545, %v544
        %v571 = vpack.c.bf16 %v547, %v546
        %v572 = vpack.c.bf16 %v549, %v548
        %v573 = vpack.c.bf16 %v551, %v550
        %v574 = vpack.c.bf16 %v553, %v552
        %v575 = vpack.c.bf16 %v555, %v554
        %v576 = vpack.c.bf16 %v557, %v556
        %v577 = vpack.c.bf16 %v559, %v558
        %v578 = vpack.c.bf16 %v561, %v560
        %v579 = vpack.c.bf16 %v563, %v562
        %s580 = scalar_lea.vmem %s3, 16
        %v581 = vld [vmem:[%s580] sm:$0xf]
        %v582 = vld [vmem:[%s580 + $0x4] sm:$0xf]
        %v583 = vld [vmem:[%s580 + $0x8] sm:$0xf]
        %v584 = vld [vmem:[%s580 + $0xc] sm:$0xf]
        %v589 = vunpack.c.l.b16 %v581
        %v590 = vunpack.c.l.b16 %v582
        %v591 = vunpack.c.l.b16 %v583
        %v592 = vunpack.c.l.b16 %v584
        %v593 = vpack.c.b16 %v590, %v589
        %v594 = vpack.c.b16 %v592, %v591
        %v598 = vsel %vm249, %v564, 0
        %v601 = vsel %vm249, %v565, 0
        %v604 = vsel %vm249, %v566, 0
        %v607 = vsel %vm249, %v567, 0
        %v610 = vsel %vm249, %v568, 0
        %v613 = vsel %vm249, %v569, 0
        %v616 = vsel %vm249, %v570, 0
        %v619 = vsel %vm249, %v571, 0
        %v622 = vsel %vm249, %v572, 0
        %v625 = vsel %vm249, %v573, 0
        %v628 = vsel %vm249, %v574, 0
        %v631 = vsel %vm249, %v575, 0
        %v634 = vsel %vm249, %v576, 0
        %v637 = vsel %vm249, %v577, 0
        %v640 = vsel %vm249, %v578, 0
        %v643 = vsel %vm249, %v579, 0
        %645 = vmatprep.subr.bf16.mxu0 0
        %646 = vmatpush1.bf16.msra.mxu0 %v593
        %647 = vmatprep.subr.bf16.mxu0 0
        %648 = vmatpush1.bf16.msra.mxu0 %v594
        %649 = vmatprep.subr.bf16.mxu0 0
        %650 = vmatpush1.bf16.msra.mxu0 0
        %651 = vmatprep.subr.bf16.mxu0 0
        %652 = vmatpush1.bf16.msra.mxu0 0
        %653 = vmatprep.subr.bf16.mxu0 0
        %654 = vmatpush1.bf16.msra.mxu0 0
        %655 = vmatprep.subr.bf16.mxu0 0
        %656 = vmatpush1.bf16.msra.mxu0 0
        %657 = vmatprep.subr.bf16.mxu0 0
        %658 = vmatpush1.bf16.msra.mxu0 0
        %659 = vmatprep.subr.bf16.mxu0 0
        %660 = vmatpush1.bf16.msra.mxu0 0
        %661 = vmatprep.subr.bf16.mxu0 0
        %662 = vmatpush1.bf16.msra.mxu0 0
        %663 = vmatprep.subr.bf16.mxu0 0
        %664 = vmatpush1.bf16.msra.mxu0 0
        %665 = vmatprep.subr.bf16.mxu0 0
        %666 = vmatpush1.bf16.msra.mxu0 0
        %667 = vmatprep.subr.bf16.mxu0 0
        %668 = vmatpush1.bf16.msra.mxu0 0
        %669 = vmatprep.subr.bf16.mxu0 0
        %670 = vmatpush1.bf16.msra.mxu0 0
        %671 = vmatprep.subr.bf16.mxu0 0
        %672 = vmatpush1.bf16.msra.mxu0 0
        %673 = vmatprep.subr.bf16.mxu0 0
        %674 = vmatpush1.bf16.msra.mxu0 0
        %675 = vmatprep.subr.bf16.mxu0 0
        %676 = vmatpush1.bf16.msra.mxu0 0
        %677 = vmatprep.mubr.bf16.mxu0 0
        %678 = vmatmul.mubr.bf16.gmra.mrb[0].mxu0 %v598
        %v679 = vpop.f32.mrb[0].mxu0
        %v680 = vadd.f32 0.0, %v679
        %v681 = vpop.f32.mrb[0].mxu0
        %v682 = vpop.f32.mrb[0].mxu0
        %v683 = vadd.f32 0.0, %v682
        %v684 = vpop.f32.mrb[0].mxu0
        %685 = vmatprep.mubr.bf16.mxu0 0
        %686 = vmatmul.mubr.bf16.gmra.mrb[0].mxu0 %v601
        %v687 = vpop.f32.mrb[0].mxu0
        %v688 = vadd.f32 0.0, %v687
        %v689 = vpop.f32.mrb[0].mxu0
        %v690 = vpop.f32.mrb[0].mxu0
        %v691 = vadd.f32 0.0, %v690
        %v692 = vpop.f32.mrb[0].mxu0
        %693 = vmatprep.mubr.bf16.mxu0 0
        %694 = vmatmul.mubr.bf16.gmra.mrb[0].mxu0 %v604
        %v695 = vpop.f32.mrb[0].mxu0
        %v696 = vadd.f32 0.0, %v695
        %v697 = vpop.f32.mrb[0].mxu0
        %v698 = vpop.f32.mrb[0].mxu0
        %v699 = vadd.f32 0.0, %v698
        %v700 = vpop.f32.mrb[0].mxu0
        %701 = vmatprep.mubr.bf16.mxu0 0
        %702 = vmatmul.mubr.bf16.gmra.mrb[0].mxu0 %v607
        %v703 = vpop.f32.mrb[0].mxu0
        %v704 = vadd.f32 0.0, %v703
        %v705 = vpop.f32.mrb[0].mxu0
        %v706 = vpop.f32.mrb[0].mxu0
        %v707 = vadd.f32 0.0, %v706
        %v708 = vpop.f32.mrb[0].mxu0
        %709 = vmatprep.mubr.bf16.mxu0 0
        %710 = vmatmul.mubr.bf16.gmra.mrb[0].mxu0 %v610
        %v711 = vpop.f32.mrb[0].mxu0
        %v712 = vadd.f32 0.0, %v711
        %v713 = vpop.f32.mrb[0].mxu0
        %v714 = vpop.f32.mrb[0].mxu0
        %v715 = vadd.f32 0.0, %v714
        %v716 = vpop.f32.mrb[0].mxu0
        %717 = vmatprep.mubr.bf16.mxu0 0
        %718 = vmatmul.mubr.bf16.gmra.mrb[0].mxu0 %v613
        %v719 = vpop.f32.mrb[0].mxu0
        %v720 = vadd.f32 0.0, %v719
        %v721 = vpop.f32.mrb[0].mxu0
        %v722 = vpop.f32.mrb[0].mxu0
        %v723 = vadd.f32 0.0, %v722
        %v724 = vpop.f32.mrb[0].mxu0
        %725 = vmatprep.mubr.bf16.mxu0 0
        %726 = vmatmul.mubr.bf16.gmra.mrb[0].mxu0 %v616
        %v727 = vpop.f32.mrb[0].mxu0
        %v728 = vadd.f32 0.0, %v727
        %v729 = vpop.f32.mrb[0].mxu0
        %v730 = vpop.f32.mrb[0].mxu0
        %v731 = vadd.f32 0.0, %v730
        %v732 = vpop.f32.mrb[0].mxu0
        %733 = vmatprep.mubr.bf16.mxu0 0
        %734 = vmatmul.mubr.bf16.gmra.mrb[0].mxu0 %v619
        %v735 = vpop.f32.mrb[0].mxu0
        %v736 = vadd.f32 0.0, %v735
        %v737 = vpop.f32.mrb[0].mxu0
        %v738 = vpop.f32.mrb[0].mxu0
        %v739 = vadd.f32 0.0, %v738
        %v740 = vpop.f32.mrb[0].mxu0
        %741 = vmatprep.mubr.bf16.mxu0 0
        %742 = vmatmul.mubr.bf16.gmra.mrb[0].mxu0 %v622
        %v743 = vpop.f32.mrb[0].mxu0
        %v744 = vadd.f32 0.0, %v743
        %v745 = vpop.f32.mrb[0].mxu0
        %v746 = vpop.f32.mrb[0].mxu0
        %v747 = vadd.f32 0.0, %v746
        %v748 = vpop.f32.mrb[0].mxu0
        %749 = vmatprep.mubr.bf16.mxu0 0
        %750 = vmatmul.mubr.bf16.gmra.mrb[0].mxu0 %v625
        %v751 = vpop.f32.mrb[0].mxu0
        %v752 = vadd.f32 0.0, %v751
        %v753 = vpop.f32.mrb[0].mxu0
        %v754 = vpop.f32.mrb[0].mxu0
        %v755 = vadd.f32 0.0, %v754
        %v756 = vpop.f32.mrb[0].mxu0
        %757 = vmatprep.mubr.bf16.mxu0 0
        %758 = vmatmul.mubr.bf16.gmra.mrb[0].mxu0 %v628
        %v759 = vpop.f32.mrb[0].mxu0
        %v760 = vadd.f32 0.0, %v759
        %v761 = vpop.f32.mrb[0].mxu0
        %v762 = vpop.f32.mrb[0].mxu0
        %v763 = vadd.f32 0.0, %v762
        %v764 = vpop.f32.mrb[0].mxu0
        %765 = vmatprep.mubr.bf16.mxu0 0
        %766 = vmatmul.mubr.bf16.gmra.mrb[0].mxu0 %v631
        %v767 = vpop.f32.mrb[0].mxu0
        %v768 = vadd.f32 0.0, %v767
        %v769 = vpop.f32.mrb[0].mxu0
        %v770 = vpop.f32.mrb[0].mxu0
        %v771 = vadd.f32 0.0, %v770
        %v772 = vpop.f32.mrb[0].mxu0
        %773 = vmatprep.mubr.bf16.mxu0 0
        %774 = vmatmul.mubr.bf16.gmra.mrb[0].mxu0 %v634
        %v775 = vpop.f32.mrb[0].mxu0
        %v776 = vadd.f32 0.0, %v775
        %v777 = vpop.f32.mrb[0].mxu0
        %v778 = vpop.f32.mrb[0].mxu0
        %v779 = vadd.f32 0.0, %v778
        %v780 = vpop.f32.mrb[0].mxu0
        %781 = vmatprep.mubr.bf16.mxu0 0
        %782 = vmatmul.mubr.bf16.gmra.mrb[0].mxu0 %v637
        %v783 = vpop.f32.mrb[0].mxu0
        %v784 = vadd.f32 0.0, %v783
        %v785 = vpop.f32.mrb[0].mxu0
        %v786 = vpop.f32.mrb[0].mxu0
        %v787 = vadd.f32 0.0, %v786
        %v788 = vpop.f32.mrb[0].mxu0
        %789 = vmatprep.mubr.bf16.mxu0 0
        %790 = vmatmul.mubr.bf16.gmra.mrb[0].mxu0 %v640
        %v791 = vpop.f32.mrb[0].mxu0
        %v792 = vadd.f32 0.0, %v791
        %v793 = vpop.f32.mrb[0].mxu0
        %v794 = vpop.f32.mrb[0].mxu0
        %v795 = vadd.f32 0.0, %v794
        %v796 = vpop.f32.mrb[0].mxu0
        %797 = vmatprep.mubr.bf16.mxu0 0
        %798 = vmatmul.mubr.bf16.gmra.mrb[0].mxu0 %v643
        %v799 = vpop.f32.mrb[0].mxu0
        %v800 = vadd.f32 0.0, %v799
        %v801 = vpop.f32.mrb[0].mxu0
        %v802 = vpop.f32.mrb[0].mxu0
        %v803 = vadd.f32 0.0, %v802
        %v804 = vpop.f32.mrb[0].mxu0
        %805 = vdwg.mxu0
        %v810 = vunpack.c.l.b16 %v528
        %v811 = vunpack.c.l.b16 %v529
        %v812 = vunpack.c.l.b16 %v530
        %v813 = vunpack.c.l.b16 %v531
        %v814 = vpack.c.b16 %v811, %v810
        %v815 = vpack.c.b16 %v813, %v812
        %v819 = vsel %vm249, %v512, 0
        %v822 = vsel %vm249, %v513, 0
        %v825 = vsel %vm249, %v514, 0
        %v828 = vsel %vm249, %v515, 0
        %v831 = vsel %vm249, %v516, 0
        %v834 = vsel %vm249, %v517, 0
        %v837 = vsel %vm249, %v518, 0
        %v840 = vsel %vm249, %v519, 0
        %v843 = vsel %vm249, %v520, 0
        %v846 = vsel %vm249, %v521, 0
        %v849 = vsel %vm249, %v522, 0
        %v852 = vsel %vm249, %v523, 0
        %v855 = vsel %vm249, %v524, 0
        %v858 = vsel %vm249, %v525, 0
        %v861 = vsel %vm249, %v526, 0
        %v864 = vsel %vm249, %v527, 0
        %866 = vmatprep.subr.bf16.mxu0 0
        %867 = vmatpush1.bf16.msra.mxu0 %v814
        %868 = vmatprep.subr.bf16.mxu0 0
        %869 = vmatpush1.bf16.msra.mxu0 %v815
        %870 = vmatprep.subr.bf16.mxu0 0
        %871 = vmatpush1.bf16.msra.mxu0 0
        %872 = vmatprep.subr.bf16.mxu0 0
        %873 = vmatpush1.bf16.msra.mxu0 0
        %874 = vmatprep.subr.bf16.mxu0 0
        %875 = vmatpush1.bf16.msra.mxu0 0
        %876 = vmatprep.subr.bf16.mxu0 0
        %877 = vmatpush1.bf16.msra.mxu0 0
        %878 = vmatprep.subr.bf16.mxu0 0
        %879 = vmatpush1.bf16.msra.mxu0 0
        %880 = vmatprep.subr.bf16.mxu0 0
        %881 = vmatpush1.bf16.msra.mxu0 0
        %882 = vmatprep.subr.bf16.mxu0 0
        %883 = vmatpush1.bf16.msra.mxu0 0
        %884 = vmatprep.subr.bf16.mxu0 0
        %885 = vmatpush1.bf16.msra.mxu0 0
        %886 = vmatprep.subr.bf16.mxu0 0
        %887 = vmatpush1.bf16.msra.mxu0 0
        %888 = vmatprep.subr.bf16.mxu0 0
        %889 = vmatpush1.bf16.msra.mxu0 0
        %890 = vmatprep.subr.bf16.mxu0 0
        %891 = vmatpush1.bf16.msra.mxu0 0
        %892 = vmatprep.subr.bf16.mxu0 0
        %893 = vmatpush1.bf16.msra.mxu0 0
        %894 = vmatprep.subr.bf16.mxu0 0
        %895 = vmatpush1.bf16.msra.mxu0 0
        %896 = vmatprep.subr.bf16.mxu0 0
        %897 = vmatpush1.bf16.msra.mxu0 0
        %898 = vmatprep.mubr.bf16.mxu0 0
        %899 = vmatmul.mubr.bf16.gmra.mrb[0].mxu0 %v819
        %v900 = vpop.f32.mrb[0].mxu0
        %v901 = vadd.f32 %v680, %v900
        %v902 = vpop.f32.mrb[0].mxu0
        %v903 = vpop.f32.mrb[0].mxu0
        %v904 = vadd.f32 %v683, %v903
        %v905 = vpop.f32.mrb[0].mxu0
        %906 = vmatprep.mubr.bf16.mxu0 0
        %907 = vmatmul.mubr.bf16.gmra.mrb[0].mxu0 %v822
        %v908 = vpop.f32.mrb[0].mxu0
        %v909 = vadd.f32 %v688, %v908
        %v910 = vpop.f32.mrb[0].mxu0
        %v911 = vpop.f32.mrb[0].mxu0
        %v912 = vadd.f32 %v691, %v911
        %v913 = vpop.f32.mrb[0].mxu0
        %914 = vmatprep.mubr.bf16.mxu0 0
        %915 = vmatmul.mubr.bf16.gmra.mrb[0].mxu0 %v825
        %v916 = vpop.f32.mrb[0].mxu0
        %v917 = vadd.f32 %v696, %v916
        %v918 = vpop.f32.mrb[0].mxu0
        %v919 = vpop.f32.mrb[0].mxu0
        %v920 = vadd.f32 %v699, %v919
        %v921 = vpop.f32.mrb[0].mxu0
        %922 = vmatprep.mubr.bf16.mxu0 0
        %923 = vmatmul.mubr.bf16.gmra.mrb[0].mxu0 %v828
        %v924 = vpop.f32.mrb[0].mxu0
        %v925 = vadd.f32 %v704, %v924
        %v926 = vpop.f32.mrb[0].mxu0
        %v927 = vpop.f32.mrb[0].mxu0
        %v928 = vadd.f32 %v707, %v927
        %v929 = vpop.f32.mrb[0].mxu0
        %930 = vmatprep.mubr.bf16.mxu0 0
        %931 = vmatmul.mubr.bf16.gmra.mrb[0].mxu0 %v831
        %v932 = vpop.f32.mrb[0].mxu0
        %v933 = vadd.f32 %v712, %v932
        %v934 = vpop.f32.mrb[0].mxu0
        %v935 = vpop.f32.mrb[0].mxu0
        %v936 = vadd.f32 %v715, %v935
        %v937 = vpop.f32.mrb[0].mxu0
        %938 = vmatprep.mubr.bf16.mxu0 0
        %939 = vmatmul.mubr.bf16.gmra.mrb[0].mxu0 %v834
        %v940 = vpop.f32.mrb[0].mxu0
        %v941 = vadd.f32 %v720, %v940
        %v942 = vpop.f32.mrb[0].mxu0
        %v943 = vpop.f32.mrb[0].mxu0
        %v944 = vadd.f32 %v723, %v943
        %v945 = vpop.f32.mrb[0].mxu0
        %946 = vmatprep.mubr.bf16.mxu0 0
        %947 = vmatmul.mubr.bf16.gmra.mrb[0].mxu0 %v837
        %v948 = vpop.f32.mrb[0].mxu0
        %v949 = vadd.f32 %v728, %v948
        %v950 = vpop.f32.mrb[0].mxu0
        %v951 = vpop.f32.mrb[0].mxu0
        %v952 = vadd.f32 %v731, %v951
        %v953 = vpop.f32.mrb[0].mxu0
        %954 = vmatprep.mubr.bf16.mxu0 0
        %955 = vmatmul.mubr.bf16.gmra.mrb[0].mxu0 %v840
        %v956 = vpop.f32.mrb[0].mxu0
        %v957 = vadd.f32 %v736, %v956
        %v958 = vpop.f32.mrb[0].mxu0
        %v959 = vpop.f32.mrb[0].mxu0
        %v960 = vadd.f32 %v739, %v959
        %v961 = vpop.f32.mrb[0].mxu0
        %962 = vmatprep.mubr.bf16.mxu0 0
        %963 = vmatmul.mubr.bf16.gmra.mrb[0].mxu0 %v843
        %v964 = vpop.f32.mrb[0].mxu0
        %v965 = vadd.f32 %v744, %v964
        %v966 = vpop.f32.mrb[0].mxu0
        %v967 = vpop.f32.mrb[0].mxu0
        %v968 = vadd.f32 %v747, %v967
        %v969 = vpop.f32.mrb[0].mxu0
        %970 = vmatprep.mubr.bf16.mxu0 0
        %971 = vmatmul.mubr.bf16.gmra.mrb[0].mxu0 %v846
        %v972 = vpop.f32.mrb[0].mxu0
        %v973 = vadd.f32 %v752, %v972
        %v974 = vpop.f32.mrb[0].mxu0
        %v975 = vpop.f32.mrb[0].mxu0
        %v976 = vadd.f32 %v755, %v975
        %v977 = vpop.f32.mrb[0].mxu0
        %978 = vmatprep.mubr.bf16.mxu0 0
        %979 = vmatmul.mubr.bf16.gmra.mrb[0].mxu0 %v849
        %v980 = vpop.f32.mrb[0].mxu0
        %v981 = vadd.f32 %v760, %v980
        %v982 = vpop.f32.mrb[0].mxu0
        %v983 = vpop.f32.mrb[0].mxu0
        %v984 = vadd.f32 %v763, %v983
        %v985 = vpop.f32.mrb[0].mxu0
        %986 = vmatprep.mubr.bf16.mxu0 0
        %987 = vmatmul.mubr.bf16.gmra.mrb[0].mxu0 %v852
        %v988 = vpop.f32.mrb[0].mxu0
        %v989 = vadd.f32 %v768, %v988
        %v990 = vpop.f32.mrb[0].mxu0
        %v991 = vpop.f32.mrb[0].mxu0
        %v992 = vadd.f32 %v771, %v991
        %v993 = vpop.f32.mrb[0].mxu0
        %994 = vmatprep.mubr.bf16.mxu0 0
        %995 = vmatmul.mubr.bf16.gmra.mrb[0].mxu0 %v855
        %v996 = vpop.f32.mrb[0].mxu0
        %v997 = vadd.f32 %v776, %v996
        %v998 = vpop.f32.mrb[0].mxu0
        %v999 = vpop.f32.mrb[0].mxu0
        %v1000 = vadd.f32 %v779, %v999
        %v1001 = vpop.f32.mrb[0].mxu0
        %1002 = vmatprep.mubr.bf16.mxu0 0
        %1003 = vmatmul.mubr.bf16.gmra.mrb[0].mxu0 %v858
        %v1004 = vpop.f32.mrb[0].mxu0
        %v1005 = vadd.f32 %v784, %v1004
        %v1006 = vpop.f32.mrb[0].mxu0
        %v1007 = vpop.f32.mrb[0].mxu0
        %v1008 = vadd.f32 %v787, %v1007
        %v1009 = vpop.f32.mrb[0].mxu0
        %1010 = vmatprep.mubr.bf16.mxu0 0
        %1011 = vmatmul.mubr.bf16.gmra.mrb[0].mxu0 %v861
        %v1012 = vpop.f32.mrb[0].mxu0
        %v1013 = vadd.f32 %v792, %v1012
        %v1014 = vpop.f32.mrb[0].mxu0
        %v1015 = vpop.f32.mrb[0].mxu0
        %v1016 = vadd.f32 %v795, %v1015
        %v1017 = vpop.f32.mrb[0].mxu0
        %1018 = vmatprep.mubr.bf16.mxu0 0
        %1019 = vmatmul.mubr.bf16.gmra.mrb[0].mxu0 %v864
        %v1020 = vpop.f32.mrb[0].mxu0
        %v1021 = vadd.f32 %v800, %v1020
        %v1022 = vpop.f32.mrb[0].mxu0
        %v1023 = vpop.f32.mrb[0].mxu0
        %v1024 = vadd.f32 %v803, %v1023
        %v1025 = vpop.f32.mrb[0].mxu0
        %1026 = vdwg.mxu0
        %v1027 = vld [vmem:[#allocation2 + $0x2] sm:$0xff]
        %v1028 = vld [vmem:[#allocation2 + $0xa] sm:$0xff]
        %v1029 = vld [vmem:[#allocation2 + $0x1a] sm:$0xff]
        %v1030 = vld [vmem:[#allocation2 + $0x22] sm:$0xff]
        %v1031 = vld [vmem:[#allocation2 + $0x32] sm:$0xff]
        %v1032 = vld [vmem:[#allocation2 + $0x3a] sm:$0xff]
        %v1033 = vld [vmem:[#allocation2 + $0x4a] sm:$0xff]
        %v1034 = vld [vmem:[#allocation2 + $0x52] sm:$0xff]
        %v1035 = vld [vmem:[#allocation2 + $0x62] sm:$0xff]
        %v1036 = vld [vmem:[#allocation2 + $0x6a] sm:$0xff]
        %v1037 = vld [vmem:[#allocation2 + $0x7a] sm:$0xff]
        %v1038 = vld [vmem:[#allocation2 + $0x82] sm:$0xff]
        %v1039 = vld [vmem:[#allocation2 + $0x92] sm:$0xff]
        %v1040 = vld [vmem:[#allocation2 + $0x9a] sm:$0xff]
        %v1041 = vld [vmem:[#allocation2 + $0xaa] sm:$0xff]
        %v1042 = vld [vmem:[#allocation2 + $0xb2] sm:$0xff]
        %v1043 = vld [vmem:[#allocation2 + $0xc2] sm:$0xff]
        %v1044 = vld [vmem:[#allocation2 + $0xca] sm:$0xff]
        %v1045 = vld [vmem:[#allocation2 + $0xda] sm:$0xff]
        %v1046 = vld [vmem:[#allocation2 + $0xe2] sm:$0xff]
        %v1047 = vld [vmem:[#allocation2 + $0xf2] sm:$0xff]
        %v1048 = vld [vmem:[#allocation2 + $0xfa] sm:$0xff]
        %v1049 = vld [vmem:[#allocation2 + $0x10a] sm:$0xff]
        %v1050 = vld [vmem:[#allocation2 + $0x112] sm:$0xff]
        %v1051 = vld [vmem:[#allocation2 + $0x122] sm:$0xff]
        %v1052 = vld [vmem:[#allocation2 + $0x12a] sm:$0xff]
        %v1053 = vld [vmem:[#allocation2 + $0x13a] sm:$0xff]
        %v1054 = vld [vmem:[#allocation2 + $0x142] sm:$0xff]
        %v1055 = vld [vmem:[#allocation2 + $0x152] sm:$0xff]
        %v1056 = vld [vmem:[#allocation2 + $0x15a] sm:$0xff]
        %v1057 = vld [vmem:[#allocation2 + $0x16a] sm:$0xff]
        %v1058 = vld [vmem:[#allocation2 + $0x172] sm:$0xff]
        %v1059 = vpack.c.bf16 %v1028, %v1027
        %v1060 = vpack.c.bf16 %v1030, %v1029
        %v1061 = vpack.c.bf16 %v1032, %v1031
        %v1062 = vpack.c.bf16 %v1034, %v1033
        %v1063 = vpack.c.bf16 %v1036, %v1035
        %v1064 = vpack.c.bf16 %v1038, %v1037
        %v1065 = vpack.c.bf16 %v1040, %v1039
        %v1066 = vpack.c.bf16 %v1042, %v1041
        %v1067 = vpack.c.bf16 %v1044, %v1043
        %v1068 = vpack.c.bf16 %v1046, %v1045
        %v1069 = vpack.c.bf16 %v1048, %v1047
        %v1070 = vpack.c.bf16 %v1050, %v1049
        %v1071 = vpack.c.bf16 %v1052, %v1051
        %v1072 = vpack.c.bf16 %v1054, %v1053
        %v1073 = vpack.c.bf16 %v1056, %v1055
        %v1074 = vpack.c.bf16 %v1058, %v1057
        %s1075 = scalar_lea.vmem %s3, 32
        %v1076 = vld [vmem:[%s1075] sm:$0xf]
        %v1077 = vld [vmem:[%s1075 + $0x4] sm:$0xf]
        %v1078 = vld [vmem:[%s1075 + $0x8] sm:$0xf]
        %v1079 = vld [vmem:[%s1075 + $0xc] sm:$0xf]
        %v1084 = vunpack.c.l.b16 %v1076
        %v1085 = vunpack.c.l.b16 %v1077
        %v1086 = vunpack.c.l.b16 %v1078
        %v1087 = vunpack.c.l.b16 %v1079
        %v1088 = vpack.c.b16 %v1085, %v1084
        %v1089 = vpack.c.b16 %v1087, %v1086
        %v1093 = vsel %vm249, %v1059, 0
        %v1096 = vsel %vm249, %v1060, 0
        %v1099 = vsel %vm249, %v1061, 0
        %v1102 = vsel %vm249, %v1062, 0
        %v1105 = vsel %vm249, %v1063, 0
        %v1108 = vsel %vm249, %v1064, 0
        %v1111 = vsel %vm249, %v1065, 0
        %v1114 = vsel %vm249, %v1066, 0
        %v1117 = vsel %vm249, %v1067, 0
        %v1120 = vsel %vm249, %v1068, 0
        %v1123 = vsel %vm249, %v1069, 0
        %v1126 = vsel %vm249, %v1070, 0
        %v1129 = vsel %vm249, %v1071, 0
        %v1132 = vsel %vm249, %v1072, 0
        %v1135 = vsel %vm249, %v1073, 0
        %v1138 = vsel %vm249, %v1074, 0
        %1140 = vmatprep.subr.bf16.mxu0 0
        %1141 = vmatpush1.bf16.msra.mxu0 %v1088
        %1142 = vmatprep.subr.bf16.mxu0 0
        %1143 = vmatpush1.bf16.msra.mxu0 %v1089
        %1144 = vmatprep.subr.bf16.mxu0 0
        %1145 = vmatpush1.bf16.msra.mxu0 0
        %1146 = vmatprep.subr.bf16.mxu0 0
        %1147 = vmatpush1.bf16.msra.mxu0 0
        %1148 = vmatprep.subr.bf16.mxu0 0
        %1149 = vmatpush1.bf16.msra.mxu0 0
        %1150 = vmatprep.subr.bf16.mxu0 0
        %1151 = vmatpush1.bf16.msra.mxu0 0
        %1152 = vmatprep.subr.bf16.mxu0 0
        %1153 = vmatpush1.bf16.msra.mxu0 0
        %1154 = vmatprep.subr.bf16.mxu0 0
        %1155 = vmatpush1.bf16.msra.mxu0 0
        %1156 = vmatprep.subr.bf16.mxu0 0
        %1157 = vmatpush1.bf16.msra.mxu0 0
        %1158 = vmatprep.subr.bf16.mxu0 0
        %1159 = vmatpush1.bf16.msra.mxu0 0
        %1160 = vmatprep.subr.bf16.mxu0 0
        %1161 = vmatpush1.bf16.msra.mxu0 0
        %1162 = vmatprep.subr.bf16.mxu0 0
        %1163 = vmatpush1.bf16.msra.mxu0 0
        %1164 = vmatprep.subr.bf16.mxu0 0
        %1165 = vmatpush1.bf16.msra.mxu0 0
        %1166 = vmatprep.subr.bf16.mxu0 0
        %1167 = vmatpush1.bf16.msra.mxu0 0
        %1168 = vmatprep.subr.bf16.mxu0 0
        %1169 = vmatpush1.bf16.msra.mxu0 0
        %1170 = vmatprep.subr.bf16.mxu0 0
        %1171 = vmatpush1.bf16.msra.mxu0 0
        %1172 = vmatprep.mubr.bf16.mxu0 0
        %1173 = vmatmul.mubr.bf16.gmra.mrb[0].mxu0 %v1093
        %v1174 = vpop.f32.mrb[0].mxu0
        %v1175 = vadd.f32 0.0, %v1174
        %v1176 = vpop.f32.mrb[0].mxu0
        %v1177 = vpop.f32.mrb[0].mxu0
        %v1178 = vadd.f32 0.0, %v1177
        %v1179 = vpop.f32.mrb[0].mxu0
        %1180 = vmatprep.mubr.bf16.mxu0 0
        %1181 = vmatmul.mubr.bf16.gmra.mrb[0].mxu0 %v1096
        %v1182 = vpop.f32.mrb[0].mxu0
        %v1183 = vadd.f32 0.0, %v1182
        %v1184 = vpop.f32.mrb[0].mxu0
        %v1185 = vpop.f32.mrb[0].mxu0
        %v1186 = vadd.f32 0.0, %v1185
        %v1187 = vpop.f32.mrb[0].mxu0
        %1188 = vmatprep.mubr.bf16.mxu0 0
        %1189 = vmatmul.mubr.bf16.gmra.mrb[0].mxu0 %v1099
        %v1190 = vpop.f32.mrb[0].mxu0
        %v1191 = vadd.f32 0.0, %v1190
        %v1192 = vpop.f32.mrb[0].mxu0
        %v1193 = vpop.f32.mrb[0].mxu0
        %v1194 = vadd.f32 0.0, %v1193
        %v1195 = vpop.f32.mrb[0].mxu0
        %1196 = vmatprep.mubr.bf16.mxu0 0
        %1197 = vmatmul.mubr.bf16.gmra.mrb[0].mxu0 %v1102
        %v1198 = vpop.f32.mrb[0].mxu0
        %v1199 = vadd.f32 0.0, %v1198
        %v1200 = vpop.f32.mrb[0].mxu0
        %v1201 = vpop.f32.mrb[0].mxu0
        %v1202 = vadd.f32 0.0, %v1201
        %v1203 = vpop.f32.mrb[0].mxu0
        %1204 = vmatprep.mubr.bf16.mxu0 0
        %1205 = vmatmul.mubr.bf16.gmra.mrb[0].mxu0 %v1105
        %v1206 = vpop.f32.mrb[0].mxu0
        %v1207 = vadd.f32 0.0, %v1206
        %v1208 = vpop.f32.mrb[0].mxu0
        %v1209 = vpop.f32.mrb[0].mxu0
        %v1210 = vadd.f32 0.0, %v1209
        %v1211 = vpop.f32.mrb[0].mxu0
        %1212 = vmatprep.mubr.bf16.mxu0 0
        %1213 = vmatmul.mubr.bf16.gmra.mrb[0].mxu0 %v1108
        %v1214 = vpop.f32.mrb[0].mxu0
        %v1215 = vadd.f32 0.0, %v1214
        %v1216 = vpop.f32.mrb[0].mxu0
        %v1217 = vpop.f32.mrb[0].mxu0
        %v1218 = vadd.f32 0.0, %v1217
        %v1219 = vpop.f32.mrb[0].mxu0
        %1220 = vmatprep.mubr.bf16.mxu0 0
        %1221 = vmatmul.mubr.bf16.gmra.mrb[0].mxu0 %v1111
        %v1222 = vpop.f32.mrb[0].mxu0
        %v1223 = vadd.f32 0.0, %v1222
        %v1224 = vpop.f32.mrb[0].mxu0
        %v1225 = vpop.f32.mrb[0].mxu0
        %v1226 = vadd.f32 0.0, %v1225
        %v1227 = vpop.f32.mrb[0].mxu0
        %1228 = vmatprep.mubr.bf16.mxu0 0
        %1229 = vmatmul.mubr.bf16.gmra.mrb[0].mxu0 %v1114
        %v1230 = vpop.f32.mrb[0].mxu0
        %v1231 = vadd.f32 0.0, %v1230
        %v1232 = vpop.f32.mrb[0].mxu0
        %v1233 = vpop.f32.mrb[0].mxu0
        %v1234 = vadd.f32 0.0, %v1233
        %v1235 = vpop.f32.mrb[0].mxu0
        %1236 = vmatprep.mubr.bf16.mxu0 0
        %1237 = vmatmul.mubr.bf16.gmra.mrb[0].mxu0 %v1117
        %v1238 = vpop.f32.mrb[0].mxu0
        %v1239 = vadd.f32 0.0, %v1238
        %v1240 = vpop.f32.mrb[0].mxu0
        %v1241 = vpop.f32.mrb[0].mxu0
        %v1242 = vadd.f32 0.0, %v1241
        %v1243 = vpop.f32.mrb[0].mxu0
        %1244 = vmatprep.mubr.bf16.mxu0 0
        %1245 = vmatmul.mubr.bf16.gmra.mrb[0].mxu0 %v1120
        %v1246 = vpop.f32.mrb[0].mxu0
        %v1247 = vadd.f32 0.0, %v1246
        %v1248 = vpop.f32.mrb[0].mxu0
        %v1249 = vpop.f32.mrb[0].mxu0
        %v1250 = vadd.f32 0.0, %v1249
        %v1251 = vpop.f32.mrb[0].mxu0
        %1252 = vmatprep.mubr.bf16.mxu0 0
        %1253 = vmatmul.mubr.bf16.gmra.mrb[0].mxu0 %v1123
        %v1254 = vpop.f32.mrb[0].mxu0
        %v1255 = vadd.f32 0.0, %v1254
        %v1256 = vpop.f32.mrb[0].mxu0
        %v1257 = vpop.f32.mrb[0].mxu0
        %v1258 = vadd.f32 0.0, %v1257
        %v1259 = vpop.f32.mrb[0].mxu0
        %1260 = vmatprep.mubr.bf16.mxu0 0
        %1261 = vmatmul.mubr.bf16.gmra.mrb[0].mxu0 %v1126
        %v1262 = vpop.f32.mrb[0].mxu0
        %v1263 = vadd.f32 0.0, %v1262
        %v1264 = vpop.f32.mrb[0].mxu0
        %v1265 = vpop.f32.mrb[0].mxu0
        %v1266 = vadd.f32 0.0, %v1265
        %v1267 = vpop.f32.mrb[0].mxu0
        %1268 = vmatprep.mubr.bf16.mxu0 0
        %1269 = vmatmul.mubr.bf16.gmra.mrb[0].mxu0 %v1129
        %v1270 = vpop.f32.mrb[0].mxu0
        %v1271 = vadd.f32 0.0, %v1270
        %v1272 = vpop.f32.mrb[0].mxu0
        %v1273 = vpop.f32.mrb[0].mxu0
        %v1274 = vadd.f32 0.0, %v1273
        %v1275 = vpop.f32.mrb[0].mxu0
        %1276 = vmatprep.mubr.bf16.mxu0 0
        %1277 = vmatmul.mubr.bf16.gmra.mrb[0].mxu0 %v1132
        %v1278 = vpop.f32.mrb[0].mxu0
        %v1279 = vadd.f32 0.0, %v1278
        %v1280 = vpop.f32.mrb[0].mxu0
        %v1281 = vpop.f32.mrb[0].mxu0
        %v1282 = vadd.f32 0.0, %v1281
        %v1283 = vpop.f32.mrb[0].mxu0
        %1284 = vmatprep.mubr.bf16.mxu0 0
        %1285 = vmatmul.mubr.bf16.gmra.mrb[0].mxu0 %v1135
        %v1286 = vpop.f32.mrb[0].mxu0
        %v1287 = vadd.f32 0.0, %v1286
        %v1288 = vpop.f32.mrb[0].mxu0
        %v1289 = vpop.f32.mrb[0].mxu0
        %v1290 = vadd.f32 0.0, %v1289
        %v1291 = vpop.f32.mrb[0].mxu0
        %1292 = vmatprep.mubr.bf16.mxu0 0
        %1293 = vmatmul.mubr.bf16.gmra.mrb[0].mxu0 %v1138
        %v1294 = vpop.f32.mrb[0].mxu0
        %v1295 = vadd.f32 0.0, %v1294
        %v1296 = vpop.f32.mrb[0].mxu0
        %v1297 = vpop.f32.mrb[0].mxu0
        %v1298 = vadd.f32 0.0, %v1297
        %v1299 = vpop.f32.mrb[0].mxu0
        %1300 = vdwg.mxu0
        %v1301 = vadd.f32 %v901, %v1175
        %v1302 = vadd.f32 %v904, %v1178
        %v1303 = vadd.f32 %v909, %v1183
        %v1304 = vadd.f32 %v912, %v1186
        %v1305 = vadd.f32 %v917, %v1191
        %v1306 = vadd.f32 %v920, %v1194
        %v1307 = vadd.f32 %v925, %v1199
        %v1308 = vadd.f32 %v928, %v1202
        %v1309 = vadd.f32 %v933, %v1207
        %v1310 = vadd.f32 %v936, %v1210
        %v1311 = vadd.f32 %v941, %v1215
        %v1312 = vadd.f32 %v944, %v1218
        %v1313 = vadd.f32 %v949, %v1223
        %v1314 = vadd.f32 %v952, %v1226
        %v1315 = vadd.f32 %v957, %v1231
        %v1316 = vadd.f32 %v960, %v1234
        %v1317 = vadd.f32 %v965, %v1239
        %v1318 = vadd.f32 %v968, %v1242
        %v1319 = vadd.f32 %v973, %v1247
        %v1320 = vadd.f32 %v976, %v1250
        %v1321 = vadd.f32 %v981, %v1255
        %v1322 = vadd.f32 %v984, %v1258
        %v1323 = vadd.f32 %v989, %v1263
        %v1324 = vadd.f32 %v992, %v1266
        %v1325 = vadd.f32 %v997, %v1271
        %v1326 = vadd.f32 %v1000, %v1274
        %v1327 = vadd.f32 %v1005, %v1279
        %v1328 = vadd.f32 %v1008, %v1282
        %v1329 = vadd.f32 %v1013, %v1287
        %v1330 = vadd.f32 %v1016, %v1290
        %v1331 = vadd.f32 %v1021, %v1295
        %v1332 = vadd.f32 %v1024, %v1298
        %v1333 = vld [vmem:[%s447] sm:$0xff]
        %v1334 = vld [vmem:[%s447 + $0x8] sm:$0xff]
        %v1335 = vld [vmem:[%s447 + $0x18] sm:$0xff]
        %v1336 = vld [vmem:[%s447 + $0x20] sm:$0xff]
        %v1337 = vld [vmem:[%s447 + $0x30] sm:$0xff]
        %v1338 = vld [vmem:[%s447 + $0x38] sm:$0xff]
        %v1339 = vld [vmem:[%s447 + $0x48] sm:$0xff]
        %v1340 = vld [vmem:[%s447 + $0x50] sm:$0xff]
        %v1341 = vld [vmem:[%s447 + $0x60] sm:$0xff]
        %v1342 = vld [vmem:[%s447 + $0x68] sm:$0xff]
        %v1343 = vld [vmem:[%s447 + $0x78] sm:$0xff]
        %v1344 = vld [vmem:[%s447 + $0x80] sm:$0xff]
        %v1345 = vld [vmem:[%s447 + $0x90] sm:$0xff]
        %v1346 = vld [vmem:[%s447 + $0x98] sm:$0xff]
        %v1347 = vld [vmem:[%s447 + $0xa8] sm:$0xff]
        %v1348 = vld [vmem:[%s447 + $0xb0] sm:$0xff]
        %v1349 = vld [vmem:[%s447 + $0xc0] sm:$0xff]
        %v1350 = vld [vmem:[%s447 + $0xc8] sm:$0xff]
        %v1351 = vld [vmem:[%s447 + $0xd8] sm:$0xff]
        %v1352 = vld [vmem:[%s447 + $0xe0] sm:$0xff]
        %v1353 = vld [vmem:[%s447 + $0xf0] sm:$0xff]
        %v1354 = vld [vmem:[%s447 + $0xf8] sm:$0xff]
        %v1355 = vld [vmem:[%s447 + $0x108] sm:$0xff]
        %v1356 = vld [vmem:[%s447 + $0x110] sm:$0xff]
        %v1357 = vld [vmem:[%s447 + $0x120] sm:$0xff]
        %v1358 = vld [vmem:[%s447 + $0x128] sm:$0xff]
        %v1359 = vld [vmem:[%s447 + $0x138] sm:$0xff]
        %v1360 = vld [vmem:[%s447 + $0x140] sm:$0xff]
        %v1361 = vld [vmem:[%s447 + $0x150] sm:$0xff]
        %v1362 = vld [vmem:[%s447 + $0x158] sm:$0xff]
        %v1363 = vld [vmem:[%s447 + $0x168] sm:$0xff]
        %v1364 = vld [vmem:[%s447 + $0x170] sm:$0xff]
        %v1365 = vpack.c.bf16 %v1334, %v1333
        %v1366 = vpack.c.bf16 %v1336, %v1335
        %v1367 = vpack.c.bf16 %v1338, %v1337
        %v1368 = vpack.c.bf16 %v1340, %v1339
        %v1369 = vpack.c.bf16 %v1342, %v1341
        %v1370 = vpack.c.bf16 %v1344, %v1343
        %v1371 = vpack.c.bf16 %v1346, %v1345
        %v1372 = vpack.c.bf16 %v1348, %v1347
        %v1373 = vpack.c.bf16 %v1350, %v1349
        %v1374 = vpack.c.bf16 %v1352, %v1351
        %v1375 = vpack.c.bf16 %v1354, %v1353
        %v1376 = vpack.c.bf16 %v1356, %v1355
        %v1377 = vpack.c.bf16 %v1358, %v1357
        %v1378 = vpack.c.bf16 %v1360, %v1359
        %v1379 = vpack.c.bf16 %v1362, %v1361
        %v1380 = vpack.c.bf16 %v1364, %v1363
        %s1381 = scalar_lea.vmem %s3, 48
        %v1382 = vld [vmem:[%s1381] sm:$0xf]
        %v1383 = vld [vmem:[%s1381 + $0x4] sm:$0xf]
        %v1384 = vld [vmem:[%s1381 + $0x8] sm:$0xf]
        %v1385 = vld [vmem:[%s1381 + $0xc] sm:$0xf]
        %v1390 = vunpack.c.l.b16 %v1382
        %v1391 = vunpack.c.l.b16 %v1383
        %v1392 = vunpack.c.l.b16 %v1384
        %v1393 = vunpack.c.l.b16 %v1385
        %v1394 = vpack.c.b16 %v1391, %v1390
        %v1395 = vpack.c.b16 %v1393, %v1392
        %v1399 = vsel %vm249, %v1365, 0
        %v1402 = vsel %vm249, %v1366, 0
        %v1405 = vsel %vm249, %v1367, 0
        %v1408 = vsel %vm249, %v1368, 0
        %v1411 = vsel %vm249, %v1369, 0
        %v1414 = vsel %vm249, %v1370, 0
        %v1417 = vsel %vm249, %v1371, 0
        %v1420 = vsel %vm249, %v1372, 0
        %v1423 = vsel %vm249, %v1373, 0
        %v1426 = vsel %vm249, %v1374, 0
        %v1429 = vsel %vm249, %v1375, 0
        %v1432 = vsel %vm249, %v1376, 0
        %v1435 = vsel %vm249, %v1377, 0
        %v1438 = vsel %vm249, %v1378, 0
        %v1441 = vsel %vm249, %v1379, 0
        %v1444 = vsel %vm249, %v1380, 0
        %1446 = vmatprep.subr.bf16.mxu0 0
        %1447 = vmatpush1.bf16.msra.mxu0 %v1394
        %1448 = vmatprep.subr.bf16.mxu0 0
        %1449 = vmatpush1.bf16.msra.mxu0 %v1395
        %1450 = vmatprep.subr.bf16.mxu0 0
        %1451 = vmatpush1.bf16.msra.mxu0 0
        %1452 = vmatprep.subr.bf16.mxu0 0
        %1453 = vmatpush1.bf16.msra.mxu0 0
        %1454 = vmatprep.subr.bf16.mxu0 0
        %1455 = vmatpush1.bf16.msra.mxu0 0
        %1456 = vmatprep.subr.bf16.mxu0 0
        %1457 = vmatpush1.bf16.msra.mxu0 0
        %1458 = vmatprep.subr.bf16.mxu0 0
        %1459 = vmatpush1.bf16.msra.mxu0 0
        %1460 = vmatprep.subr.bf16.mxu0 0
        %1461 = vmatpush1.bf16.msra.mxu0 0
        %1462 = vmatprep.subr.bf16.mxu0 0
        %1463 = vmatpush1.bf16.msra.mxu0 0
        %1464 = vmatprep.subr.bf16.mxu0 0
        %1465 = vmatpush1.bf16.msra.mxu0 0
        %1466 = vmatprep.subr.bf16.mxu0 0
        %1467 = vmatpush1.bf16.msra.mxu0 0
        %1468 = vmatprep.subr.bf16.mxu0 0
        %1469 = vmatpush1.bf16.msra.mxu0 0
        %1470 = vmatprep.subr.bf16.mxu0 0
        %1471 = vmatpush1.bf16.msra.mxu0 0
        %1472 = vmatprep.subr.bf16.mxu0 0
        %1473 = vmatpush1.bf16.msra.mxu0 0
        %1474 = vmatprep.subr.bf16.mxu0 0
        %1475 = vmatpush1.bf16.msra.mxu0 0
        %1476 = vmatprep.subr.bf16.mxu0 0
        %1477 = vmatpush1.bf16.msra.mxu0 0
        %1478 = vmatprep.mubr.bf16.mxu0 0
        %1479 = vmatmul.mubr.bf16.gmra.mrb[0].mxu0 %v1399
        %v1480 = vpop.f32.mrb[0].mxu0
        %v1481 = vadd.f32 0.0, %v1480
        %v1482 = vpop.f32.mrb[0].mxu0
        %v1483 = vpop.f32.mrb[0].mxu0
        %v1484 = vadd.f32 0.0, %v1483
        %v1485 = vpop.f32.mrb[0].mxu0
        %1486 = vmatprep.mubr.bf16.mxu0 0
        %1487 = vmatmul.mubr.bf16.gmra.mrb[0].mxu0 %v1402
        %v1488 = vpop.f32.mrb[0].mxu0
        %v1489 = vadd.f32 0.0, %v1488
        %v1490 = vpop.f32.mrb[0].mxu0
        %v1491 = vpop.f32.mrb[0].mxu0
        %v1492 = vadd.f32 0.0, %v1491
        %v1493 = vpop.f32.mrb[0].mxu0
        %1494 = vmatprep.mubr.bf16.mxu0 0
        %1495 = vmatmul.mubr.bf16.gmra.mrb[0].mxu0 %v1405
        %v1496 = vpop.f32.mrb[0].mxu0
        %v1497 = vadd.f32 0.0, %v1496
        %v1498 = vpop.f32.mrb[0].mxu0
        %v1499 = vpop.f32.mrb[0].mxu0
        %v1500 = vadd.f32 0.0, %v1499
        %v1501 = vpop.f32.mrb[0].mxu0
        %1502 = vmatprep.mubr.bf16.mxu0 0
        %1503 = vmatmul.mubr.bf16.gmra.mrb[0].mxu0 %v1408
        %v1504 = vpop.f32.mrb[0].mxu0
        %v1505 = vadd.f32 0.0, %v1504
        %v1506 = vpop.f32.mrb[0].mxu0
        %v1507 = vpop.f32.mrb[0].mxu0
        %v1508 = vadd.f32 0.0, %v1507
        %v1509 = vpop.f32.mrb[0].mxu0
        %1510 = vmatprep.mubr.bf16.mxu0 0
        %1511 = vmatmul.mubr.bf16.gmra.mrb[0].mxu0 %v1411
        %v1512 = vpop.f32.mrb[0].mxu0
        %v1513 = vadd.f32 0.0, %v1512
        %v1514 = vpop.f32.mrb[0].mxu0
        %v1515 = vpop.f32.mrb[0].mxu0
        %v1516 = vadd.f32 0.0, %v1515
        %v1517 = vpop.f32.mrb[0].mxu0
        %1518 = vmatprep.mubr.bf16.mxu0 0
        %1519 = vmatmul.mubr.bf16.gmra.mrb[0].mxu0 %v1414
        %v1520 = vpop.f32.mrb[0].mxu0
        %v1521 = vadd.f32 0.0, %v1520
        %v1522 = vpop.f32.mrb[0].mxu0
        %v1523 = vpop.f32.mrb[0].mxu0
        %v1524 = vadd.f32 0.0, %v1523
        %v1525 = vpop.f32.mrb[0].mxu0
        %1526 = vmatprep.mubr.bf16.mxu0 0
        %1527 = vmatmul.mubr.bf16.gmra.mrb[0].mxu0 %v1417
        %v1528 = vpop.f32.mrb[0].mxu0
        %v1529 = vadd.f32 0.0, %v1528
        %v1530 = vpop.f32.mrb[0].mxu0
        %v1531 = vpop.f32.mrb[0].mxu0
        %v1532 = vadd.f32 0.0, %v1531
        %v1533 = vpop.f32.mrb[0].mxu0
        %1534 = vmatprep.mubr.bf16.mxu0 0
        %1535 = vmatmul.mubr.bf16.gmra.mrb[0].mxu0 %v1420
        %v1536 = vpop.f32.mrb[0].mxu0
        %v1537 = vadd.f32 0.0, %v1536
        %v1538 = vpop.f32.mrb[0].mxu0
        %v1539 = vpop.f32.mrb[0].mxu0
        %v1540 = vadd.f32 0.0, %v1539
        %v1541 = vpop.f32.mrb[0].mxu0
        %1542 = vmatprep.mubr.bf16.mxu0 0
        %1543 = vmatmul.mubr.bf16.gmra.mrb[0].mxu0 %v1423
        %v1544 = vpop.f32.mrb[0].mxu0
        %v1545 = vadd.f32 0.0, %v1544
        %v1546 = vpop.f32.mrb[0].mxu0
        %v1547 = vpop.f32.mrb[0].mxu0
        %v1548 = vadd.f32 0.0, %v1547
        %v1549 = vpop.f32.mrb[0].mxu0
        %1550 = vmatprep.mubr.bf16.mxu0 0
        %1551 = vmatmul.mubr.bf16.gmra.mrb[0].mxu0 %v1426
        %v1552 = vpop.f32.mrb[0].mxu0
        %v1553 = vadd.f32 0.0, %v1552
        %v1554 = vpop.f32.mrb[0].mxu0
        %v1555 = vpop.f32.mrb[0].mxu0
        %v1556 = vadd.f32 0.0, %v1555
        %v1557 = vpop.f32.mrb[0].mxu0
        %1558 = vmatprep.mubr.bf16.mxu0 0
        %1559 = vmatmul.mubr.bf16.gmra.mrb[0].mxu0 %v1429
        %v1560 = vpop.f32.mrb[0].mxu0
        %v1561 = vadd.f32 0.0, %v1560
        %v1562 = vpop.f32.mrb[0].mxu0
        %v1563 = vpop.f32.mrb[0].mxu0
        %v1564 = vadd.f32 0.0, %v1563
        %v1565 = vpop.f32.mrb[0].mxu0
        %1566 = vmatprep.mubr.bf16.mxu0 0
        %1567 = vmatmul.mubr.bf16.gmra.mrb[0].mxu0 %v1432
        %v1568 = vpop.f32.mrb[0].mxu0
        %v1569 = vadd.f32 0.0, %v1568
        %v1570 = vpop.f32.mrb[0].mxu0
        %v1571 = vpop.f32.mrb[0].mxu0
        %v1572 = vadd.f32 0.0, %v1571
        %v1573 = vpop.f32.mrb[0].mxu0
        %1574 = vmatprep.mubr.bf16.mxu0 0
        %1575 = vmatmul.mubr.bf16.gmra.mrb[0].mxu0 %v1435
        %v1576 = vpop.f32.mrb[0].mxu0
        %v1577 = vadd.f32 0.0, %v1576
        %v1578 = vpop.f32.mrb[0].mxu0
        %v1579 = vpop.f32.mrb[0].mxu0
        %v1580 = vadd.f32 0.0, %v1579
        %v1581 = vpop.f32.mrb[0].mxu0
        %1582 = vmatprep.mubr.bf16.mxu0 0
        %1583 = vmatmul.mubr.bf16.gmra.mrb[0].mxu0 %v1438
        %v1584 = vpop.f32.mrb[0].mxu0
        %v1585 = vadd.f32 0.0, %v1584
        %v1586 = vpop.f32.mrb[0].mxu0
        %v1587 = vpop.f32.mrb[0].mxu0
        %v1588 = vadd.f32 0.0, %v1587
        %v1589 = vpop.f32.mrb[0].mxu0
        %1590 = vmatprep.mubr.bf16.mxu0 0
        %1591 = vmatmul.mubr.bf16.gmra.mrb[0].mxu0 %v1441
        %v1592 = vpop.f32.mrb[0].mxu0
        %v1593 = vadd.f32 0.0, %v1592
        %v1594 = vpop.f32.mrb[0].mxu0
        %v1595 = vpop.f32.mrb[0].mxu0
        %v1596 = vadd.f32 0.0, %v1595
        %v1597 = vpop.f32.mrb[0].mxu0
        %1598 = vmatprep.mubr.bf16.mxu0 0
        %1599 = vmatmul.mubr.bf16.gmra.mrb[0].mxu0 %v1444
        %v1600 = vpop.f32.mrb[0].mxu0
        %v1601 = vadd.f32 0.0, %v1600
        %v1602 = vpop.f32.mrb[0].mxu0
        %v1603 = vpop.f32.mrb[0].mxu0
        %v1604 = vadd.f32 0.0, %v1603
        %v1605 = vpop.f32.mrb[0].mxu0
        %1606 = vdwg.mxu0
        %v1607 = vadd.f32 %v1301, %v1481
        %v1608 = vadd.f32 %v1302, %v1484
        %v1609 = vadd.f32 %v1303, %v1489
        %v1610 = vadd.f32 %v1304, %v1492
        %v1611 = vadd.f32 %v1305, %v1497
        %v1612 = vadd.f32 %v1306, %v1500
        %v1613 = vadd.f32 %v1307, %v1505
        %v1614 = vadd.f32 %v1308, %v1508
        %v1615 = vadd.f32 %v1309, %v1513
        %v1616 = vadd.f32 %v1310, %v1516
        %v1617 = vadd.f32 %v1311, %v1521
        %v1618 = vadd.f32 %v1312, %v1524
        %v1619 = vadd.f32 %v1313, %v1529
        %v1620 = vadd.f32 %v1314, %v1532
        %v1621 = vadd.f32 %v1315, %v1537
        %v1622 = vadd.f32 %v1316, %v1540
        %v1623 = vadd.f32 %v1317, %v1545
        %v1624 = vadd.f32 %v1318, %v1548
        %v1625 = vadd.f32 %v1319, %v1553
        %v1626 = vadd.f32 %v1320, %v1556
        %v1627 = vadd.f32 %v1321, %v1561
        %v1628 = vadd.f32 %v1322, %v1564
        %v1629 = vadd.f32 %v1323, %v1569
        %v1630 = vadd.f32 %v1324, %v1572
        %v1631 = vadd.f32 %v1325, %v1577
        %v1632 = vadd.f32 %v1326, %v1580
        %v1633 = vadd.f32 %v1327, %v1585
        %v1634 = vadd.f32 %v1328, %v1588
        %v1635 = vadd.f32 %v1329, %v1593
        %v1636 = vadd.f32 %v1330, %v1596
        %v1637 = vadd.f32 %v1331, %v1601
        %v1638 = vadd.f32 %v1332, %v1604
        %v1639 = vld [vmem:[%s447 + $0x1] sm:$0xff]
        %v1640 = vld [vmem:[%s447 + $0x9] sm:$0xff]
        %v1641 = vld [vmem:[%s447 + $0x19] sm:$0xff]
        %v1642 = vld [vmem:[%s447 + $0x21] sm:$0xff]
        %v1643 = vld [vmem:[%s447 + $0x31] sm:$0xff]
        %v1644 = vld [vmem:[%s447 + $0x39] sm:$0xff]
        %v1645 = vld [vmem:[%s447 + $0x49] sm:$0xff]
        %v1646 = vld [vmem:[%s447 + $0x51] sm:$0xff]
        %v1647 = vld [vmem:[%s447 + $0x61] sm:$0xff]
        %v1648 = vld [vmem:[%s447 + $0x69] sm:$0xff]
        %v1649 = vld [vmem:[%s447 + $0x79] sm:$0xff]
        %v1650 = vld [vmem:[%s447 + $0x81] sm:$0xff]
        %v1651 = vld [vmem:[%s447 + $0x91] sm:$0xff]
        %v1652 = vld [vmem:[%s447 + $0x99] sm:$0xff]
        %v1653 = vld [vmem:[%s447 + $0xa9] sm:$0xff]
        %v1654 = vld [vmem:[%s447 + $0xb1] sm:$0xff]
        %v1655 = vld [vmem:[%s447 + $0xc1] sm:$0xff]
        %v1656 = vld [vmem:[%s447 + $0xc9] sm:$0xff]
        %v1657 = vld [vmem:[%s447 + $0xd9] sm:$0xff]
        %v1658 = vld [vmem:[%s447 + $0xe1] sm:$0xff]
        %v1659 = vld [vmem:[%s447 + $0xf1] sm:$0xff]
        %v1660 = vld [vmem:[%s447 + $0xf9] sm:$0xff]
        %v1661 = vld [vmem:[%s447 + $0x109] sm:$0xff]
        %v1662 = vld [vmem:[%s447 + $0x111] sm:$0xff]
        %v1663 = vld [vmem:[%s447 + $0x121] sm:$0xff]
        %v1664 = vld [vmem:[%s447 + $0x129] sm:$0xff]
        %v1665 = vld [vmem:[%s447 + $0x139] sm:$0xff]
        %v1666 = vld [vmem:[%s447 + $0x141] sm:$0xff]
        %v1667 = vld [vmem:[%s447 + $0x151] sm:$0xff]
        %v1668 = vld [vmem:[%s447 + $0x159] sm:$0xff]
        %v1669 = vld [vmem:[%s447 + $0x169] sm:$0xff]
        %v1670 = vld [vmem:[%s447 + $0x171] sm:$0xff]
        %v1671 = vpack.c.bf16 %v1640, %v1639
        %v1672 = vpack.c.bf16 %v1642, %v1641
        %v1673 = vpack.c.bf16 %v1644, %v1643
        %v1674 = vpack.c.bf16 %v1646, %v1645
        %v1675 = vpack.c.bf16 %v1648, %v1647
        %v1676 = vpack.c.bf16 %v1650, %v1649
        %v1677 = vpack.c.bf16 %v1652, %v1651
        %v1678 = vpack.c.bf16 %v1654, %v1653
        %v1679 = vpack.c.bf16 %v1656, %v1655
        %v1680 = vpack.c.bf16 %v1658, %v1657
        %v1681 = vpack.c.bf16 %v1660, %v1659
        %v1682 = vpack.c.bf16 %v1662, %v1661
        %v1683 = vpack.c.bf16 %v1664, %v1663
        %v1684 = vpack.c.bf16 %v1666, %v1665
        %v1685 = vpack.c.bf16 %v1668, %v1667
        %v1686 = vpack.c.bf16 %v1670, %v1669
        %s1687 = scalar_lea.vmem %s3, 64
        %v1688 = vld [vmem:[%s1687] sm:$0xf]
        %v1689 = vld [vmem:[%s1687 + $0x4] sm:$0xf]
        %v1690 = vld [vmem:[%s1687 + $0x8] sm:$0xf]
        %v1691 = vld [vmem:[%s1687 + $0xc] sm:$0xf]
        %v1696 = vunpack.c.l.b16 %v1688
        %v1697 = vunpack.c.l.b16 %v1689
        %v1698 = vunpack.c.l.b16 %v1690
        %v1699 = vunpack.c.l.b16 %v1691
        %v1700 = vpack.c.b16 %v1697, %v1696
        %v1701 = vpack.c.b16 %v1699, %v1698
        %v1705 = vsel %vm249, %v1671, 0
        %v1708 = vsel %vm249, %v1672, 0
        %v1711 = vsel %vm249, %v1673, 0
        %v1714 = vsel %vm249, %v1674, 0
        %v1717 = vsel %vm249, %v1675, 0
        %v1720 = vsel %vm249, %v1676, 0
        %v1723 = vsel %vm249, %v1677, 0
        %v1726 = vsel %vm249, %v1678, 0
        %v1729 = vsel %vm249, %v1679, 0
        %v1732 = vsel %vm249, %v1680, 0
        %v1735 = vsel %vm249, %v1681, 0
        %v1738 = vsel %vm249, %v1682, 0
        %v1741 = vsel %vm249, %v1683, 0
        %v1744 = vsel %vm249, %v1684, 0
        %v1747 = vsel %vm249, %v1685, 0
        %v1750 = vsel %vm249, %v1686, 0
        %1752 = vmatprep.subr.bf16.mxu0 0
        %1753 = vmatpush1.bf16.msra.mxu0 %v1700
        %1754 = vmatprep.subr.bf16.mxu0 0
        %1755 = vmatpush1.bf16.msra.mxu0 %v1701
        %1756 = vmatprep.subr.bf16.mxu0 0
        %1757 = vmatpush1.bf16.msra.mxu0 0
        %1758 = vmatprep.subr.bf16.mxu0 0
        %1759 = vmatpush1.bf16.msra.mxu0 0
        %1760 = vmatprep.subr.bf16.mxu0 0
        %1761 = vmatpush1.bf16.msra.mxu0 0
        %1762 = vmatprep.subr.bf16.mxu0 0
        %1763 = vmatpush1.bf16.msra.mxu0 0
        %1764 = vmatprep.subr.bf16.mxu0 0
        %1765 = vmatpush1.bf16.msra.mxu0 0
        %1766 = vmatprep.subr.bf16.mxu0 0
        %1767 = vmatpush1.bf16.msra.mxu0 0
        %1768 = vmatprep.subr.bf16.mxu0 0
        %1769 = vmatpush1.bf16.msra.mxu0 0
        %1770 = vmatprep.subr.bf16.mxu0 0
        %1771 = vmatpush1.bf16.msra.mxu0 0
        %1772 = vmatprep.subr.bf16.mxu0 0
        %1773 = vmatpush1.bf16.msra.mxu0 0
        %1774 = vmatprep.subr.bf16.mxu0 0
        %1775 = vmatpush1.bf16.msra.mxu0 0
        %1776 = vmatprep.subr.bf16.mxu0 0
        %1777 = vmatpush1.bf16.msra.mxu0 0
        %1778 = vmatprep.subr.bf16.mxu0 0
        %1779 = vmatpush1.bf16.msra.mxu0 0
        %1780 = vmatprep.subr.bf16.mxu0 0
        %1781 = vmatpush1.bf16.msra.mxu0 0
        %1782 = vmatprep.subr.bf16.mxu0 0
        %1783 = vmatpush1.bf16.msra.mxu0 0
        %1784 = vmatprep.mubr.bf16.mxu0 0
        %1785 = vmatmul.mubr.bf16.gmra.mrb[0].mxu0 %v1705
        %v1786 = vpop.f32.mrb[0].mxu0
        %v1787 = vadd.f32 0.0, %v1786
        %v1788 = vpop.f32.mrb[0].mxu0
        %v1789 = vpop.f32.mrb[0].mxu0
        %v1790 = vadd.f32 0.0, %v1789
        %v1791 = vpop.f32.mrb[0].mxu0
        %1792 = vmatprep.mubr.bf16.mxu0 0
        %1793 = vmatmul.mubr.bf16.gmra.mrb[0].mxu0 %v1708
        %v1794 = vpop.f32.mrb[0].mxu0
        %v1795 = vadd.f32 0.0, %v1794
        %v1796 = vpop.f32.mrb[0].mxu0
        %v1797 = vpop.f32.mrb[0].mxu0
        %v1798 = vadd.f32 0.0, %v1797
        %v1799 = vpop.f32.mrb[0].mxu0
        %1800 = vmatprep.mubr.bf16.mxu0 0
        %1801 = vmatmul.mubr.bf16.gmra.mrb[0].mxu0 %v1711
        %v1802 = vpop.f32.mrb[0].mxu0
        %v1803 = vadd.f32 0.0, %v1802
        %v1804 = vpop.f32.mrb[0].mxu0
        %v1805 = vpop.f32.mrb[0].mxu0
        %v1806 = vadd.f32 0.0, %v1805
        %v1807 = vpop.f32.mrb[0].mxu0
        %1808 = vmatprep.mubr.bf16.mxu0 0
        %1809 = vmatmul.mubr.bf16.gmra.mrb[0].mxu0 %v1714
        %v1810 = vpop.f32.mrb[0].mxu0
        %v1811 = vadd.f32 0.0, %v1810
        %v1812 = vpop.f32.mrb[0].mxu0
        %v1813 = vpop.f32.mrb[0].mxu0
        %v1814 = vadd.f32 0.0, %v1813
        %v1815 = vpop.f32.mrb[0].mxu0
        %1816 = vmatprep.mubr.bf16.mxu0 0
        %1817 = vmatmul.mubr.bf16.gmra.mrb[0].mxu0 %v1717
        %v1818 = vpop.f32.mrb[0].mxu0
        %v1819 = vadd.f32 0.0, %v1818
        %v1820 = vpop.f32.mrb[0].mxu0
        %v1821 = vpop.f32.mrb[0].mxu0
        %v1822 = vadd.f32 0.0, %v1821
        %v1823 = vpop.f32.mrb[0].mxu0
        %1824 = vmatprep.mubr.bf16.mxu0 0
        %1825 = vmatmul.mubr.bf16.gmra.mrb[0].mxu0 %v1720
        %v1826 = vpop.f32.mrb[0].mxu0
        %v1827 = vadd.f32 0.0, %v1826
        %v1828 = vpop.f32.mrb[0].mxu0
        %v1829 = vpop.f32.mrb[0].mxu0
        %v1830 = vadd.f32 0.0, %v1829
        %v1831 = vpop.f32.mrb[0].mxu0
        %1832 = vmatprep.mubr.bf16.mxu0 0
        %1833 = vmatmul.mubr.bf16.gmra.mrb[0].mxu0 %v1723
        %v1834 = vpop.f32.mrb[0].mxu0
        %v1835 = vadd.f32 0.0, %v1834
        %v1836 = vpop.f32.mrb[0].mxu0
        %v1837 = vpop.f32.mrb[0].mxu0
        %v1838 = vadd.f32 0.0, %v1837
        %v1839 = vpop.f32.mrb[0].mxu0
        %1840 = vmatprep.mubr.bf16.mxu0 0
        %1841 = vmatmul.mubr.bf16.gmra.mrb[0].mxu0 %v1726
        %v1842 = vpop.f32.mrb[0].mxu0
        %v1843 = vadd.f32 0.0, %v1842
        %v1844 = vpop.f32.mrb[0].mxu0
        %v1845 = vpop.f32.mrb[0].mxu0
        %v1846 = vadd.f32 0.0, %v1845
        %v1847 = vpop.f32.mrb[0].mxu0
        %1848 = vmatprep.mubr.bf16.mxu0 0
        %1849 = vmatmul.mubr.bf16.gmra.mrb[0].mxu0 %v1729
        %v1850 = vpop.f32.mrb[0].mxu0
        %v1851 = vadd.f32 0.0, %v1850
        %v1852 = vpop.f32.mrb[0].mxu0
        %v1853 = vpop.f32.mrb[0].mxu0
        %v1854 = vadd.f32 0.0, %v1853
        %v1855 = vpop.f32.mrb[0].mxu0
        %1856 = vmatprep.mubr.bf16.mxu0 0
        %1857 = vmatmul.mubr.bf16.gmra.mrb[0].mxu0 %v1732
        %v1858 = vpop.f32.mrb[0].mxu0
        %v1859 = vadd.f32 0.0, %v1858
        %v1860 = vpop.f32.mrb[0].mxu0
        %v1861 = vpop.f32.mrb[0].mxu0
        %v1862 = vadd.f32 0.0, %v1861
        %v1863 = vpop.f32.mrb[0].mxu0
        %1864 = vmatprep.mubr.bf16.mxu0 0
        %1865 = vmatmul.mubr.bf16.gmra.mrb[0].mxu0 %v1735
        %v1866 = vpop.f32.mrb[0].mxu0
        %v1867 = vadd.f32 0.0, %v1866
        %v1868 = vpop.f32.mrb[0].mxu0
        %v1869 = vpop.f32.mrb[0].mxu0
        %v1870 = vadd.f32 0.0, %v1869
        %v1871 = vpop.f32.mrb[0].mxu0
        %1872 = vmatprep.mubr.bf16.mxu0 0
        %1873 = vmatmul.mubr.bf16.gmra.mrb[0].mxu0 %v1738
        %v1874 = vpop.f32.mrb[0].mxu0
        %v1875 = vadd.f32 0.0, %v1874
        %v1876 = vpop.f32.mrb[0].mxu0
        %v1877 = vpop.f32.mrb[0].mxu0
        %v1878 = vadd.f32 0.0, %v1877
        %v1879 = vpop.f32.mrb[0].mxu0
        %1880 = vmatprep.mubr.bf16.mxu0 0
        %1881 = vmatmul.mubr.bf16.gmra.mrb[0].mxu0 %v1741
        %v1882 = vpop.f32.mrb[0].mxu0
        %v1883 = vadd.f32 0.0, %v1882
        %v1884 = vpop.f32.mrb[0].mxu0
        %v1885 = vpop.f32.mrb[0].mxu0
        %v1886 = vadd.f32 0.0, %v1885
        %v1887 = vpop.f32.mrb[0].mxu0
        %1888 = vmatprep.mubr.bf16.mxu0 0
        %1889 = vmatmul.mubr.bf16.gmra.mrb[0].mxu0 %v1744
        %v1890 = vpop.f32.mrb[0].mxu0
        %v1891 = vadd.f32 0.0, %v1890
        %v1892 = vpop.f32.mrb[0].mxu0
        %v1893 = vpop.f32.mrb[0].mxu0
        %v1894 = vadd.f32 0.0, %v1893
        %v1895 = vpop.f32.mrb[0].mxu0
        %1896 = vmatprep.mubr.bf16.mxu0 0
        %1897 = vmatmul.mubr.bf16.gmra.mrb[0].mxu0 %v1747
        %v1898 = vpop.f32.mrb[0].mxu0
        %v1899 = vadd.f32 0.0, %v1898
        %v1900 = vpop.f32.mrb[0].mxu0
        %v1901 = vpop.f32.mrb[0].mxu0
        %v1902 = vadd.f32 0.0, %v1901
        %v1903 = vpop.f32.mrb[0].mxu0
        %1904 = vmatprep.mubr.bf16.mxu0 0
        %1905 = vmatmul.mubr.bf16.gmra.mrb[0].mxu0 %v1750
        %v1906 = vpop.f32.mrb[0].mxu0
        %v1907 = vadd.f32 0.0, %v1906
        %v1908 = vpop.f32.mrb[0].mxu0
        %v1909 = vpop.f32.mrb[0].mxu0
        %v1910 = vadd.f32 0.0, %v1909
        %v1911 = vpop.f32.mrb[0].mxu0
        %1912 = vdwg.mxu0
        %v1913 = vadd.f32 %v1607, %v1787
        %v1914 = vadd.f32 %v1608, %v1790
        %v1915 = vadd.f32 %v1609, %v1795
        %v1916 = vadd.f32 %v1610, %v1798
        %v1917 = vadd.f32 %v1611, %v1803
        %v1918 = vadd.f32 %v1612, %v1806
        %v1919 = vadd.f32 %v1613, %v1811
        %v1920 = vadd.f32 %v1614, %v1814
        %v1921 = vadd.f32 %v1615, %v1819
        %v1922 = vadd.f32 %v1616, %v1822
        %v1923 = vadd.f32 %v1617, %v1827
        %v1924 = vadd.f32 %v1618, %v1830
        %v1925 = vadd.f32 %v1619, %v1835
        %v1926 = vadd.f32 %v1620, %v1838
        %v1927 = vadd.f32 %v1621, %v1843
        %v1928 = vadd.f32 %v1622, %v1846
        %v1929 = vadd.f32 %v1623, %v1851
        %v1930 = vadd.f32 %v1624, %v1854
        %v1931 = vadd.f32 %v1625, %v1859
        %v1932 = vadd.f32 %v1626, %v1862
        %v1933 = vadd.f32 %v1627, %v1867
        %v1934 = vadd.f32 %v1628, %v1870
        %v1935 = vadd.f32 %v1629, %v1875
        %v1936 = vadd.f32 %v1630, %v1878
        %v1937 = vadd.f32 %v1631, %v1883
        %v1938 = vadd.f32 %v1632, %v1886
        %v1939 = vadd.f32 %v1633, %v1891
        %v1940 = vadd.f32 %v1634, %v1894
        %v1941 = vadd.f32 %v1635, %v1899
        %v1942 = vadd.f32 %v1636, %v1902
        %v1943 = vadd.f32 %v1637, %v1907
        %v1944 = vadd.f32 %v1638, %v1910
        %v1945 = vld [vmem:[%s447 + $0x2] sm:$0xff]
        %v1946 = vld [vmem:[%s447 + $0xa] sm:$0xff]
        %v1947 = vld [vmem:[%s447 + $0x1a] sm:$0xff]
        %v1948 = vld [vmem:[%s447 + $0x22] sm:$0xff]
        %v1949 = vld [vmem:[%s447 + $0x32] sm:$0xff]
        %v1950 = vld [vmem:[%s447 + $0x3a] sm:$0xff]
        %v1951 = vld [vmem:[%s447 + $0x4a] sm:$0xff]
        %v1952 = vld [vmem:[%s447 + $0x52] sm:$0xff]
        %v1953 = vld [vmem:[%s447 + $0x62] sm:$0xff]
        %v1954 = vld [vmem:[%s447 + $0x6a] sm:$0xff]
        %v1955 = vld [vmem:[%s447 + $0x7a] sm:$0xff]
        %v1956 = vld [vmem:[%s447 + $0x82] sm:$0xff]
        %v1957 = vld [vmem:[%s447 + $0x92] sm:$0xff]
        %v1958 = vld [vmem:[%s447 + $0x9a] sm:$0xff]
        %v1959 = vld [vmem:[%s447 + $0xaa] sm:$0xff]
        %v1960 = vld [vmem:[%s447 + $0xb2] sm:$0xff]
        %v1961 = vld [vmem:[%s447 + $0xc2] sm:$0xff]
        %v1962 = vld [vmem:[%s447 + $0xca] sm:$0xff]
        %v1963 = vld [vmem:[%s447 + $0xda] sm:$0xff]
        %v1964 = vld [vmem:[%s447 + $0xe2] sm:$0xff]
        %v1965 = vld [vmem:[%s447 + $0xf2] sm:$0xff]
        %v1966 = vld [vmem:[%s447 + $0xfa] sm:$0xff]
        %v1967 = vld [vmem:[%s447 + $0x10a] sm:$0xff]
        %v1968 = vld [vmem:[%s447 + $0x112] sm:$0xff]
        %v1969 = vld [vmem:[%s447 + $0x122] sm:$0xff]
        %v1970 = vld [vmem:[%s447 + $0x12a] sm:$0xff]
        %v1971 = vld [vmem:[%s447 + $0x13a] sm:$0xff]
        %v1972 = vld [vmem:[%s447 + $0x142] sm:$0xff]
        %v1973 = vld [vmem:[%s447 + $0x152] sm:$0xff]
        %v1974 = vld [vmem:[%s447 + $0x15a] sm:$0xff]
        %v1975 = vld [vmem:[%s447 + $0x16a] sm:$0xff]
        %v1976 = vld [vmem:[%s447 + $0x172] sm:$0xff]
        %v1977 = vpack.c.bf16 %v1946, %v1945
        %v1978 = vpack.c.bf16 %v1948, %v1947
        %v1979 = vpack.c.bf16 %v1950, %v1949
        %v1980 = vpack.c.bf16 %v1952, %v1951
        %v1981 = vpack.c.bf16 %v1954, %v1953
        %v1982 = vpack.c.bf16 %v1956, %v1955
        %v1983 = vpack.c.bf16 %v1958, %v1957
        %v1984 = vpack.c.bf16 %v1960, %v1959
        %v1985 = vpack.c.bf16 %v1962, %v1961
        %v1986 = vpack.c.bf16 %v1964, %v1963
        %v1987 = vpack.c.bf16 %v1966, %v1965
        %v1988 = vpack.c.bf16 %v1968, %v1967
        %v1989 = vpack.c.bf16 %v1970, %v1969
        %v1990 = vpack.c.bf16 %v1972, %v1971
        %v1991 = vpack.c.bf16 %v1974, %v1973
        %v1992 = vpack.c.bf16 %v1976, %v1975
        %s1993 = scalar_lea.vmem %s3, 80
        %v1994 = vld [vmem:[%s1993] sm:$0xf]
        %v1995 = vld [vmem:[%s1993 + $0x4] sm:$0xf]
        %v1996 = vld [vmem:[%s1993 + $0x8] sm:$0xf]
        %v1997 = vld [vmem:[%s1993 + $0xc] sm:$0xf]
        %v2002 = vunpack.c.l.b16 %v1994
        %v2003 = vunpack.c.l.b16 %v1995
        %v2004 = vunpack.c.l.b16 %v1996
        %v2005 = vunpack.c.l.b16 %v1997
        %v2006 = vpack.c.b16 %v2003, %v2002
        %v2007 = vpack.c.b16 %v2005, %v2004
        %v2011 = vsel %vm249, %v1977, 0
        %v2014 = vsel %vm249, %v1978, 0
        %v2017 = vsel %vm249, %v1979, 0
        %v2020 = vsel %vm249, %v1980, 0
        %v2023 = vsel %vm249, %v1981, 0
        %v2026 = vsel %vm249, %v1982, 0
        %v2029 = vsel %vm249, %v1983, 0
        %v2032 = vsel %vm249, %v1984, 0
        %v2035 = vsel %vm249, %v1985, 0
        %v2038 = vsel %vm249, %v1986, 0
        %v2041 = vsel %vm249, %v1987, 0
        %v2044 = vsel %vm249, %v1988, 0
        %v2047 = vsel %vm249, %v1989, 0
        %v2050 = vsel %vm249, %v1990, 0
        %v2053 = vsel %vm249, %v1991, 0
        %v2056 = vsel %vm249, %v1992, 0
        %2058 = vmatprep.subr.bf16.mxu0 0
        %2059 = vmatpush1.bf16.msra.mxu0 %v2006
        %2060 = vmatprep.subr.bf16.mxu0 0
        %2061 = vmatpush1.bf16.msra.mxu0 %v2007
        %2062 = vmatprep.subr.bf16.mxu0 0
        %2063 = vmatpush1.bf16.msra.mxu0 0
        %2064 = vmatprep.subr.bf16.mxu0 0
        %2065 = vmatpush1.bf16.msra.mxu0 0
        %2066 = vmatprep.subr.bf16.mxu0 0
        %2067 = vmatpush1.bf16.msra.mxu0 0
        %2068 = vmatprep.subr.bf16.mxu0 0
        %2069 = vmatpush1.bf16.msra.mxu0 0
        %2070 = vmatprep.subr.bf16.mxu0 0
        %2071 = vmatpush1.bf16.msra.mxu0 0
        %2072 = vmatprep.subr.bf16.mxu0 0
        %2073 = vmatpush1.bf16.msra.mxu0 0
        %2074 = vmatprep.subr.bf16.mxu0 0
        %2075 = vmatpush1.bf16.msra.mxu0 0
        %2076 = vmatprep.subr.bf16.mxu0 0
        %2077 = vmatpush1.bf16.msra.mxu0 0
        %2078 = vmatprep.subr.bf16.mxu0 0
        %2079 = vmatpush1.bf16.msra.mxu0 0
        %2080 = vmatprep.subr.bf16.mxu0 0
        %2081 = vmatpush1.bf16.msra.mxu0 0
        %2082 = vmatprep.subr.bf16.mxu0 0
        %2083 = vmatpush1.bf16.msra.mxu0 0
        %2084 = vmatprep.subr.bf16.mxu0 0
        %2085 = vmatpush1.bf16.msra.mxu0 0
        %2086 = vmatprep.subr.bf16.mxu0 0
        %2087 = vmatpush1.bf16.msra.mxu0 0
        %2088 = vmatprep.subr.bf16.mxu0 0
        %2089 = vmatpush1.bf16.msra.mxu0 0
        %2090 = vmatprep.mubr.bf16.mxu0 0
        %2091 = vmatmul.mubr.bf16.gmra.mrb[0].mxu0 %v2011
        %v2092 = vpop.f32.mrb[0].mxu0
        %v2093 = vadd.f32 0.0, %v2092
        %v2094 = vpop.f32.mrb[0].mxu0
        %v2095 = vpop.f32.mrb[0].mxu0
        %v2096 = vadd.f32 0.0, %v2095
        %v2097 = vpop.f32.mrb[0].mxu0
        %2098 = vmatprep.mubr.bf16.mxu0 0
        %2099 = vmatmul.mubr.bf16.gmra.mrb[0].mxu0 %v2014
        %v2100 = vpop.f32.mrb[0].mxu0
        %v2101 = vadd.f32 0.0, %v2100
        %v2102 = vpop.f32.mrb[0].mxu0
        %v2103 = vpop.f32.mrb[0].mxu0
        %v2104 = vadd.f32 0.0, %v2103
        %v2105 = vpop.f32.mrb[0].mxu0
        %2106 = vmatprep.mubr.bf16.mxu0 0
        %2107 = vmatmul.mubr.bf16.gmra.mrb[0].mxu0 %v2017
        %v2108 = vpop.f32.mrb[0].mxu0
        %v2109 = vadd.f32 0.0, %v2108
        %v2110 = vpop.f32.mrb[0].mxu0
        %v2111 = vpop.f32.mrb[0].mxu0
        %v2112 = vadd.f32 0.0, %v2111
        %v2113 = vpop.f32.mrb[0].mxu0
        %2114 = vmatprep.mubr.bf16.mxu0 0
        %2115 = vmatmul.mubr.bf16.gmra.mrb[0].mxu0 %v2020
        %v2116 = vpop.f32.mrb[0].mxu0
        %v2117 = vadd.f32 0.0, %v2116
        %v2118 = vpop.f32.mrb[0].mxu0
        %v2119 = vpop.f32.mrb[0].mxu0
        %v2120 = vadd.f32 0.0, %v2119
        %v2121 = vpop.f32.mrb[0].mxu0
        %2122 = vmatprep.mubr.bf16.mxu0 0
        %2123 = vmatmul.mubr.bf16.gmra.mrb[0].mxu0 %v2023
        %v2124 = vpop.f32.mrb[0].mxu0
        %v2125 = vadd.f32 0.0, %v2124
        %v2126 = vpop.f32.mrb[0].mxu0
        %v2127 = vpop.f32.mrb[0].mxu0
        %v2128 = vadd.f32 0.0, %v2127
        %v2129 = vpop.f32.mrb[0].mxu0
        %2130 = vmatprep.mubr.bf16.mxu0 0
        %2131 = vmatmul.mubr.bf16.gmra.mrb[0].mxu0 %v2026
        %v2132 = vpop.f32.mrb[0].mxu0
        %v2133 = vadd.f32 0.0, %v2132
        %v2134 = vpop.f32.mrb[0].mxu0
        %v2135 = vpop.f32.mrb[0].mxu0
        %v2136 = vadd.f32 0.0, %v2135
        %v2137 = vpop.f32.mrb[0].mxu0
        %2138 = vmatprep.mubr.bf16.mxu0 0
        %2139 = vmatmul.mubr.bf16.gmra.mrb[0].mxu0 %v2029
        %v2140 = vpop.f32.mrb[0].mxu0
        %v2141 = vadd.f32 0.0, %v2140
        %v2142 = vpop.f32.mrb[0].mxu0
        %v2143 = vpop.f32.mrb[0].mxu0
        %v2144 = vadd.f32 0.0, %v2143
        %v2145 = vpop.f32.mrb[0].mxu0
        %2146 = vmatprep.mubr.bf16.mxu0 0
        %2147 = vmatmul.mubr.bf16.gmra.mrb[0].mxu0 %v2032
        %v2148 = vpop.f32.mrb[0].mxu0
        %v2149 = vadd.f32 0.0, %v2148
        %v2150 = vpop.f32.mrb[0].mxu0
        %v2151 = vpop.f32.mrb[0].mxu0
        %v2152 = vadd.f32 0.0, %v2151
        %v2153 = vpop.f32.mrb[0].mxu0
        %2154 = vmatprep.mubr.bf16.mxu0 0
        %2155 = vmatmul.mubr.bf16.gmra.mrb[0].mxu0 %v2035
        %v2156 = vpop.f32.mrb[0].mxu0
        %v2157 = vadd.f32 0.0, %v2156
        %v2158 = vpop.f32.mrb[0].mxu0
        %v2159 = vpop.f32.mrb[0].mxu0
        %v2160 = vadd.f32 0.0, %v2159
        %v2161 = vpop.f32.mrb[0].mxu0
        %2162 = vmatprep.mubr.bf16.mxu0 0
        %2163 = vmatmul.mubr.bf16.gmra.mrb[0].mxu0 %v2038
        %v2164 = vpop.f32.mrb[0].mxu0
        %v2165 = vadd.f32 0.0, %v2164
        %v2166 = vpop.f32.mrb[0].mxu0
        %v2167 = vpop.f32.mrb[0].mxu0
        %v2168 = vadd.f32 0.0, %v2167
        %v2169 = vpop.f32.mrb[0].mxu0
        %2170 = vmatprep.mubr.bf16.mxu0 0
        %2171 = vmatmul.mubr.bf16.gmra.mrb[0].mxu0 %v2041
        %v2172 = vpop.f32.mrb[0].mxu0
        %v2173 = vadd.f32 0.0, %v2172
        %v2174 = vpop.f32.mrb[0].mxu0
        %v2175 = vpop.f32.mrb[0].mxu0
        %v2176 = vadd.f32 0.0, %v2175
        %v2177 = vpop.f32.mrb[0].mxu0
        %2178 = vmatprep.mubr.bf16.mxu0 0
        %2179 = vmatmul.mubr.bf16.gmra.mrb[0].mxu0 %v2044
        %v2180 = vpop.f32.mrb[0].mxu0
        %v2181 = vadd.f32 0.0, %v2180
        %v2182 = vpop.f32.mrb[0].mxu0
        %v2183 = vpop.f32.mrb[0].mxu0
        %v2184 = vadd.f32 0.0, %v2183
        %v2185 = vpop.f32.mrb[0].mxu0
        %2186 = vmatprep.mubr.bf16.mxu0 0
        %2187 = vmatmul.mubr.bf16.gmra.mrb[0].mxu0 %v2047
        %v2188 = vpop.f32.mrb[0].mxu0
        %v2189 = vadd.f32 0.0, %v2188
        %v2190 = vpop.f32.mrb[0].mxu0
        %v2191 = vpop.f32.mrb[0].mxu0
        %v2192 = vadd.f32 0.0, %v2191
        %v2193 = vpop.f32.mrb[0].mxu0
        %2194 = vmatprep.mubr.bf16.mxu0 0
        %2195 = vmatmul.mubr.bf16.gmra.mrb[0].mxu0 %v2050
        %v2196 = vpop.f32.mrb[0].mxu0
        %v2197 = vadd.f32 0.0, %v2196
        %v2198 = vpop.f32.mrb[0].mxu0
        %v2199 = vpop.f32.mrb[0].mxu0
        %v2200 = vadd.f32 0.0, %v2199
        %v2201 = vpop.f32.mrb[0].mxu0
        %2202 = vmatprep.mubr.bf16.mxu0 0
        %2203 = vmatmul.mubr.bf16.gmra.mrb[0].mxu0 %v2053
        %v2204 = vpop.f32.mrb[0].mxu0
        %v2205 = vadd.f32 0.0, %v2204
        %v2206 = vpop.f32.mrb[0].mxu0
        %v2207 = vpop.f32.mrb[0].mxu0
        %v2208 = vadd.f32 0.0, %v2207
        %v2209 = vpop.f32.mrb[0].mxu0
        %2210 = vmatprep.mubr.bf16.mxu0 0
        %2211 = vmatmul.mubr.bf16.gmra.mrb[0].mxu0 %v2056
        %v2212 = vpop.f32.mrb[0].mxu0
        %v2213 = vadd.f32 0.0, %v2212
        %v2214 = vpop.f32.mrb[0].mxu0
        %v2215 = vpop.f32.mrb[0].mxu0
        %v2216 = vadd.f32 0.0, %v2215
        %v2217 = vpop.f32.mrb[0].mxu0
        %2218 = vdwg.mxu0
        %v2219 = vadd.f32 %v1913, %v2093
        %v2220 = vadd.f32 %v1914, %v2096
        %v2221 = vadd.f32 %v1915, %v2101
        %v2222 = vadd.f32 %v1916, %v2104
        %v2223 = vadd.f32 %v1917, %v2109
        %v2224 = vadd.f32 %v1918, %v2112
        %v2225 = vadd.f32 %v1919, %v2117
        %v2226 = vadd.f32 %v1920, %v2120
        %v2227 = vadd.f32 %v1921, %v2125
        %v2228 = vadd.f32 %v1922, %v2128
        %v2229 = vadd.f32 %v1923, %v2133
        %v2230 = vadd.f32 %v1924, %v2136
        %v2231 = vadd.f32 %v1925, %v2141
        %v2232 = vadd.f32 %v1926, %v2144
        %v2233 = vadd.f32 %v1927, %v2149
        %v2234 = vadd.f32 %v1928, %v2152
        %v2235 = vadd.f32 %v1929, %v2157
        %v2236 = vadd.f32 %v1930, %v2160
        %v2237 = vadd.f32 %v1931, %v2165
        %v2238 = vadd.f32 %v1932, %v2168
        %v2239 = vadd.f32 %v1933, %v2173
        %v2240 = vadd.f32 %v1934, %v2176
        %v2241 = vadd.f32 %v1935, %v2181
        %v2242 = vadd.f32 %v1936, %v2184
        %v2243 = vadd.f32 %v1937, %v2189
        %v2244 = vadd.f32 %v1938, %v2192
        %v2245 = vadd.f32 %v1939, %v2197
        %v2246 = vadd.f32 %v1940, %v2200
        %v2247 = vadd.f32 %v1941, %v2205
        %v2248 = vadd.f32 %v1942, %v2208
        %v2249 = vadd.f32 %v1943, %v2213
        %v2250 = vadd.f32 %v1944, %v2216
        %s2251 = scalar_lea.vmem [#allocation2], 48
        %v2252 = vld [vmem:[%s2251] sm:$0xff]
        %v2253 = vld [vmem:[%s2251 + $0x8] sm:$0xff]
        %v2254 = vld [vmem:[%s2251 + $0x18] sm:$0xff]
        %v2255 = vld [vmem:[%s2251 + $0x20] sm:$0xff]
        %v2256 = vld [vmem:[%s2251 + $0x30] sm:$0xff]
        %v2257 = vld [vmem:[%s2251 + $0x38] sm:$0xff]
        %v2258 = vld [vmem:[%s2251 + $0x48] sm:$0xff]
        %v2259 = vld [vmem:[%s2251 + $0x50] sm:$0xff]
        %v2260 = vld [vmem:[%s2251 + $0x60] sm:$0xff]
        %v2261 = vld [vmem:[%s2251 + $0x68] sm:$0xff]
        %v2262 = vld [vmem:[%s2251 + $0x78] sm:$0xff]
        %v2263 = vld [vmem:[%s2251 + $0x80] sm:$0xff]
        %v2264 = vld [vmem:[%s2251 + $0x90] sm:$0xff]
        %v2265 = vld [vmem:[%s2251 + $0x98] sm:$0xff]
        %v2266 = vld [vmem:[%s2251 + $0xa8] sm:$0xff]
        %v2267 = vld [vmem:[%s2251 + $0xb0] sm:$0xff]
        %v2268 = vld [vmem:[%s2251 + $0xc0] sm:$0xff]
        %v2269 = vld [vmem:[%s2251 + $0xc8] sm:$0xff]
        %v2270 = vld [vmem:[%s2251 + $0xd8] sm:$0xff]
        %v2271 = vld [vmem:[%s2251 + $0xe0] sm:$0xff]
        %v2272 = vld [vmem:[%s2251 + $0xf0] sm:$0xff]
        %v2273 = vld [vmem:[%s2251 + $0xf8] sm:$0xff]
        %v2274 = vld [vmem:[%s2251 + $0x108] sm:$0xff]
        %v2275 = vld [vmem:[%s2251 + $0x110] sm:$0xff]
        %v2276 = vld [vmem:[%s2251 + $0x120] sm:$0xff]
        %v2277 = vld [vmem:[%s2251 + $0x128] sm:$0xff]
        %v2278 = vld [vmem:[%s2251 + $0x138] sm:$0xff]
        %v2279 = vld [vmem:[%s2251 + $0x140] sm:$0xff]
        %v2280 = vld [vmem:[%s2251 + $0x150] sm:$0xff]
        %v2281 = vld [vmem:[%s2251 + $0x158] sm:$0xff]
        %v2282 = vld [vmem:[%s2251 + $0x168] sm:$0xff]
        %v2283 = vld [vmem:[%s2251 + $0x170] sm:$0xff]
        %v2284 = vpack.c.bf16 %v2253, %v2252
        %v2285 = vpack.c.bf16 %v2255, %v2254
        %v2286 = vpack.c.bf16 %v2257, %v2256
        %v2287 = vpack.c.bf16 %v2259, %v2258
        %v2288 = vpack.c.bf16 %v2261, %v2260
        %v2289 = vpack.c.bf16 %v2263, %v2262
        %v2290 = vpack.c.bf16 %v2265, %v2264
        %v2291 = vpack.c.bf16 %v2267, %v2266
        %v2292 = vpack.c.bf16 %v2269, %v2268
        %v2293 = vpack.c.bf16 %v2271, %v2270
        %v2294 = vpack.c.bf16 %v2273, %v2272
        %v2295 = vpack.c.bf16 %v2275, %v2274
        %v2296 = vpack.c.bf16 %v2277, %v2276
        %v2297 = vpack.c.bf16 %v2279, %v2278
        %v2298 = vpack.c.bf16 %v2281, %v2280
        %v2299 = vpack.c.bf16 %v2283, %v2282
        %s2300 = scalar_lea.vmem %s3, 96
        %v2301 = vld [vmem:[%s2300] sm:$0xf]
        %v2302 = vld [vmem:[%s2300 + $0x4] sm:$0xf]
        %v2303 = vld [vmem:[%s2300 + $0x8] sm:$0xf]
        %v2304 = vld [vmem:[%s2300 + $0xc] sm:$0xf]
        %v2309 = vunpack.c.l.b16 %v2301
        %v2310 = vunpack.c.l.b16 %v2302
        %v2311 = vunpack.c.l.b16 %v2303
        %v2312 = vunpack.c.l.b16 %v2304
        %v2313 = vpack.c.b16 %v2310, %v2309
        %v2314 = vpack.c.b16 %v2312, %v2311
        %v2318 = vsel %vm249, %v2284, 0
        %v2321 = vsel %vm249, %v2285, 0
        %v2324 = vsel %vm249, %v2286, 0
        %v2327 = vsel %vm249, %v2287, 0
        %v2330 = vsel %vm249, %v2288, 0
        %v2333 = vsel %vm249, %v2289, 0
        %v2336 = vsel %vm249, %v2290, 0
        %v2339 = vsel %vm249, %v2291, 0
        %v2342 = vsel %vm249, %v2292, 0
        %v2345 = vsel %vm249, %v2293, 0
        %v2348 = vsel %vm249, %v2294, 0
        %v2351 = vsel %vm249, %v2295, 0
        %v2354 = vsel %vm249, %v2296, 0
        %v2357 = vsel %vm249, %v2297, 0
        %v2360 = vsel %vm249, %v2298, 0
        %v2363 = vsel %vm249, %v2299, 0
        %2365 = vmatprep.subr.bf16.mxu0 0
        %2366 = vmatpush1.bf16.msra.mxu0 %v2313
        %2367 = vmatprep.subr.bf16.mxu0 0
        %2368 = vmatpush1.bf16.msra.mxu0 %v2314
        %2369 = vmatprep.subr.bf16.mxu0 0
        %2370 = vmatpush1.bf16.msra.mxu0 0
        %2371 = vmatprep.subr.bf16.mxu0 0
        %2372 = vmatpush1.bf16.msra.mxu0 0
        %2373 = vmatprep.subr.bf16.mxu0 0
        %2374 = vmatpush1.bf16.msra.mxu0 0
        %2375 = vmatprep.subr.bf16.mxu0 0
        %2376 = vmatpush1.bf16.msra.mxu0 0
        %2377 = vmatprep.subr.bf16.mxu0 0
        %2378 = vmatpush1.bf16.msra.mxu0 0
        %2379 = vmatprep.subr.bf16.mxu0 0
        %2380 = vmatpush1.bf16.msra.mxu0 0
        %2381 = vmatprep.subr.bf16.mxu0 0
        %2382 = vmatpush1.bf16.msra.mxu0 0
        %2383 = vmatprep.subr.bf16.mxu0 0
        %2384 = vmatpush1.bf16.msra.mxu0 0
        %2385 = vmatprep.subr.bf16.mxu0 0
        %2386 = vmatpush1.bf16.msra.mxu0 0
        %2387 = vmatprep.subr.bf16.mxu0 0
        %2388 = vmatpush1.bf16.msra.mxu0 0
        %2389 = vmatprep.subr.bf16.mxu0 0
        %2390 = vmatpush1.bf16.msra.mxu0 0
        %2391 = vmatprep.subr.bf16.mxu0 0
        %2392 = vmatpush1.bf16.msra.mxu0 0
        %2393 = vmatprep.subr.bf16.mxu0 0
        %2394 = vmatpush1.bf16.msra.mxu0 0
        %2395 = vmatprep.subr.bf16.mxu0 0
        %2396 = vmatpush1.bf16.msra.mxu0 0
        %2397 = vmatprep.mubr.bf16.mxu0 0
        %2398 = vmatmul.mubr.bf16.gmra.mrb[0].mxu0 %v2318
        %v2399 = vpop.f32.mrb[0].mxu0
        %v2400 = vadd.f32 0.0, %v2399
        %v2401 = vpop.f32.mrb[0].mxu0
        %v2402 = vpop.f32.mrb[0].mxu0
        %v2403 = vadd.f32 0.0, %v2402
        %v2404 = vpop.f32.mrb[0].mxu0
        %2405 = vmatprep.mubr.bf16.mxu0 0
        %2406 = vmatmul.mubr.bf16.gmra.mrb[0].mxu0 %v2321
        %v2407 = vpop.f32.mrb[0].mxu0
        %v2408 = vadd.f32 0.0, %v2407
        %v2409 = vpop.f32.mrb[0].mxu0
        %v2410 = vpop.f32.mrb[0].mxu0
        %v2411 = vadd.f32 0.0, %v2410
        %v2412 = vpop.f32.mrb[0].mxu0
        %2413 = vmatprep.mubr.bf16.mxu0 0
        %2414 = vmatmul.mubr.bf16.gmra.mrb[0].mxu0 %v2324
        %v2415 = vpop.f32.mrb[0].mxu0
        %v2416 = vadd.f32 0.0, %v2415
        %v2417 = vpop.f32.mrb[0].mxu0
        %v2418 = vpop.f32.mrb[0].mxu0
        %v2419 = vadd.f32 0.0, %v2418
        %v2420 = vpop.f32.mrb[0].mxu0
        %2421 = vmatprep.mubr.bf16.mxu0 0
        %2422 = vmatmul.mubr.bf16.gmra.mrb[0].mxu0 %v2327
        %v2423 = vpop.f32.mrb[0].mxu0
        %v2424 = vadd.f32 0.0, %v2423
        %v2425 = vpop.f32.mrb[0].mxu0
        %v2426 = vpop.f32.mrb[0].mxu0
        %v2427 = vadd.f32 0.0, %v2426
        %v2428 = vpop.f32.mrb[0].mxu0
        %2429 = vmatprep.mubr.bf16.mxu0 0
        %2430 = vmatmul.mubr.bf16.gmra.mrb[0].mxu0 %v2330
        %v2431 = vpop.f32.mrb[0].mxu0
        %v2432 = vadd.f32 0.0, %v2431
        %v2433 = vpop.f32.mrb[0].mxu0
        %v2434 = vpop.f32.mrb[0].mxu0
        %v2435 = vadd.f32 0.0, %v2434
        %v2436 = vpop.f32.mrb[0].mxu0
        %2437 = vmatprep.mubr.bf16.mxu0 0
        %2438 = vmatmul.mubr.bf16.gmra.mrb[0].mxu0 %v2333
        %v2439 = vpop.f32.mrb[0].mxu0
        %v2440 = vadd.f32 0.0, %v2439
        %v2441 = vpop.f32.mrb[0].mxu0
        %v2442 = vpop.f32.mrb[0].mxu0
        %v2443 = vadd.f32 0.0, %v2442
        %v2444 = vpop.f32.mrb[0].mxu0
        %2445 = vmatprep.mubr.bf16.mxu0 0
        %2446 = vmatmul.mubr.bf16.gmra.mrb[0].mxu0 %v2336
        %v2447 = vpop.f32.mrb[0].mxu0
        %v2448 = vadd.f32 0.0, %v2447
        %v2449 = vpop.f32.mrb[0].mxu0
        %v2450 = vpop.f32.mrb[0].mxu0
        %v2451 = vadd.f32 0.0, %v2450
        %v2452 = vpop.f32.mrb[0].mxu0
        %2453 = vmatprep.mubr.bf16.mxu0 0
        %2454 = vmatmul.mubr.bf16.gmra.mrb[0].mxu0 %v2339
        %v2455 = vpop.f32.mrb[0].mxu0
        %v2456 = vadd.f32 0.0, %v2455
        %v2457 = vpop.f32.mrb[0].mxu0
        %v2458 = vpop.f32.mrb[0].mxu0
        %v2459 = vadd.f32 0.0, %v2458
        %v2460 = vpop.f32.mrb[0].mxu0
        %2461 = vmatprep.mubr.bf16.mxu0 0
        %2462 = vmatmul.mubr.bf16.gmra.mrb[0].mxu0 %v2342
        %v2463 = vpop.f32.mrb[0].mxu0
        %v2464 = vadd.f32 0.0, %v2463
        %v2465 = vpop.f32.mrb[0].mxu0
        %v2466 = vpop.f32.mrb[0].mxu0
        %v2467 = vadd.f32 0.0, %v2466
        %v2468 = vpop.f32.mrb[0].mxu0
        %2469 = vmatprep.mubr.bf16.mxu0 0
        %2470 = vmatmul.mubr.bf16.gmra.mrb[0].mxu0 %v2345
        %v2471 = vpop.f32.mrb[0].mxu0
        %v2472 = vadd.f32 0.0, %v2471
        %v2473 = vpop.f32.mrb[0].mxu0
        %v2474 = vpop.f32.mrb[0].mxu0
        %v2475 = vadd.f32 0.0, %v2474
        %v2476 = vpop.f32.mrb[0].mxu0
        %2477 = vmatprep.mubr.bf16.mxu0 0
        %2478 = vmatmul.mubr.bf16.gmra.mrb[0].mxu0 %v2348
        %v2479 = vpop.f32.mrb[0].mxu0
        %v2480 = vadd.f32 0.0, %v2479
        %v2481 = vpop.f32.mrb[0].mxu0
        %v2482 = vpop.f32.mrb[0].mxu0
        %v2483 = vadd.f32 0.0, %v2482
        %v2484 = vpop.f32.mrb[0].mxu0
        %2485 = vmatprep.mubr.bf16.mxu0 0
        %2486 = vmatmul.mubr.bf16.gmra.mrb[0].mxu0 %v2351
        %v2487 = vpop.f32.mrb[0].mxu0
        %v2488 = vadd.f32 0.0, %v2487
        %v2489 = vpop.f32.mrb[0].mxu0
        %v2490 = vpop.f32.mrb[0].mxu0
        %v2491 = vadd.f32 0.0, %v2490
        %v2492 = vpop.f32.mrb[0].mxu0
        %2493 = vmatprep.mubr.bf16.mxu0 0
        %2494 = vmatmul.mubr.bf16.gmra.mrb[0].mxu0 %v2354
        %v2495 = vpop.f32.mrb[0].mxu0
        %v2496 = vadd.f32 0.0, %v2495
        %v2497 = vpop.f32.mrb[0].mxu0
        %v2498 = vpop.f32.mrb[0].mxu0
        %v2499 = vadd.f32 0.0, %v2498
        %v2500 = vpop.f32.mrb[0].mxu0
        %2501 = vmatprep.mubr.bf16.mxu0 0
        %2502 = vmatmul.mubr.bf16.gmra.mrb[0].mxu0 %v2357
        %v2503 = vpop.f32.mrb[0].mxu0
        %v2504 = vadd.f32 0.0, %v2503
        %v2505 = vpop.f32.mrb[0].mxu0
        %v2506 = vpop.f32.mrb[0].mxu0
        %v2507 = vadd.f32 0.0, %v2506
        %v2508 = vpop.f32.mrb[0].mxu0
        %2509 = vmatprep.mubr.bf16.mxu0 0
        %2510 = vmatmul.mubr.bf16.gmra.mrb[0].mxu0 %v2360
        %v2511 = vpop.f32.mrb[0].mxu0
        %v2512 = vadd.f32 0.0, %v2511
        %v2513 = vpop.f32.mrb[0].mxu0
        %v2514 = vpop.f32.mrb[0].mxu0
        %v2515 = vadd.f32 0.0, %v2514
        %v2516 = vpop.f32.mrb[0].mxu0
        %2517 = vmatprep.mubr.bf16.mxu0 0
        %2518 = vmatmul.mubr.bf16.gmra.mrb[0].mxu0 %v2363
        %v2519 = vpop.f32.mrb[0].mxu0
        %v2520 = vadd.f32 0.0, %v2519
        %v2521 = vpop.f32.mrb[0].mxu0
        %v2522 = vpop.f32.mrb[0].mxu0
        %v2523 = vadd.f32 0.0, %v2522
        %v2524 = vpop.f32.mrb[0].mxu0
        %2525 = vdwg.mxu0
        %v2526 = vadd.f32 %v2219, %v2400
        %v2527 = vadd.f32 %v2220, %v2403
        %v2528 = vadd.f32 %v2221, %v2408
        %v2529 = vadd.f32 %v2222, %v2411
        %v2530 = vadd.f32 %v2223, %v2416
        %v2531 = vadd.f32 %v2224, %v2419
        %v2532 = vadd.f32 %v2225, %v2424
        %v2533 = vadd.f32 %v2226, %v2427
        %v2534 = vadd.f32 %v2227, %v2432
        %v2535 = vadd.f32 %v2228, %v2435
        %v2536 = vadd.f32 %v2229, %v2440
        %v2537 = vadd.f32 %v2230, %v2443
        %v2538 = vadd.f32 %v2231, %v2448
        %v2539 = vadd.f32 %v2232, %v2451
        %v2540 = vadd.f32 %v2233, %v2456
        %v2541 = vadd.f32 %v2234, %v2459
        %v2542 = vadd.f32 %v2235, %v2464
        %v2543 = vadd.f32 %v2236, %v2467
        %v2544 = vadd.f32 %v2237, %v2472
        %v2545 = vadd.f32 %v2238, %v2475
        %v2546 = vadd.f32 %v2239, %v2480
        %v2547 = vadd.f32 %v2240, %v2483
        %v2548 = vadd.f32 %v2241, %v2488
        %v2549 = vadd.f32 %v2242, %v2491
        %v2550 = vadd.f32 %v2243, %v2496
        %v2551 = vadd.f32 %v2244, %v2499
        %v2552 = vadd.f32 %v2245, %v2504
        %v2553 = vadd.f32 %v2246, %v2507
        %v2554 = vadd.f32 %v2247, %v2512
        %v2555 = vadd.f32 %v2248, %v2515
        %v2556 = vadd.f32 %v2249, %v2520
        %v2557 = vadd.f32 %v2250, %v2523
        %v2558 = vld [vmem:[%s2251 + $0x1] sm:$0xff]
        %v2559 = vld [vmem:[%s2251 + $0x9] sm:$0xff]
        %v2560 = vld [vmem:[%s2251 + $0x19] sm:$0xff]
        %v2561 = vld [vmem:[%s2251 + $0x21] sm:$0xff]
        %v2562 = vld [vmem:[%s2251 + $0x31] sm:$0xff]
        %v2563 = vld [vmem:[%s2251 + $0x39] sm:$0xff]
        %v2564 = vld [vmem:[%s2251 + $0x49] sm:$0xff]
        %v2565 = vld [vmem:[%s2251 + $0x51] sm:$0xff]
        %v2566 = vld [vmem:[%s2251 + $0x61] sm:$0xff]
        %v2567 = vld [vmem:[%s2251 + $0x69] sm:$0xff]
        %v2568 = vld [vmem:[%s2251 + $0x79] sm:$0xff]
        %v2569 = vld [vmem:[%s2251 + $0x81] sm:$0xff]
        %v2570 = vld [vmem:[%s2251 + $0x91] sm:$0xff]
        %v2571 = vld [vmem:[%s2251 + $0x99] sm:$0xff]
        %v2572 = vld [vmem:[%s2251 + $0xa9] sm:$0xff]
        %v2573 = vld [vmem:[%s2251 + $0xb1] sm:$0xff]
        %v2574 = vld [vmem:[%s2251 + $0xc1] sm:$0xff]
        %v2575 = vld [vmem:[%s2251 + $0xc9] sm:$0xff]
        %v2576 = vld [vmem:[%s2251 + $0xd9] sm:$0xff]
        %v2577 = vld [vmem:[%s2251 + $0xe1] sm:$0xff]
        %v2578 = vld [vmem:[%s2251 + $0xf1] sm:$0xff]
        %v2579 = vld [vmem:[%s2251 + $0xf9] sm:$0xff]
        %v2580 = vld [vmem:[%s2251 + $0x109] sm:$0xff]
        %v2581 = vld [vmem:[%s2251 + $0x111] sm:$0xff]
        %v2582 = vld [vmem:[%s2251 + $0x121] sm:$0xff]
        %v2583 = vld [vmem:[%s2251 + $0x129] sm:$0xff]
        %v2584 = vld [vmem:[%s2251 + $0x139] sm:$0xff]
        %v2585 = vld [vmem:[%s2251 + $0x141] sm:$0xff]
        %v2586 = vld [vmem:[%s2251 + $0x151] sm:$0xff]
        %v2587 = vld [vmem:[%s2251 + $0x159] sm:$0xff]
        %v2588 = vld [vmem:[%s2251 + $0x169] sm:$0xff]
        %v2589 = vld [vmem:[%s2251 + $0x171] sm:$0xff]
        %v2590 = vpack.c.bf16 %v2559, %v2558
        %v2591 = vpack.c.bf16 %v2561, %v2560
        %v2592 = vpack.c.bf16 %v2563, %v2562
        %v2593 = vpack.c.bf16 %v2565, %v2564
        %v2594 = vpack.c.bf16 %v2567, %v2566
        %v2595 = vpack.c.bf16 %v2569, %v2568
        %v2596 = vpack.c.bf16 %v2571, %v2570
        %v2597 = vpack.c.bf16 %v2573, %v2572
        %v2598 = vpack.c.bf16 %v2575, %v2574
        %v2599 = vpack.c.bf16 %v2577, %v2576
        %v2600 = vpack.c.bf16 %v2579, %v2578
        %v2601 = vpack.c.bf16 %v2581, %v2580
        %v2602 = vpack.c.bf16 %v2583, %v2582
        %v2603 = vpack.c.bf16 %v2585, %v2584
        %v2604 = vpack.c.bf16 %v2587, %v2586
        %v2605 = vpack.c.bf16 %v2589, %v2588
        %s2606 = scalar_lea.vmem %s3, 112
        %v2607 = vld [vmem:[%s2606] sm:$0xf]
        %v2608 = vld [vmem:[%s2606 + $0x4] sm:$0xf]
        %v2609 = vld [vmem:[%s2606 + $0x8] sm:$0xf]
        %v2610 = vld [vmem:[%s2606 + $0xc] sm:$0xf]
        %v2615 = vunpack.c.l.b16 %v2607
        %v2616 = vunpack.c.l.b16 %v2608
        %v2617 = vunpack.c.l.b16 %v2609
        %v2618 = vunpack.c.l.b16 %v2610
        %v2619 = vpack.c.b16 %v2616, %v2615
        %v2620 = vpack.c.b16 %v2618, %v2617
        %v2624 = vsel %vm249, %v2590, 0
        %v2627 = vsel %vm249, %v2591, 0
        %v2630 = vsel %vm249, %v2592, 0
        %v2633 = vsel %vm249, %v2593, 0
        %v2636 = vsel %vm249, %v2594, 0
        %v2639 = vsel %vm249, %v2595, 0
        %v2642 = vsel %vm249, %v2596, 0
        %v2645 = vsel %vm249, %v2597, 0
        %v2648 = vsel %vm249, %v2598, 0
        %v2651 = vsel %vm249, %v2599, 0
        %v2654 = vsel %vm249, %v2600, 0
        %v2657 = vsel %vm249, %v2601, 0
        %v2660 = vsel %vm249, %v2602, 0
        %v2663 = vsel %vm249, %v2603, 0
        %v2666 = vsel %vm249, %v2604, 0
        %v2669 = vsel %vm249, %v2605, 0
        %2671 = vmatprep.subr.bf16.mxu0 0
        %2672 = vmatpush1.bf16.msra.mxu0 %v2619
        %2673 = vmatprep.subr.bf16.mxu0 0
        %2674 = vmatpush1.bf16.msra.mxu0 %v2620
        %2675 = vmatprep.subr.bf16.mxu0 0
        %2676 = vmatpush1.bf16.msra.mxu0 0
        %2677 = vmatprep.subr.bf16.mxu0 0
        %2678 = vmatpush1.bf16.msra.mxu0 0
        %2679 = vmatprep.subr.bf16.mxu0 0
        %2680 = vmatpush1.bf16.msra.mxu0 0
        %2681 = vmatprep.subr.bf16.mxu0 0
        %2682 = vmatpush1.bf16.msra.mxu0 0
        %2683 = vmatprep.subr.bf16.mxu0 0
        %2684 = vmatpush1.bf16.msra.mxu0 0
        %2685 = vmatprep.subr.bf16.mxu0 0
        %2686 = vmatpush1.bf16.msra.mxu0 0
        %2687 = vmatprep.subr.bf16.mxu0 0
        %2688 = vmatpush1.bf16.msra.mxu0 0
        %2689 = vmatprep.subr.bf16.mxu0 0
        %2690 = vmatpush1.bf16.msra.mxu0 0
        %2691 = vmatprep.subr.bf16.mxu0 0
        %2692 = vmatpush1.bf16.msra.mxu0 0
        %2693 = vmatprep.subr.bf16.mxu0 0
        %2694 = vmatpush1.bf16.msra.mxu0 0
        %2695 = vmatprep.subr.bf16.mxu0 0
        %2696 = vmatpush1.bf16.msra.mxu0 0
        %2697 = vmatprep.subr.bf16.mxu0 0
        %2698 = vmatpush1.bf16.msra.mxu0 0
        %2699 = vmatprep.subr.bf16.mxu0 0
        %2700 = vmatpush1.bf16.msra.mxu0 0
        %2701 = vmatprep.subr.bf16.mxu0 0
        %2702 = vmatpush1.bf16.msra.mxu0 0
        %2703 = vmatprep.mubr.bf16.mxu0 0
        %2704 = vmatmul.mubr.bf16.gmra.mrb[0].mxu0 %v2624
        %v2705 = vpop.f32.mrb[0].mxu0
        %v2706 = vadd.f32 0.0, %v2705
        %v2707 = vpop.f32.mrb[0].mxu0
        %v2708 = vpop.f32.mrb[0].mxu0
        %v2709 = vadd.f32 0.0, %v2708
        %v2710 = vpop.f32.mrb[0].mxu0
        %2711 = vmatprep.mubr.bf16.mxu0 0
        %2712 = vmatmul.mubr.bf16.gmra.mrb[0].mxu0 %v2627
        %v2713 = vpop.f32.mrb[0].mxu0
        %v2714 = vadd.f32 0.0, %v2713
        %v2715 = vpop.f32.mrb[0].mxu0
        %v2716 = vpop.f32.mrb[0].mxu0
        %v2717 = vadd.f32 0.0, %v2716
        %v2718 = vpop.f32.mrb[0].mxu0
        %2719 = vmatprep.mubr.bf16.mxu0 0
        %2720 = vmatmul.mubr.bf16.gmra.mrb[0].mxu0 %v2630
        %v2721 = vpop.f32.mrb[0].mxu0
        %v2722 = vadd.f32 0.0, %v2721
        %v2723 = vpop.f32.mrb[0].mxu0
        %v2724 = vpop.f32.mrb[0].mxu0
        %v2725 = vadd.f32 0.0, %v2724
        %v2726 = vpop.f32.mrb[0].mxu0
        %2727 = vmatprep.mubr.bf16.mxu0 0
        %2728 = vmatmul.mubr.bf16.gmra.mrb[0].mxu0 %v2633
        %v2729 = vpop.f32.mrb[0].mxu0
        %v2730 = vadd.f32 0.0, %v2729
        %v2731 = vpop.f32.mrb[0].mxu0
        %v2732 = vpop.f32.mrb[0].mxu0
        %v2733 = vadd.f32 0.0, %v2732
        %v2734 = vpop.f32.mrb[0].mxu0
        %2735 = vmatprep.mubr.bf16.mxu0 0
        %2736 = vmatmul.mubr.bf16.gmra.mrb[0].mxu0 %v2636
        %v2737 = vpop.f32.mrb[0].mxu0
        %v2738 = vadd.f32 0.0, %v2737
        %v2739 = vpop.f32.mrb[0].mxu0
        %v2740 = vpop.f32.mrb[0].mxu0
        %v2741 = vadd.f32 0.0, %v2740
        %v2742 = vpop.f32.mrb[0].mxu0
        %2743 = vmatprep.mubr.bf16.mxu0 0
        %2744 = vmatmul.mubr.bf16.gmra.mrb[0].mxu0 %v2639
        %v2745 = vpop.f32.mrb[0].mxu0
        %v2746 = vadd.f32 0.0, %v2745
        %v2747 = vpop.f32.mrb[0].mxu0
        %v2748 = vpop.f32.mrb[0].mxu0
        %v2749 = vadd.f32 0.0, %v2748
        %v2750 = vpop.f32.mrb[0].mxu0
        %2751 = vmatprep.mubr.bf16.mxu0 0
        %2752 = vmatmul.mubr.bf16.gmra.mrb[0].mxu0 %v2642
        %v2753 = vpop.f32.mrb[0].mxu0
        %v2754 = vadd.f32 0.0, %v2753
        %v2755 = vpop.f32.mrb[0].mxu0
        %v2756 = vpop.f32.mrb[0].mxu0
        %v2757 = vadd.f32 0.0, %v2756
        %v2758 = vpop.f32.mrb[0].mxu0
        %2759 = vmatprep.mubr.bf16.mxu0 0
        %2760 = vmatmul.mubr.bf16.gmra.mrb[0].mxu0 %v2645
        %v2761 = vpop.f32.mrb[0].mxu0
        %v2762 = vadd.f32 0.0, %v2761
        %v2763 = vpop.f32.mrb[0].mxu0
        %v2764 = vpop.f32.mrb[0].mxu0
        %v2765 = vadd.f32 0.0, %v2764
        %v2766 = vpop.f32.mrb[0].mxu0
        %2767 = vmatprep.mubr.bf16.mxu0 0
        %2768 = vmatmul.mubr.bf16.gmra.mrb[0].mxu0 %v2648
        %v2769 = vpop.f32.mrb[0].mxu0
        %v2770 = vadd.f32 0.0, %v2769
        %v2771 = vpop.f32.mrb[0].mxu0
        %v2772 = vpop.f32.mrb[0].mxu0
        %v2773 = vadd.f32 0.0, %v2772
        %v2774 = vpop.f32.mrb[0].mxu0
        %2775 = vmatprep.mubr.bf16.mxu0 0
        %2776 = vmatmul.mubr.bf16.gmra.mrb[0].mxu0 %v2651
        %v2777 = vpop.f32.mrb[0].mxu0
        %v2778 = vadd.f32 0.0, %v2777
        %v2779 = vpop.f32.mrb[0].mxu0
        %v2780 = vpop.f32.mrb[0].mxu0
        %v2781 = vadd.f32 0.0, %v2780
        %v2782 = vpop.f32.mrb[0].mxu0
        %2783 = vmatprep.mubr.bf16.mxu0 0
        %2784 = vmatmul.mubr.bf16.gmra.mrb[0].mxu0 %v2654
        %v2785 = vpop.f32.mrb[0].mxu0
        %v2786 = vadd.f32 0.0, %v2785
        %v2787 = vpop.f32.mrb[0].mxu0
        %v2788 = vpop.f32.mrb[0].mxu0
        %v2789 = vadd.f32 0.0, %v2788
        %v2790 = vpop.f32.mrb[0].mxu0
        %2791 = vmatprep.mubr.bf16.mxu0 0
        %2792 = vmatmul.mubr.bf16.gmra.mrb[0].mxu0 %v2657
        %v2793 = vpop.f32.mrb[0].mxu0
        %v2794 = vadd.f32 0.0, %v2793
        %v2795 = vpop.f32.mrb[0].mxu0
        %v2796 = vpop.f32.mrb[0].mxu0
        %v2797 = vadd.f32 0.0, %v2796
        %v2798 = vpop.f32.mrb[0].mxu0
        %2799 = vmatprep.mubr.bf16.mxu0 0
        %2800 = vmatmul.mubr.bf16.gmra.mrb[0].mxu0 %v2660
        %v2801 = vpop.f32.mrb[0].mxu0
        %v2802 = vadd.f32 0.0, %v2801
        %v2803 = vpop.f32.mrb[0].mxu0
        %v2804 = vpop.f32.mrb[0].mxu0
        %v2805 = vadd.f32 0.0, %v2804
        %v2806 = vpop.f32.mrb[0].mxu0
        %2807 = vmatprep.mubr.bf16.mxu0 0
        %2808 = vmatmul.mubr.bf16.gmra.mrb[0].mxu0 %v2663
        %v2809 = vpop.f32.mrb[0].mxu0
        %v2810 = vadd.f32 0.0, %v2809
        %v2811 = vpop.f32.mrb[0].mxu0
        %v2812 = vpop.f32.mrb[0].mxu0
        %v2813 = vadd.f32 0.0, %v2812
        %v2814 = vpop.f32.mrb[0].mxu0
        %2815 = vmatprep.mubr.bf16.mxu0 0
        %2816 = vmatmul.mubr.bf16.gmra.mrb[0].mxu0 %v2666
        %v2817 = vpop.f32.mrb[0].mxu0
        %v2818 = vadd.f32 0.0, %v2817
        %v2819 = vpop.f32.mrb[0].mxu0
        %v2820 = vpop.f32.mrb[0].mxu0
        %v2821 = vadd.f32 0.0, %v2820
        %v2822 = vpop.f32.mrb[0].mxu0
        %2823 = vmatprep.mubr.bf16.mxu0 0
        %2824 = vmatmul.mubr.bf16.gmra.mrb[0].mxu0 %v2669
        %v2825 = vpop.f32.mrb[0].mxu0
        %v2826 = vadd.f32 0.0, %v2825
        %v2827 = vpop.f32.mrb[0].mxu0
        %v2828 = vpop.f32.mrb[0].mxu0
        %v2829 = vadd.f32 0.0, %v2828
        %v2830 = vpop.f32.mrb[0].mxu0
        %2831 = vdwg.mxu0
        %v2832 = vadd.f32 %v2526, %v2706
        %v2833 = vadd.f32 %v2527, %v2709
        %v2834 = vadd.f32 %v2528, %v2714
        %v2835 = vadd.f32 %v2529, %v2717
        %v2836 = vadd.f32 %v2530, %v2722
        %v2837 = vadd.f32 %v2531, %v2725
        %v2838 = vadd.f32 %v2532, %v2730
        %v2839 = vadd.f32 %v2533, %v2733
        %v2840 = vadd.f32 %v2534, %v2738
        %v2841 = vadd.f32 %v2535, %v2741
        %v2842 = vadd.f32 %v2536, %v2746
        %v2843 = vadd.f32 %v2537, %v2749
        %v2844 = vadd.f32 %v2538, %v2754
        %v2845 = vadd.f32 %v2539, %v2757
        %v2846 = vadd.f32 %v2540, %v2762
        %v2847 = vadd.f32 %v2541, %v2765
        %v2848 = vadd.f32 %v2542, %v2770
        %v2849 = vadd.f32 %v2543, %v2773
        %v2850 = vadd.f32 %v2544, %v2778
        %v2851 = vadd.f32 %v2545, %v2781
        %v2852 = vadd.f32 %v2546, %v2786
        %v2853 = vadd.f32 %v2547, %v2789
        %v2854 = vadd.f32 %v2548, %v2794
        %v2855 = vadd.f32 %v2549, %v2797
        %v2856 = vadd.f32 %v2550, %v2802
        %v2857 = vadd.f32 %v2551, %v2805
        %v2858 = vadd.f32 %v2552, %v2810
        %v2859 = vadd.f32 %v2553, %v2813
        %v2860 = vadd.f32 %v2554, %v2818
        %v2861 = vadd.f32 %v2555, %v2821
        %v2862 = vadd.f32 %v2556, %v2826
        %v2863 = vadd.f32 %v2557, %v2829
        %v2864 = vld [vmem:[%s2251 + $0x2] sm:$0xff]
        %v2865 = vld [vmem:[%s2251 + $0xa] sm:$0xff]
        %v2866 = vld [vmem:[%s2251 + $0x1a] sm:$0xff]
        %v2867 = vld [vmem:[%s2251 + $0x22] sm:$0xff]
        %v2868 = vld [vmem:[%s2251 + $0x32] sm:$0xff]
        %v2869 = vld [vmem:[%s2251 + $0x3a] sm:$0xff]
        %v2870 = vld [vmem:[%s2251 + $0x4a] sm:$0xff]
        %v2871 = vld [vmem:[%s2251 + $0x52] sm:$0xff]
        %v2872 = vld [vmem:[%s2251 + $0x62] sm:$0xff]
        %v2873 = vld [vmem:[%s2251 + $0x6a] sm:$0xff]
        %v2874 = vld [vmem:[%s2251 + $0x7a] sm:$0xff]
        %v2875 = vld [vmem:[%s2251 + $0x82] sm:$0xff]
        %v2876 = vld [vmem:[%s2251 + $0x92] sm:$0xff]
        %v2877 = vld [vmem:[%s2251 + $0x9a] sm:$0xff]
        %v2878 = vld [vmem:[%s2251 + $0xaa] sm:$0xff]
        %v2879 = vld [vmem:[%s2251 + $0xb2] sm:$0xff]
        %v2880 = vld [vmem:[%s2251 + $0xc2] sm:$0xff]
        %v2881 = vld [vmem:[%s2251 + $0xca] sm:$0xff]
        %v2882 = vld [vmem:[%s2251 + $0xda] sm:$0xff]
        %v2883 = vld [vmem:[%s2251 + $0xe2] sm:$0xff]
        %v2884 = vld [vmem:[%s2251 + $0xf2] sm:$0xff]
        %v2885 = vld [vmem:[%s2251 + $0xfa] sm:$0xff]
        %v2886 = vld [vmem:[%s2251 + $0x10a] sm:$0xff]
        %v2887 = vld [vmem:[%s2251 + $0x112] sm:$0xff]
        %v2888 = vld [vmem:[%s2251 + $0x122] sm:$0xff]
        %v2889 = vld [vmem:[%s2251 + $0x12a] sm:$0xff]
        %v2890 = vld [vmem:[%s2251 + $0x13a] sm:$0xff]
        %v2891 = vld [vmem:[%s2251 + $0x142] sm:$0xff]
        %v2892 = vld [vmem:[%s2251 + $0x152] sm:$0xff]
        %v2893 = vld [vmem:[%s2251 + $0x15a] sm:$0xff]
        %v2894 = vld [vmem:[%s2251 + $0x16a] sm:$0xff]
        %v2895 = vld [vmem:[%s2251 + $0x172] sm:$0xff]
        %v2896 = vpack.c.bf16 %v2865, %v2864
        %v2897 = vpack.c.bf16 %v2867, %v2866
        %v2898 = vpack.c.bf16 %v2869, %v2868
        %v2899 = vpack.c.bf16 %v2871, %v2870
        %v2900 = vpack.c.bf16 %v2873, %v2872
        %v2901 = vpack.c.bf16 %v2875, %v2874
        %v2902 = vpack.c.bf16 %v2877, %v2876
        %v2903 = vpack.c.bf16 %v2879, %v2878
        %v2904 = vpack.c.bf16 %v2881, %v2880
        %v2905 = vpack.c.bf16 %v2883, %v2882
        %v2906 = vpack.c.bf16 %v2885, %v2884
        %v2907 = vpack.c.bf16 %v2887, %v2886
        %v2908 = vpack.c.bf16 %v2889, %v2888
        %v2909 = vpack.c.bf16 %v2891, %v2890
        %v2910 = vpack.c.bf16 %v2893, %v2892
        %v2911 = vpack.c.bf16 %v2895, %v2894
        %s2912 = scalar_lea.vmem %s3, 128
        %v2913 = vld [vmem:[%s2912] sm:$0xf]
        %v2914 = vld [vmem:[%s2912 + $0x4] sm:$0xf]
        %v2915 = vld [vmem:[%s2912 + $0x8] sm:$0xf]
        %v2916 = vld [vmem:[%s2912 + $0xc] sm:$0xf]
        %v2921 = vunpack.c.l.b16 %v2913
        %v2922 = vunpack.c.l.b16 %v2914
        %v2923 = vunpack.c.l.b16 %v2915
        %v2924 = vunpack.c.l.b16 %v2916
        %v2925 = vpack.c.b16 %v2922, %v2921
        %v2926 = vpack.c.b16 %v2924, %v2923
        %v2930 = vsel %vm249, %v2896, 0
        %v2933 = vsel %vm249, %v2897, 0
        %v2936 = vsel %vm249, %v2898, 0
        %v2939 = vsel %vm249, %v2899, 0
        %v2942 = vsel %vm249, %v2900, 0
        %v2945 = vsel %vm249, %v2901, 0
        %v2948 = vsel %vm249, %v2902, 0
        %v2951 = vsel %vm249, %v2903, 0
        %v2954 = vsel %vm249, %v2904, 0
        %v2957 = vsel %vm249, %v2905, 0
        %v2960 = vsel %vm249, %v2906, 0
        %v2963 = vsel %vm249, %v2907, 0
        %v2966 = vsel %vm249, %v2908, 0
        %v2969 = vsel %vm249, %v2909, 0
        %v2972 = vsel %vm249, %v2910, 0
        %v2975 = vsel %vm249, %v2911, 0
        %2977 = vmatprep.subr.bf16.mxu0 0
        %2978 = vmatpush1.bf16.msra.mxu0 %v2925
        %2979 = vmatprep.subr.bf16.mxu0 0
        %2980 = vmatpush1.bf16.msra.mxu0 %v2926
        %2981 = vmatprep.subr.bf16.mxu0 0
        %2982 = vmatpush1.bf16.msra.mxu0 0
        %2983 = vmatprep.subr.bf16.mxu0 0
        %2984 = vmatpush1.bf16.msra.mxu0 0
        %2985 = vmatprep.subr.bf16.mxu0 0
        %2986 = vmatpush1.bf16.msra.mxu0 0
        %2987 = vmatprep.subr.bf16.mxu0 0
        %2988 = vmatpush1.bf16.msra.mxu0 0
        %2989 = vmatprep.subr.bf16.mxu0 0
        %2990 = vmatpush1.bf16.msra.mxu0 0
        %2991 = vmatprep.subr.bf16.mxu0 0
        %2992 = vmatpush1.bf16.msra.mxu0 0
        %2993 = vmatprep.subr.bf16.mxu0 0
        %2994 = vmatpush1.bf16.msra.mxu0 0
        %2995 = vmatprep.subr.bf16.mxu0 0
        %2996 = vmatpush1.bf16.msra.mxu0 0
        %2997 = vmatprep.subr.bf16.mxu0 0
        %2998 = vmatpush1.bf16.msra.mxu0 0
        %2999 = vmatprep.subr.bf16.mxu0 0
        %3000 = vmatpush1.bf16.msra.mxu0 0
        %3001 = vmatprep.subr.bf16.mxu0 0
        %3002 = vmatpush1.bf16.msra.mxu0 0
        %3003 = vmatprep.subr.bf16.mxu0 0
        %3004 = vmatpush1.bf16.msra.mxu0 0
        %3005 = vmatprep.subr.bf16.mxu0 0
        %3006 = vmatpush1.bf16.msra.mxu0 0
        %3007 = vmatprep.subr.bf16.mxu0 0
        %3008 = vmatpush1.bf16.msra.mxu0 0
        %3009 = vmatprep.mubr.bf16.mxu0 0
        %3010 = vmatmul.mubr.bf16.gmra.mrb[0].mxu0 %v2930
        %v3011 = vpop.f32.mrb[0].mxu0
        %v3012 = vadd.f32 0.0, %v3011
        %v3013 = vpop.f32.mrb[0].mxu0
        %v3014 = vpop.f32.mrb[0].mxu0
        %v3015 = vadd.f32 0.0, %v3014
        %v3016 = vpop.f32.mrb[0].mxu0
        %3017 = vmatprep.mubr.bf16.mxu0 0
        %3018 = vmatmul.mubr.bf16.gmra.mrb[0].mxu0 %v2933
        %v3019 = vpop.f32.mrb[0].mxu0
        %v3020 = vadd.f32 0.0, %v3019
        %v3021 = vpop.f32.mrb[0].mxu0
        %v3022 = vpop.f32.mrb[0].mxu0
        %v3023 = vadd.f32 0.0, %v3022
        %v3024 = vpop.f32.mrb[0].mxu0
        %3025 = vmatprep.mubr.bf16.mxu0 0
        %3026 = vmatmul.mubr.bf16.gmra.mrb[0].mxu0 %v2936
        %v3027 = vpop.f32.mrb[0].mxu0
        %v3028 = vadd.f32 0.0, %v3027
        %v3029 = vpop.f32.mrb[0].mxu0
        %v3030 = vpop.f32.mrb[0].mxu0
        %v3031 = vadd.f32 0.0, %v3030
        %v3032 = vpop.f32.mrb[0].mxu0
        %3033 = vmatprep.mubr.bf16.mxu0 0
        %3034 = vmatmul.mubr.bf16.gmra.mrb[0].mxu0 %v2939
        %v3035 = vpop.f32.mrb[0].mxu0
        %v3036 = vadd.f32 0.0, %v3035
        %v3037 = vpop.f32.mrb[0].mxu0
        %v3038 = vpop.f32.mrb[0].mxu0
        %v3039 = vadd.f32 0.0, %v3038
        %v3040 = vpop.f32.mrb[0].mxu0
        %3041 = vmatprep.mubr.bf16.mxu0 0
        %3042 = vmatmul.mubr.bf16.gmra.mrb[0].mxu0 %v2942
        %v3043 = vpop.f32.mrb[0].mxu0
        %v3044 = vadd.f32 0.0, %v3043
        %v3045 = vpop.f32.mrb[0].mxu0
        %v3046 = vpop.f32.mrb[0].mxu0
        %v3047 = vadd.f32 0.0, %v3046
        %v3048 = vpop.f32.mrb[0].mxu0
        %3049 = vmatprep.mubr.bf16.mxu0 0
        %3050 = vmatmul.mubr.bf16.gmra.mrb[0].mxu0 %v2945
        %v3051 = vpop.f32.mrb[0].mxu0
        %v3052 = vadd.f32 0.0, %v3051
        %v3053 = vpop.f32.mrb[0].mxu0
        %v3054 = vpop.f32.mrb[0].mxu0
        %v3055 = vadd.f32 0.0, %v3054
        %v3056 = vpop.f32.mrb[0].mxu0
        %3057 = vmatprep.mubr.bf16.mxu0 0
        %3058 = vmatmul.mubr.bf16.gmra.mrb[0].mxu0 %v2948
        %v3059 = vpop.f32.mrb[0].mxu0
        %v3060 = vadd.f32 0.0, %v3059
        %v3061 = vpop.f32.mrb[0].mxu0
        %v3062 = vpop.f32.mrb[0].mxu0
        %v3063 = vadd.f32 0.0, %v3062
        %v3064 = vpop.f32.mrb[0].mxu0
        %3065 = vmatprep.mubr.bf16.mxu0 0
        %3066 = vmatmul.mubr.bf16.gmra.mrb[0].mxu0 %v2951
        %v3067 = vpop.f32.mrb[0].mxu0
        %v3068 = vadd.f32 0.0, %v3067
        %v3069 = vpop.f32.mrb[0].mxu0
        %v3070 = vpop.f32.mrb[0].mxu0
        %v3071 = vadd.f32 0.0, %v3070
        %v3072 = vpop.f32.mrb[0].mxu0
        %3073 = vmatprep.mubr.bf16.mxu0 0
        %3074 = vmatmul.mubr.bf16.gmra.mrb[0].mxu0 %v2954
        %v3075 = vpop.f32.mrb[0].mxu0
        %v3076 = vadd.f32 0.0, %v3075
        %v3077 = vpop.f32.mrb[0].mxu0
        %v3078 = vpop.f32.mrb[0].mxu0
        %v3079 = vadd.f32 0.0, %v3078
        %v3080 = vpop.f32.mrb[0].mxu0
        %3081 = vmatprep.mubr.bf16.mxu0 0
        %3082 = vmatmul.mubr.bf16.gmra.mrb[0].mxu0 %v2957
        %v3083 = vpop.f32.mrb[0].mxu0
        %v3084 = vadd.f32 0.0, %v3083
        %v3085 = vpop.f32.mrb[0].mxu0
        %v3086 = vpop.f32.mrb[0].mxu0
        %v3087 = vadd.f32 0.0, %v3086
        %v3088 = vpop.f32.mrb[0].mxu0
        %3089 = vmatprep.mubr.bf16.mxu0 0
        %3090 = vmatmul.mubr.bf16.gmra.mrb[0].mxu0 %v2960
        %v3091 = vpop.f32.mrb[0].mxu0
        %v3092 = vadd.f32 0.0, %v3091
        %v3093 = vpop.f32.mrb[0].mxu0
        %v3094 = vpop.f32.mrb[0].mxu0
        %v3095 = vadd.f32 0.0, %v3094
        %v3096 = vpop.f32.mrb[0].mxu0
        %3097 = vmatprep.mubr.bf16.mxu0 0
        %3098 = vmatmul.mubr.bf16.gmra.mrb[0].mxu0 %v2963
        %v3099 = vpop.f32.mrb[0].mxu0
        %v3100 = vadd.f32 0.0, %v3099
        %v3101 = vpop.f32.mrb[0].mxu0
        %v3102 = vpop.f32.mrb[0].mxu0
        %v3103 = vadd.f32 0.0, %v3102
        %v3104 = vpop.f32.mrb[0].mxu0
        %3105 = vmatprep.mubr.bf16.mxu0 0
        %3106 = vmatmul.mubr.bf16.gmra.mrb[0].mxu0 %v2966
        %v3107 = vpop.f32.mrb[0].mxu0
        %v3108 = vadd.f32 0.0, %v3107
        %v3109 = vpop.f32.mrb[0].mxu0
        %v3110 = vpop.f32.mrb[0].mxu0
        %v3111 = vadd.f32 0.0, %v3110
        %v3112 = vpop.f32.mrb[0].mxu0
        %3113 = vmatprep.mubr.bf16.mxu0 0
        %3114 = vmatmul.mubr.bf16.gmra.mrb[0].mxu0 %v2969
        %v3115 = vpop.f32.mrb[0].mxu0
        %v3116 = vadd.f32 0.0, %v3115
        %v3117 = vpop.f32.mrb[0].mxu0
        %v3118 = vpop.f32.mrb[0].mxu0
        %v3119 = vadd.f32 0.0, %v3118
        %v3120 = vpop.f32.mrb[0].mxu0
        %3121 = vmatprep.mubr.bf16.mxu0 0
        %3122 = vmatmul.mubr.bf16.gmra.mrb[0].mxu0 %v2972
        %v3123 = vpop.f32.mrb[0].mxu0
        %v3124 = vadd.f32 0.0, %v3123
        %v3125 = vpop.f32.mrb[0].mxu0
        %v3126 = vpop.f32.mrb[0].mxu0
        %v3127 = vadd.f32 0.0, %v3126
        %v3128 = vpop.f32.mrb[0].mxu0
        %3129 = vmatprep.mubr.bf16.mxu0 0
        %3130 = vmatmul.mubr.bf16.gmra.mrb[0].mxu0 %v2975
        %v3131 = vpop.f32.mrb[0].mxu0
        %v3132 = vadd.f32 0.0, %v3131
        %v3133 = vpop.f32.mrb[0].mxu0
        %v3134 = vpop.f32.mrb[0].mxu0
        %v3135 = vadd.f32 0.0, %v3134
        %v3136 = vpop.f32.mrb[0].mxu0
        %3137 = vdwg.mxu0
        %v3138 = vadd.f32 %v2832, %v3012
        %v3139 = vadd.f32 %v2833, %v3015
        %v3140 = vadd.f32 %v2834, %v3020
        %v3141 = vadd.f32 %v2835, %v3023
        %v3142 = vadd.f32 %v2836, %v3028
        %v3143 = vadd.f32 %v2837, %v3031
        %v3144 = vadd.f32 %v2838, %v3036
        %v3145 = vadd.f32 %v2839, %v3039
        %v3146 = vadd.f32 %v2840, %v3044
        %v3147 = vadd.f32 %v2841, %v3047
        %v3148 = vadd.f32 %v2842, %v3052
        %v3149 = vadd.f32 %v2843, %v3055
        %v3150 = vadd.f32 %v2844, %v3060
        %v3151 = vadd.f32 %v2845, %v3063
        %v3152 = vadd.f32 %v2846, %v3068
        %v3153 = vadd.f32 %v2847, %v3071
        %v3154 = vadd.f32 %v2848, %v3076
        %v3155 = vadd.f32 %v2849, %v3079
        %v3156 = vadd.f32 %v2850, %v3084
        %v3157 = vadd.f32 %v2851, %v3087
        %v3158 = vadd.f32 %v2852, %v3092
        %v3159 = vadd.f32 %v2853, %v3095
        %v3160 = vadd.f32 %v2854, %v3100
        %v3161 = vadd.f32 %v2855, %v3103
        %v3162 = vadd.f32 %v2856, %v3108
        %v3163 = vadd.f32 %v2857, %v3111
        %v3164 = vadd.f32 %v2858, %v3116
        %v3165 = vadd.f32 %v2859, %v3119
        %v3166 = vadd.f32 %v2860, %v3124
        %v3167 = vadd.f32 %v2861, %v3127
        %v3168 = vadd.f32 %v2862, %v3132
        %v3169 = vadd.f32 %v2863, %v3135
        %3202 = vrot.lane.b32.xlu0 %v3138, 32
        %v3203 = vpop.permute.xlu0 %3202
        %3204 = vrot.lane.b32.xlu0 %v3139, 32
        %v3205 = vpop.permute.xlu0 %3204
        %3206 = vrot.lane.b32.xlu0 %v3140, 32
        %v3207 = vpop.permute.xlu0 %3206
        %3208 = vrot.lane.b32.xlu0 %v3141, 32
        %v3209 = vpop.permute.xlu0 %3208
        %3210 = vrot.lane.b32.xlu0 %v3142, 32
        %v3211 = vpop.permute.xlu0 %3210
        %3212 = vrot.lane.b32.xlu0 %v3143, 32
        %v3213 = vpop.permute.xlu0 %3212
        %3214 = vrot.lane.b32.xlu0 %v3144, 32
        %v3215 = vpop.permute.xlu0 %3214
        %3216 = vrot.lane.b32.xlu0 %v3145, 32
        %v3217 = vpop.permute.xlu0 %3216
        %3218 = vrot.lane.b32.xlu0 %v3146, 32
        %v3219 = vpop.permute.xlu0 %3218
        %3220 = vrot.lane.b32.xlu0 %v3147, 32
        %v3221 = vpop.permute.xlu0 %3220
        %3222 = vrot.lane.b32.xlu0 %v3148, 32
        %v3223 = vpop.permute.xlu0 %3222
        %3224 = vrot.lane.b32.xlu0 %v3149, 32
        %v3225 = vpop.permute.xlu0 %3224
        %3226 = vrot.lane.b32.xlu0 %v3150, 32
        %v3227 = vpop.permute.xlu0 %3226
        %3228 = vrot.lane.b32.xlu0 %v3151, 32
        %v3229 = vpop.permute.xlu0 %3228
        %3230 = vrot.lane.b32.xlu0 %v3152, 32
        %v3231 = vpop.permute.xlu0 %3230
        %3232 = vrot.lane.b32.xlu0 %v3153, 32
        %v3233 = vpop.permute.xlu0 %3232
        %3234 = vrot.lane.b32.xlu0 %v3154, 32
        %v3235 = vpop.permute.xlu0 %3234
        %3236 = vrot.lane.b32.xlu0 %v3155, 32
        %v3237 = vpop.permute.xlu0 %3236
        %3238 = vrot.lane.b32.xlu0 %v3156, 32
        %v3239 = vpop.permute.xlu0 %3238
        %3240 = vrot.lane.b32.xlu0 %v3157, 32
        %v3241 = vpop.permute.xlu0 %3240
        %3242 = vrot.lane.b32.xlu0 %v3158, 32
        %v3243 = vpop.permute.xlu0 %3242
        %3244 = vrot.lane.b32.xlu0 %v3159, 32
        %v3245 = vpop.permute.xlu0 %3244
        %3246 = vrot.lane.b32.xlu0 %v3160, 32
        %v3247 = vpop.permute.xlu0 %3246
        %3248 = vrot.lane.b32.xlu0 %v3161, 32
        %v3249 = vpop.permute.xlu0 %3248
        %3250 = vrot.lane.b32.xlu0 %v3162, 32
        %v3251 = vpop.permute.xlu0 %3250
        %3252 = vrot.lane.b32.xlu0 %v3163, 32
        %v3253 = vpop.permute.xlu0 %3252
        %3254 = vrot.lane.b32.xlu0 %v3164, 32
        %v3255 = vpop.permute.xlu0 %3254
        %3256 = vrot.lane.b32.xlu0 %v3165, 32
        %v3257 = vpop.permute.xlu0 %3256
        %3258 = vrot.lane.b32.xlu0 %v3166, 32
        %v3259 = vpop.permute.xlu0 %3258
        %3260 = vrot.lane.b32.xlu0 %v3167, 32
        %v3261 = vpop.permute.xlu0 %3260
        %3262 = vrot.lane.b32.xlu0 %v3168, 32
        %v3263 = vpop.permute.xlu0 %3262
        %3264 = vrot.lane.b32.xlu0 %v3169, 32
        %v3265 = vpop.permute.xlu0 %3264
        %vm3298 = vcmask 392448
        %3299 = vst.msk [vmem:[%s215] sm:$0xff] %vm3298, %v3203
        %3300 = vst.msk [vmem:[%s215 + $0x8] sm:$0xff] %vm3298, %v3205
        %3301 = vst.msk [vmem:[%s215 + $0x10] sm:$0xff] %vm3298, %v3207
        %3302 = vst.msk [vmem:[%s215 + $0x18] sm:$0xff] %vm3298, %v3209
        %3303 = vst.msk [vmem:[%s215 + $0x20] sm:$0xff] %vm3298, %v3211
        %3304 = vst.msk [vmem:[%s215 + $0x28] sm:$0xff] %vm3298, %v3213
        %3305 = vst.msk [vmem:[%s215 + $0x30] sm:$0xff] %vm3298, %v3215
        %3306 = vst.msk [vmem:[%s215 + $0x38] sm:$0xff] %vm3298, %v3217
        %3307 = vst.msk [vmem:[%s215 + $0x40] sm:$0xff] %vm3298, %v3219
        %3308 = vst.msk [vmem:[%s215 + $0x48] sm:$0xff] %vm3298, %v3221
        %3309 = vst.msk [vmem:[%s215 + $0x50] sm:$0xff] %vm3298, %v3223
        %3310 = vst.msk [vmem:[%s215 + $0x58] sm:$0xff] %vm3298, %v3225
        %3311 = vst.msk [vmem:[%s215 + $0x60] sm:$0xff] %vm3298, %v3227
        %3312 = vst.msk [vmem:[%s215 + $0x68] sm:$0xff] %vm3298, %v3229
        %3313 = vst.msk [vmem:[%s215 + $0x70] sm:$0xff] %vm3298, %v3231
        %3314 = vst.msk [vmem:[%s215 + $0x78] sm:$0xff] %vm3298, %v3233
        %3315 = vst.msk [vmem:[%s215 + $0x80] sm:$0xff] %vm3298, %v3235
        %3316 = vst.msk [vmem:[%s215 + $0x88] sm:$0xff] %vm3298, %v3237
        %3317 = vst.msk [vmem:[%s215 + $0x90] sm:$0xff] %vm3298, %v3239
        %3318 = vst.msk [vmem:[%s215 + $0x98] sm:$0xff] %vm3298, %v3241
        %3319 = vst.msk [vmem:[%s215 + $0xa0] sm:$0xff] %vm3298, %v3243
        %3320 = vst.msk [vmem:[%s215 + $0xa8] sm:$0xff] %vm3298, %v3245
        %3321 = vst.msk [vmem:[%s215 + $0xb0] sm:$0xff] %vm3298, %v3247
        %3322 = vst.msk [vmem:[%s215 + $0xb8] sm:$0xff] %vm3298, %v3249
        %3323 = vst.msk [vmem:[%s215 + $0xc0] sm:$0xff] %vm3298, %v3251
        %3324 = vst.msk [vmem:[%s215 + $0xc8] sm:$0xff] %vm3298, %v3253
        %3325 = vst.msk [vmem:[%s215 + $0xd0] sm:$0xff] %vm3298, %v3255
        %3326 = vst.msk [vmem:[%s215 + $0xd8] sm:$0xff] %vm3298, %v3257
        %3327 = vst.msk [vmem:[%s215 + $0xe0] sm:$0xff] %vm3298, %v3259
        %3328 = vst.msk [vmem:[%s215 + $0xe8] sm:$0xff] %vm3298, %v3261
        %3329 = vst.msk [vmem:[%s215 + $0xf0] sm:$0xff] %vm3298, %v3263
        %3330 = vst.msk [vmem:[%s215 + $0xf8] sm:$0xff] %vm3298, %v3265
        %s3331 = sand.u32 %s118, 1
        %s3332 = scalar_lea.sflag [#allocation5], %s3331
        %s3333 = sand.u32 %s118, 1
        %s3334 = smul.addr %s3333, 256
        %s3335 = scalar_lea.vmem [#allocation6], %s3334
        // Predicated region
        $region41: #{_lambda_.1} parent=35 // pred_check
          %p3336 = pneg %p128
        $region42: #{_lambda_.1} parent=35 // pred_check_branch
          %3338 = sbr.rel (%p3336) target = $region44
        $region43: #{_lambda_.1} parent=35 // pred_region
          %s3340 = ssub.s32 4096, 4096
          %3341 = vsyncadd %s3332, %s3340
          %s3342 = smul.addr %s21, 32
          %s3343 = smul.addr %s3342, 128
          %s3344 = scalar_lea.hbm %s4, %s3343
          %s3345 = sshll.u32 %s3335, 4
          %s3346 = int_to_ptr.vmem [resolvable:$true] %s3345
          %3351 = dma.vmem_to_hbm [thread:$0]  %s3346, 4096, %s3344, %s3332, 128, 128, 8
        $region44: #{_lambda_.1} parent=35 // pred_fallthru
          _
      $region36: #{_lambda_.1} parent=5 // pred_fallthru
        _
      %p3352 = scmp.le.s32.totalorder 2, %s16
      // Predicated region
      $region45: #{_lambda_.1} parent=5 // pred_check
        %p3353 = pneg %p3352
      $region46: #{_lambda_.1} parent=5 // pred_check_branch
        %3355 = sbr.rel (%p3353) target = $region48
      $region47: #{_lambda_.1} parent=5 // pred_region
        %s3356 = ssub.s32 %s16, 2
        // Predicated region
        $region49: #{_lambda_.1} parent=47 // pred_check
          %p3357 = pneg %p134
        $region50: #{_lambda_.1} parent=47 // pred_check_branch
          %3359 = sbr.rel (%p3357) target = $region52
        $region51: #{_lambda_.1} parent=47 // pred_region
          %s3360 = sand.u32 %s119, 1
          %s3361 = scalar_lea.sflag [#allocation5], %s3360
          %s3362 = sand.u32 %s119, 1
          %s3363 = smul.addr %s3362, 256
          %s3364 = scalar_lea.vmem [#allocation6], %s3363
          %3365 = dma.done %s3361, 4096
        $region52: #{_lambda_.1} parent=47 // pred_fallthru
          _
      $region48: #{_lambda_.1} parent=5 // pred_fallthru
        _
    $region6: #{_lambda_.1} parent=1 // loop_footer
      %s20 = sadd.s32 1, %s16
    $region7: #{_lambda_.1} parent=1 // loop_footer_branch
      %15 = sbr.rel target = $region3
    $region8: #{_lambda_.1} parent=1 // loop_exit
      _
    %3366 = vsyncpa [#allocation4], 1
    %s3367 = scalar_lea.sflag [#allocation4], 1
    %3368 = vsyncpa %s3367, 1
    %3369 = vsyncpa [#allocation5], 1
    %s3370 = scalar_lea.sflag [#allocation5], 1
    %3371 = vsyncpa %s3370, 1

</llo_original>
